<compile_context>
chip_gen: v7x
topology: tpu7x:2x2x1
jax: 0.10.0
libtpu: 0.0.40
codegen_flags: <defaults>
</compile_context>

<pallas_src>
import functools

import jax
import jax.numpy as jnp
from jax.experimental import pallas as pl


# ------------------------------ Pallas kernel ------------------------------

def _layernorm(x, gamma, beta, eps=1e-5):
    """One-pass LayerNorm over the last axis (biased variance, PyTorch semantics)."""
    mean = jnp.mean(x, axis=-1, keepdims=True)
    m2 = jnp.mean(x * x, axis=-1, keepdims=True)
    var = jnp.maximum(m2 - mean * mean, 0.0)
    return (x - mean) * jax.lax.rsqrt(var + eps) * gamma + beta


def encoder_kernel(src_ref, pos_ref, wqk_ref, wv_ref, wo_ref, w1_ref, b1_ref,
                   w2_ref, vec_ref, fin_ref, out_ref,
                   *, nhead, num_layers, apply_final_norm):
    S, B, D = src_ref.shape
    N = B * S
    hd = D // nhead
    scale = 1.0 / float(hd) ** 0.5

    src3 = src_ref[...].astype(jnp.float32)            # (S, B, D)
    pos3 = pos_ref[...].astype(jnp.float32)
    # (S, B, D) -> (B*S, D) batch-major rows; done once in VMEM (no wrapper transpose).
    x = jnp.concatenate([src3[:, b, :] for b in range(B)], axis=0)
    pos = jnp.concatenate([pos3[:, b, :] for b in range(B)], axis=0)

    for l in range(num_layers):                        # static unroll over layers
        vecs = vec_ref[l]                              # (9, D) packed vector params
        bq, bk, bv = vecs[0:1], vecs[1:2], vecs[2:3]
        bo, b2 = vecs[3:4], vecs[4:5]
        g1, be1, g2, be2 = vecs[5:6], vecs[6:7], vecs[7:8], vecs[8:9]

        # --- self-attention:  q = k = x + pos,  v = x   (fused Q/K projection) ---
        qk = jnp.dot(x + pos, wqk_ref[l], preferred_element_type=jnp.float32)   # (N, 2D)
        q = qk[:, :D] + bq
        k = qk[:, D:] + bk
        v = jnp.dot(x, wv_ref[l], preferred_element_type=jnp.float32) + bv      # (N, D)

        heads = []
        for h in range(nhead):                         # static unroll over heads
            sl = slice(h * hd, (h + 1) * hd)
            qh = (q[:, sl] * scale).reshape(B, S, hd)      # batch-leading, no transpose
            kh = k[:, sl].reshape(B, S, hd)
            vh = v[:, sl].reshape(B, S, hd)
            s = jnp.einsum("bqd,bkd->bqk", qh, kh, preferred_element_type=jnp.float32)
            s = s - jnp.max(s, axis=-1, keepdims=True)
            e = jnp.exp(s)
            p = e * pl.reciprocal(jnp.sum(e, axis=-1, keepdims=True), approx=False)
            o = jnp.einsum("bqk,bkd->bqd", p, vh, preferred_element_type=jnp.float32)
            heads.append(o.reshape(N, hd))
        ctx = jnp.concatenate(heads, axis=-1)          # (N, D), one lane-axis concat

        attn = jnp.dot(ctx, wo_ref[l], preferred_element_type=jnp.float32) + bo

        # --- residual + norm1 (post-norm; dropout = identity in eval) ---
        x = _layernorm(x + attn, g1, be1)

        # --- FFN: linear1 -> ReLU -> linear2 ; residual + norm2 ---
        ff = jnp.maximum(
            jnp.dot(x, w1_ref[l], preferred_element_type=jnp.float32) + b1_ref[l], 0.0)
        ff = jnp.dot(ff, w2_ref[l], preferred_element_type=jnp.float32) + b2
        x = _layernorm(x + ff, g2, be2)

    if apply_final_norm:                               # fused final encoder LayerNorm
        fin = fin_ref[...]
        x = _layernorm(x, fin[0:1], fin[1:2])

    # (B*S, D) -> (S, B, D), reordered in VMEM, one full-block store.
    y = x.reshape(B, S, D)
    out3 = jnp.concatenate([y[b].reshape(S, 1, D) for b in range(B)], axis=1)
    out_ref[...] = out3.astype(out_ref.dtype)


# ------------------------------ wrappers ------------------------------------

def pack_params(layers, final_norm):
    """Pre-transpose / fuse / stack PyTorch-convention weights (one-time host-side cost)."""
    wqk = jnp.stack([jnp.concatenate([lp["wq"].T, lp["wk"].T], axis=1) for lp in layers])
    wv = jnp.stack([lp["wv"].T for lp in layers])
    wo = jnp.stack([lp["wo"].T for lp in layers])
    w1 = jnp.stack([lp["w1"].T for lp in layers])
    b1 = jnp.stack([lp["b1"][None, :] for lp in layers])
    w2 = jnp.stack([lp["w2"].T for lp in layers])
    vec = jnp.stack([jnp.stack([lp["bq"], lp["bk"], lp["bv"], lp["bo"], lp["b2"],
                                lp["g1"], lp["be1"], lp["g2"], lp["be2"]]) for lp in layers])
    fin = jnp.stack([final_norm["g"], final_norm["b"]])
    return dict(wqk=wqk, wv=wv, wo=wo, w1=w1, b1=b1, w2=w2, vec=vec, fin=fin)


def transformer_encoder_pallas(src, pos, packed, *, nhead, apply_final_norm=True):
    """src, pos: (S, B, D) seq-first layout (PyTorch nn.MultiheadAttention default)."""
    S, B, D = src.shape
    num_layers = packed["wqk"].shape[0]
    kernel = functools.partial(encoder_kernel, nhead=nhead, num_layers=num_layers,
                               apply_final_norm=apply_final_norm)
    return pl.pallas_call(
        kernel,
        out_shape=jax.ShapeDtypeStruct((S, B, D), src.dtype),
        # no grid: whole (tiny) problem + weights live in VMEM for the full forward pass
    )(src, pos, packed["wqk"], packed["wv"], packed["wo"], packed["w1"],
      packed["b1"], packed["w2"], packed["vec"], packed["fin"])


# ------------------------------ pure-JAX reference ---------------------------

def _ref_layernorm(x, g, b, eps=1e-5):
    mean = jnp.mean(x, axis=-1, keepdims=True)
    var = jnp.mean((x - mean) ** 2, axis=-1, keepdims=True)
    return (x - mean) * jax.lax.rsqrt(var + eps) * g + b


def _ref_layer(x, pos, p, nhead):
    B, S, D = x.shape
    hd = D // nhead
    qk_in = x + pos
    q = qk_in @ p["wq"].T + p["bq"]
    k = qk_in @ p["wk"].T + p["bk"]
    v = x @ p["wv"].T + p["bv"]
    q = q.reshape(B, S, nhead, hd).transpose(0, 2, 1, 3) / (hd ** 0.5)
    k = k.reshape(B, S, nhead, hd).transpose(0, 2, 1, 3)
    v = v.reshape(B, S, nhead, hd).transpose(0, 2, 1, 3)
    s = jnp.einsum("bhqd,bhkd->bhqk", q, k)
    a = jax.nn.softmax(s, axis=-1)
    o = jnp.einsum("bhqk,bhkd->bhqd", a, v).transpose(0, 2, 1, 3).reshape(B, S, D)
    o = o @ p["wo"].T + p["bo"]
    x = _ref_layernorm(x + o, p["g1"], p["be1"])
    ff = jax.nn.relu(x @ p["w1"].T + p["b1"]) @ p["w2"].T + p["b2"]
    return _ref_layernorm(x + ff, p["g2"], p["be2"])


def _ref_encoder(src, pos, layers, final_norm, nhead):
    x = jnp.transpose(src, (1, 0, 2))
    p = jnp.transpose(pos, (1, 0, 2))
    for lp in layers:
        x = _ref_layer(x, p, lp, nhead)
    if final_norm is not None:
        x = _ref_layernorm(x, final_norm["g"], final_norm["b"])
    return jnp.transpose(x, (1, 0, 2))


# ------------------------------ params / main --------------------------------

def init_layer_params(key, D, FF, scale=0.05):
    ks = jax.random.split(key, 8)
    f32 = jnp.float32
    return dict(
        wq=scale * jax.random.normal(ks[0], (D, D), f32),
        wk=scale * jax.random.normal(ks[1], (D, D), f32),
        wv=scale * jax.random.normal(ks[2], (D, D), f32),
        bq=scale * jax.random.normal(ks[3], (D,), f32),
        bk=jnp.zeros((D,), f32),
        bv=jnp.zeros((D,), f32),
        wo=scale * jax.random.normal(ks[4], (D, D), f32),
        bo=scale * jax.random.normal(ks[5], (D,), f32),
        w1=scale * jax.random.normal(ks[6], (FF, D), f32),
        b1=jnp.zeros((FF,), f32),
        w2=scale * jax.random.normal(ks[7], (D, FF), f32),
        b2=jnp.zeros((D,), f32),
        g1=jnp.ones((D,), f32), be1=jnp.zeros((D,), f32),
        g2=jnp.ones((D,), f32), be2=jnp.zeros((D,), f32),
    )


if __name__ == "__main__":
    # seq=8, batch=2, d_model=32, nhead=4, dim_feedforward=64, num_layers=2
    S, B, D, NHEAD, FF, NUM_LAYERS = 8, 2, 32, 4, 64, 2

    key = jax.random.PRNGKey(0)
    k_src, k_pos, k_par = jax.random.split(key, 3)
    src = jax.random.normal(k_src, (S, B, D), jnp.float32)
    pos = jax.random.normal(k_pos, (S, B, D), jnp.float32)

    layer_keys = jax.random.split(k_par, NUM_LAYERS)
    layers = [init_layer_params(k, D, FF) for k in layer_keys]
    final_norm = dict(g=jnp.ones((D,), jnp.float32), b=jnp.zeros((D,), jnp.float32))

    packed = pack_params(layers, final_norm)

    out = transformer_encoder_pallas(src, pos, packed, nhead=NHEAD, apply_final_norm=True)
    out = jax.block_until_ready(out)

    ref = _ref_encoder(src, pos, layers, final_norm, NHEAD)
    assert out.shape == (S, B, D)
    err = float(jnp.max(jnp.abs(out - ref)))
    assert err < 1e-3, err

    print("KERNEL_OK")
</pallas_src>

<mosaic_0001>
module attributes {stable_mosaic.version = 11 : i64} {
  func.func @encoder_kernel(%arg0: memref<8x2x32xf32, #tpu.memory_space<vmem>>, %arg1: memref<8x2x32xf32, #tpu.memory_space<vmem>>, %arg2: memref<2x32x64xf32, #tpu.memory_space<vmem>>, %arg3: memref<2x32x32xf32, #tpu.memory_space<vmem>>, %arg4: memref<2x32x32xf32, #tpu.memory_space<vmem>>, %arg5: memref<2x32x64xf32, #tpu.memory_space<vmem>>, %arg6: memref<2x1x64xf32, #tpu.memory_space<vmem>>, %arg7: memref<2x64x32xf32, #tpu.memory_space<vmem>>, %arg8: memref<2x9x32xf32, #tpu.memory_space<vmem>>, %arg9: memref<2x32xf32, #tpu.memory_space<vmem>>, %arg10: memref<8x2x32xf32, #tpu.memory_space<vmem>>) attributes {dimension_semantics = [], scalar_prefetch = 0 : i64, scratch_operands = 0 : i64, tpu.core_type = #tpu.core_type<tc>} {
    %c0 = arith.constant 0 : index
    %c0_0 = arith.constant 0 : index
    %c0_1 = arith.constant 0 : index
    %0 = vector.load %arg0[%c0, %c0_0, %c0_1] : memref<8x2x32xf32, #tpu.memory_space<vmem>>, vector<8x2x32xf32>
    %c0_2 = arith.constant 0 : index
    %c0_3 = arith.constant 0 : index
    %c0_4 = arith.constant 0 : index
    %1 = vector.load %arg1[%c0_2, %c0_3, %c0_4] : memref<8x2x32xf32, #tpu.memory_space<vmem>>, vector<8x2x32xf32>
    %2 = vector.extract_strided_slice %0 {offsets = [0, 0, 0], sizes = [8, 1, 32], strides = [1, 1, 1]} : vector<8x2x32xf32> to vector<8x1x32xf32>
    %3 = vector.shape_cast %2 : vector<8x1x32xf32> to vector<8x32xf32>
    %4 = vector.extract_strided_slice %0 {offsets = [0, 1, 0], sizes = [8, 1, 32], strides = [1, 1, 1]} : vector<8x2x32xf32> to vector<8x1x32xf32>
    %5 = vector.shape_cast %4 : vector<8x1x32xf32> to vector<8x32xf32>
    %6 = tpu.concatenate %3, %5 in 0 : vector<8x32xf32>, vector<8x32xf32> -> vector<16x32xf32>
    %7 = vector.extract_strided_slice %1 {offsets = [0, 0, 0], sizes = [8, 1, 32], strides = [1, 1, 1]} : vector<8x2x32xf32> to vector<8x1x32xf32>
    %8 = vector.shape_cast %7 : vector<8x1x32xf32> to vector<8x32xf32>
    %9 = vector.extract_strided_slice %1 {offsets = [0, 1, 0], sizes = [8, 1, 32], strides = [1, 1, 1]} : vector<8x2x32xf32> to vector<8x1x32xf32>
    %10 = vector.shape_cast %9 : vector<8x1x32xf32> to vector<8x32xf32>
    %11 = tpu.concatenate %8, %10 in 0 : vector<8x32xf32>, vector<8x32xf32> -> vector<16x32xf32>
    %c0_5 = arith.constant 0 : index
    %c0_6 = arith.constant 0 : index
    %c0_7 = arith.constant 0 : index
    %12 = vector.load %arg8[%c0_5, %c0_6, %c0_7] : memref<2x9x32xf32, #tpu.memory_space<vmem>>, vector<1x9x32xf32>
    %13 = vector.shape_cast %12 : vector<1x9x32xf32> to vector<9x32xf32>
    %14 = vector.extract_strided_slice %13 {offsets = [0, 0], sizes = [1, 32], strides = [1, 1]} : vector<9x32xf32> to vector<1x32xf32>
    %15 = vector.extract_strided_slice %13 {offsets = [1, 0], sizes = [1, 32], strides = [1, 1]} : vector<9x32xf32> to vector<1x32xf32>
    %16 = vector.extract_strided_slice %13 {offsets = [2, 0], sizes = [1, 32], strides = [1, 1]} : vector<9x32xf32> to vector<1x32xf32>
    %17 = vector.extract_strided_slice %13 {offsets = [3, 0], sizes = [1, 32], strides = [1, 1]} : vector<9x32xf32> to vector<1x32xf32>
    %18 = vector.extract_strided_slice %13 {offsets = [4, 0], sizes = [1, 32], strides = [1, 1]} : vector<9x32xf32> to vector<1x32xf32>
    %19 = vector.extract_strided_slice %13 {offsets = [5, 0], sizes = [1, 32], strides = [1, 1]} : vector<9x32xf32> to vector<1x32xf32>
    %20 = vector.extract_strided_slice %13 {offsets = [6, 0], sizes = [1, 32], strides = [1, 1]} : vector<9x32xf32> to vector<1x32xf32>
    %21 = vector.extract_strided_slice %13 {offsets = [7, 0], sizes = [1, 32], strides = [1, 1]} : vector<9x32xf32> to vector<1x32xf32>
    %22 = vector.extract_strided_slice %13 {offsets = [8, 0], sizes = [1, 32], strides = [1, 1]} : vector<9x32xf32> to vector<1x32xf32>
    %23 = arith.addf %6, %11 : vector<16x32xf32>
    %c0_8 = arith.constant 0 : index
    %c0_9 = arith.constant 0 : index
    %c0_10 = arith.constant 0 : index
    %24 = vector.load %arg2[%c0_8, %c0_9, %c0_10] : memref<2x32x64xf32, #tpu.memory_space<vmem>>, vector<1x32x64xf32>
    %25 = vector.shape_cast %24 : vector<1x32x64xf32> to vector<32x64xf32>
    %cst = arith.constant dense<0.000000e+00> : vector<16x64xf32>
    %26 = tpu.matmul %23, %25, %cst {dimension_numbers = #tpu.dot_dimension_numbers<[1], [0], [0], [1], [0, 0, 1, 1], [], []>} : vector<16x32xf32>, vector<32x64xf32>, vector<16x64xf32> -> vector<16x64xf32>
    %27 = vector.extract_strided_slice %26 {offsets = [0, 0], sizes = [16, 32], strides = [1, 1]} : vector<16x64xf32> to vector<16x32xf32>
    %28 = vector.broadcast %14 : vector<1x32xf32> to vector<16x32xf32>
    %29 = arith.addf %27, %28 : vector<16x32xf32>
    %30 = vector.extract_strided_slice %26 {offsets = [0, 32], sizes = [16, 32], strides = [1, 1]} : vector<16x64xf32> to vector<16x32xf32>
    %31 = vector.broadcast %15 : vector<1x32xf32> to vector<16x32xf32>
    %32 = arith.addf %30, %31 : vector<16x32xf32>
    %c0_11 = arith.constant 0 : index
    %c0_12 = arith.constant 0 : index
    %c0_13 = arith.constant 0 : index
    %33 = vector.load %arg3[%c0_11, %c0_12, %c0_13] : memref<2x32x32xf32, #tpu.memory_space<vmem>>, vector<1x32x32xf32>
    %34 = vector.shape_cast %33 : vector<1x32x32xf32> to vector<32x32xf32>
    %cst_14 = arith.constant dense<0.000000e+00> : vector<16x32xf32>
    %35 = tpu.matmul %6, %34, %cst_14 {dimension_numbers = #tpu.dot_dimension_numbers<[1], [0], [0], [1], [0, 0, 1, 1], [], []>} : vector<16x32xf32>, vector<32x32xf32>, vector<16x32xf32> -> vector<16x32xf32>
    %36 = vector.broadcast %16 : vector<1x32xf32> to vector<16x32xf32>
    %37 = arith.addf %35, %36 : vector<16x32xf32>
    %38 = vector.extract_strided_slice %29 {offsets = [0, 0], sizes = [16, 8], strides = [1, 1]} : vector<16x32xf32> to vector<16x8xf32>
    %cst_15 = arith.constant 0.353553385 : f32
    %39 = vector.broadcast %cst_15 : f32 to vector<16x8xf32>
    %40 = arith.mulf %38, %39 : vector<16x8xf32>
    %41 = vector.shape_cast %40 : vector<16x8xf32> to vector<2x8x8xf32>
    %42 = vector.extract_strided_slice %32 {offsets = [0, 0], sizes = [16, 8], strides = [1, 1]} : vector<16x32xf32> to vector<16x8xf32>
    %43 = vector.shape_cast %42 : vector<16x8xf32> to vector<2x8x8xf32>
    %44 = vector.extract_strided_slice %37 {offsets = [0, 0], sizes = [16, 8], strides = [1, 1]} : vector<16x32xf32> to vector<16x8xf32>
    %45 = vector.shape_cast %44 : vector<16x8xf32> to vector<2x8x8xf32>
    "tpu.trace_start"() <{level = 10 : i32, message = "bqd,bkd->bqk"}> : () -> ()
    %cst_16 = arith.constant dense<0.000000e+00> : vector<2x8x8xf32>
    %46 = tpu.matmul %41, %43, %cst_16 {dimension_numbers = #tpu.dot_dimension_numbers<[2], [2], [1], [1], [0, 0, 0, 1, 1, 1], [0], [0]>} : vector<2x8x8xf32>, vector<2x8x8xf32>, vector<2x8x8xf32> -> vector<2x8x8xf32>
    "tpu.trace_stop"() : () -> ()
    %cst_17 = arith.constant dense<0xFF800000> : vector<2x8xf32>
    %47 = vector.multi_reduction <maximumf>, %46, %cst_17 [2] : vector<2x8x8xf32> to vector<2x8xf32>
    %48 = vector.shape_cast %47 : vector<2x8xf32> to vector<2x8x1xf32>
    %49 = vector.broadcast %48 : vector<2x8x1xf32> to vector<2x8x8xf32>
    %50 = arith.subf %46, %49 : vector<2x8x8xf32>
    %51 = math.exp %50 : vector<2x8x8xf32>
    %cst_18 = arith.constant dense<0.000000e+00> : vector<2x8xf32>
    %52 = vector.multi_reduction <add>, %51, %cst_18 [2] : vector<2x8x8xf32> to vector<2x8xf32>
    %53 = vector.shape_cast %52 : vector<2x8xf32> to vector<2x8x1xf32>
    %54 = tpu.reciprocal %53 : vector<2x8x1xf32> -> vector<2x8x1xf32>
    %55 = vector.broadcast %54 : vector<2x8x1xf32> to vector<2x8x8xf32>
    %56 = arith.mulf %51, %55 : vector<2x8x8xf32>
    "tpu.trace_start"() <{level = 10 : i32, message = "bqk,bkd->bqd"}> : () -> ()
    %cst_19 = arith.constant dense<0.000000e+00> : vector<2x8x8xf32>
    %57 = tpu.matmul %56, %45, %cst_19 {dimension_numbers = #tpu.dot_dimension_numbers<[2], [1], [1], [2], [0, 0, 0, 1, 1, 2], [0], [0]>} : vector<2x8x8xf32>, vector<2x8x8xf32>, vector<2x8x8xf32> -> vector<2x8x8xf32>
    "tpu.trace_stop"() : () -> ()
    %58 = vector.shape_cast %57 : vector<2x8x8xf32> to vector<16x8xf32>
    %59 = vector.extract_strided_slice %29 {offsets = [0, 8], sizes = [16, 8], strides = [1, 1]} : vector<16x32xf32> to vector<16x8xf32>
    %cst_20 = arith.constant 0.353553385 : f32
    %60 = vector.broadcast %cst_20 : f32 to vector<16x8xf32>
    %61 = arith.mulf %59, %60 : vector<16x8xf32>
    %62 = vector.shape_cast %61 : vector<16x8xf32> to vector<2x8x8xf32>
    %63 = vector.extract_strided_slice %32 {offsets = [0, 8], sizes = [16, 8], strides = [1, 1]} : vector<16x32xf32> to vector<16x8xf32>
    %64 = vector.shape_cast %63 : vector<16x8xf32> to vector<2x8x8xf32>
    %65 = vector.extract_strided_slice %37 {offsets = [0, 8], sizes = [16, 8], strides = [1, 1]} : vector<16x32xf32> to vector<16x8xf32>
    %66 = vector.shape_cast %65 : vector<16x8xf32> to vector<2x8x8xf32>
    "tpu.trace_start"() <{level = 10 : i32, message = "bqd,bkd->bqk"}> : () -> ()
    %cst_21 = arith.constant dense<0.000000e+00> : vector<2x8x8xf32>
    %67 = tpu.matmul %62, %64, %cst_21 {dimension_numbers = #tpu.dot_dimension_numbers<[2], [2], [1], [1], [0, 0, 0, 1, 1, 1], [0], [0]>} : vector<2x8x8xf32>, vector<2x8x8xf32>, vector<2x8x8xf32> -> vector<2x8x8xf32>
    "tpu.trace_stop"() : () -> ()
    %cst_22 = arith.constant dense<0xFF800000> : vector<2x8xf32>
    %68 = vector.multi_reduction <maximumf>, %67, %cst_22 [2] : vector<2x8x8xf32> to vector<2x8xf32>
    %69 = vector.shape_cast %68 : vector<2x8xf32> to vector<2x8x1xf32>
    %70 = vector.broadcast %69 : vector<2x8x1xf32> to vector<2x8x8xf32>
    %71 = arith.subf %67, %70 : vector<2x8x8xf32>
    %72 = math.exp %71 : vector<2x8x8xf32>
    %cst_23 = arith.constant dense<0.000000e+00> : vector<2x8xf32>
    %73 = vector.multi_reduction <add>, %72, %cst_23 [2] : vector<2x8x8xf32> to vector<2x8xf32>
    %74 = vector.shape_cast %73 : vector<2x8xf32> to vector<2x8x1xf32>
    %75 = tpu.reciprocal %74 : vector<2x8x1xf32> -> vector<2x8x1xf32>
    %76 = vector.broadcast %75 : vector<2x8x1xf32> to vector<2x8x8xf32>
    %77 = arith.mulf %72, %76 : vector<2x8x8xf32>
    "tpu.trace_start"() <{level = 10 : i32, message = "bqk,bkd->bqd"}> : () -> ()
    %cst_24 = arith.constant dense<0.000000e+00> : vector<2x8x8xf32>
    %78 = tpu.matmul %77, %66, %cst_24 {dimension_numbers = #tpu.dot_dimension_numbers<[2], [1], [1], [2], [0, 0, 0, 1, 1, 2], [0], [0]>} : vector<2x8x8xf32>, vector<2x8x8xf32>, vector<2x8x8xf32> -> vector<2x8x8xf32>
    "tpu.trace_stop"() : () -> ()
    %79 = vector.shape_cast %78 : vector<2x8x8xf32> to vector<16x8xf32>
    %80 = vector.extract_strided_slice %29 {offsets = [0, 16], sizes = [16, 8], strides = [1, 1]} : vector<16x32xf32> to vector<16x8xf32>
    %cst_25 = arith.constant 0.353553385 : f32
    %81 = vector.broadcast %cst_25 : f32 to vector<16x8xf32>
    %82 = arith.mulf %80, %81 : vector<16x8xf32>
    %83 = vector.shape_cast %82 : vector<16x8xf32> to vector<2x8x8xf32>
    %84 = vector.extract_strided_slice %32 {offsets = [0, 16], sizes = [16, 8], strides = [1, 1]} : vector<16x32xf32> to vector<16x8xf32>
    %85 = vector.shape_cast %84 : vector<16x8xf32> to vector<2x8x8xf32>
    %86 = vector.extract_strided_slice %37 {offsets = [0, 16], sizes = [16, 8], strides = [1, 1]} : vector<16x32xf32> to vector<16x8xf32>
    %87 = vector.shape_cast %86 : vector<16x8xf32> to vector<2x8x8xf32>
    "tpu.trace_start"() <{level = 10 : i32, message = "bqd,bkd->bqk"}> : () -> ()
    %cst_26 = arith.constant dense<0.000000e+00> : vector<2x8x8xf32>
    %88 = tpu.matmul %83, %85, %cst_26 {dimension_numbers = #tpu.dot_dimension_numbers<[2], [2], [1], [1], [0, 0, 0, 1, 1, 1], [0], [0]>} : vector<2x8x8xf32>, vector<2x8x8xf32>, vector<2x8x8xf32> -> vector<2x8x8xf32>
    "tpu.trace_stop"() : () -> ()
    %cst_27 = arith.constant dense<0xFF800000> : vector<2x8xf32>
    %89 = vector.multi_reduction <maximumf>, %88, %cst_27 [2] : vector<2x8x8xf32> to vector<2x8xf32>
    %90 = vector.shape_cast %89 : vector<2x8xf32> to vector<2x8x1xf32>
    %91 = vector.broadcast %90 : vector<2x8x1xf32> to vector<2x8x8xf32>
    %92 = arith.subf %88, %91 : vector<2x8x8xf32>
    %93 = math.exp %92 : vector<2x8x8xf32>
    %cst_28 = arith.constant dense<0.000000e+00> : vector<2x8xf32>
    %94 = vector.multi_reduction <add>, %93, %cst_28 [2] : vector<2x8x8xf32> to vector<2x8xf32>
    %95 = vector.shape_cast %94 : vector<2x8xf32> to vector<2x8x1xf32>
    %96 = tpu.reciprocal %95 : vector<2x8x1xf32> -> vector<2x8x1xf32>
    %97 = vector.broadcast %96 : vector<2x8x1xf32> to vector<2x8x8xf32>
    %98 = arith.mulf %93, %97 : vector<2x8x8xf32>
    "tpu.trace_start"() <{level = 10 : i32, message = "bqk,bkd->bqd"}> : () -> ()
    %cst_29 = arith.constant dense<0.000000e+00> : vector<2x8x8xf32>
    %99 = tpu.matmul %98, %87, %cst_29 {dimension_numbers = #tpu.dot_dimension_numbers<[2], [1], [1], [2], [0, 0, 0, 1, 1, 2], [0], [0]>} : vector<2x8x8xf32>, vector<2x8x8xf32>, vector<2x8x8xf32> -> vector<2x8x8xf32>
    "tpu.trace_stop"() : () -> ()
    %100 = vector.shape_cast %99 : vector<2x8x8xf32> to vector<16x8xf32>
    %101 = vector.extract_strided_slice %29 {offsets = [0, 24], sizes = [16, 8], strides = [1, 1]} : vector<16x32xf32> to vector<16x8xf32>
    %cst_30 = arith.constant 0.353553385 : f32
    %102 = vector.broadcast %cst_30 : f32 to vector<16x8xf32>
    %103 = arith.mulf %101, %102 : vector<16x8xf32>
    %104 = vector.shape_cast %103 : vector<16x8xf32> to vector<2x8x8xf32>
    %105 = vector.extract_strided_slice %32 {offsets = [0, 24], sizes = [16, 8], strides = [1, 1]} : vector<16x32xf32> to vector<16x8xf32>
    %106 = vector.shape_cast %105 : vector<16x8xf32> to vector<2x8x8xf32>
    %107 = vector.extract_strided_slice %37 {offsets = [0, 24], sizes = [16, 8], strides = [1, 1]} : vector<16x32xf32> to vector<16x8xf32>
    %108 = vector.shape_cast %107 : vector<16x8xf32> to vector<2x8x8xf32>
    "tpu.trace_start"() <{level = 10 : i32, message = "bqd,bkd->bqk"}> : () -> ()
    %cst_31 = arith.constant dense<0.000000e+00> : vector<2x8x8xf32>
    %109 = tpu.matmul %104, %106, %cst_31 {dimension_numbers = #tpu.dot_dimension_numbers<[2], [2], [1], [1], [0, 0, 0, 1, 1, 1], [0], [0]>} : vector<2x8x8xf32>, vector<2x8x8xf32>, vector<2x8x8xf32> -> vector<2x8x8xf32>
    "tpu.trace_stop"() : () -> ()
    %cst_32 = arith.constant dense<0xFF800000> : vector<2x8xf32>
    %110 = vector.multi_reduction <maximumf>, %109, %cst_32 [2] : vector<2x8x8xf32> to vector<2x8xf32>
    %111 = vector.shape_cast %110 : vector<2x8xf32> to vector<2x8x1xf32>
    %112 = vector.broadcast %111 : vector<2x8x1xf32> to vector<2x8x8xf32>
    %113 = arith.subf %109, %112 : vector<2x8x8xf32>
    %114 = math.exp %113 : vector<2x8x8xf32>
    %cst_33 = arith.constant dense<0.000000e+00> : vector<2x8xf32>
    %115 = vector.multi_reduction <add>, %114, %cst_33 [2] : vector<2x8x8xf32> to vector<2x8xf32>
    %116 = vector.shape_cast %115 : vector<2x8xf32> to vector<2x8x1xf32>
    %117 = tpu.reciprocal %116 : vector<2x8x1xf32> -> vector<2x8x1xf32>
    %118 = vector.broadcast %117 : vector<2x8x1xf32> to vector<2x8x8xf32>
    %119 = arith.mulf %114, %118 : vector<2x8x8xf32>
    "tpu.trace_start"() <{level = 10 : i32, message = "bqk,bkd->bqd"}> : () -> ()
    %cst_34 = arith.constant dense<0.000000e+00> : vector<2x8x8xf32>
    %120 = tpu.matmul %119, %108, %cst_34 {dimension_numbers = #tpu.dot_dimension_numbers<[2], [1], [1], [2], [0, 0, 0, 1, 1, 2], [0], [0]>} : vector<2x8x8xf32>, vector<2x8x8xf32>, vector<2x8x8xf32> -> vector<2x8x8xf32>
    "tpu.trace_stop"() : () -> ()
    %121 = vector.shape_cast %120 : vector<2x8x8xf32> to vector<16x8xf32>
    %122 = tpu.concatenate %58, %79, %100, %121 in 1 : vector<16x8xf32>, vector<16x8xf32>, vector<16x8xf32>, vector<16x8xf32> -> vector<16x32xf32>
    %c0_35 = arith.constant 0 : index
    %c0_36 = arith.constant 0 : index
    %c0_37 = arith.constant 0 : index
    %123 = vector.load %arg4[%c0_35, %c0_36, %c0_37] : memref<2x32x32xf32, #tpu.memory_space<vmem>>, vector<1x32x32xf32>
    %124 = vector.shape_cast %123 : vector<1x32x32xf32> to vector<32x32xf32>
    %cst_38 = arith.constant dense<0.000000e+00> : vector<16x32xf32>
    %125 = tpu.matmul %122, %124, %cst_38 {dimension_numbers = #tpu.dot_dimension_numbers<[1], [0], [0], [1], [0, 0, 1, 1], [], []>} : vector<16x32xf32>, vector<32x32xf32>, vector<16x32xf32> -> vector<16x32xf32>
    %126 = vector.broadcast %17 : vector<1x32xf32> to vector<16x32xf32>
    %127 = arith.addf %125, %126 : vector<16x32xf32>
    %128 = arith.addf %6, %127 : vector<16x32xf32>
    %cst_39 = arith.constant dense<0.000000e+00> : vector<16xf32>
    %129 = vector.multi_reduction <add>, %128, %cst_39 [1] : vector<16x32xf32> to vector<16xf32>
    %130 = vector.shape_cast %129 : vector<16xf32> to vector<16x1xf32>
    %cst_40 = arith.constant 3.200000e+01 : f32
    %131 = vector.broadcast %cst_40 : f32 to vector<16x1xf32>
    %132 = arith.divf %130, %131 : vector<16x1xf32>
    %133 = arith.mulf %128, %128 : vector<16x32xf32>
    %cst_41 = arith.constant dense<0.000000e+00> : vector<16xf32>
    %134 = vector.multi_reduction <add>, %133, %cst_41 [1] : vector<16x32xf32> to vector<16xf32>
    %135 = vector.shape_cast %134 : vector<16xf32> to vector<16x1xf32>
    %cst_42 = arith.constant 3.200000e+01 : f32
    %136 = vector.broadcast %cst_42 : f32 to vector<16x1xf32>
    %137 = arith.divf %135, %136 : vector<16x1xf32>
    %138 = arith.mulf %132, %132 : vector<16x1xf32>
    %139 = arith.subf %137, %138 : vector<16x1xf32>
    %cst_43 = arith.constant 0.000000e+00 : f32
    %140 = vector.broadcast %cst_43 : f32 to vector<16x1xf32>
    %141 = arith.maximumf %139, %140 : vector<16x1xf32>
    %142 = vector.broadcast %132 : vector<16x1xf32> to vector<16x32xf32>
    %143 = arith.subf %128, %142 : vector<16x32xf32>
    %cst_44 = arith.constant 9.99999974E-6 : f32
    %144 = vector.broadcast %cst_44 : f32 to vector<16x1xf32>
    %145 = arith.addf %141, %144 : vector<16x1xf32>
    %146 = math.rsqrt %145 : vector<16x1xf32>
    %147 = vector.broadcast %146 : vector<16x1xf32> to vector<16x32xf32>
    %148 = arith.mulf %143, %147 : vector<16x32xf32>
    %149 = vector.broadcast %19 : vector<1x32xf32> to vector<16x32xf32>
    %150 = arith.mulf %148, %149 : vector<16x32xf32>
    %151 = vector.broadcast %20 : vector<1x32xf32> to vector<16x32xf32>
    %152 = arith.addf %150, %151 : vector<16x32xf32>
    %c0_45 = arith.constant 0 : index
    %c0_46 = arith.constant 0 : index
    %c0_47 = arith.constant 0 : index
    %153 = vector.load %arg5[%c0_45, %c0_46, %c0_47] : memref<2x32x64xf32, #tpu.memory_space<vmem>>, vector<1x32x64xf32>
    %154 = vector.shape_cast %153 : vector<1x32x64xf32> to vector<32x64xf32>
    %cst_48 = arith.constant dense<0.000000e+00> : vector<16x64xf32>
    %155 = tpu.matmul %152, %154, %cst_48 {dimension_numbers = #tpu.dot_dimension_numbers<[1], [0], [0], [1], [0, 0, 1, 1], [], []>} : vector<16x32xf32>, vector<32x64xf32>, vector<16x64xf32> -> vector<16x64xf32>
    %c0_49 = arith.constant 0 : index
    %c0_50 = arith.constant 0 : index
    %c0_51 = arith.constant 0 : index
    %156 = vector.load %arg6[%c0_49, %c0_50, %c0_51] : memref<2x1x64xf32, #tpu.memory_space<vmem>>, vector<1x1x64xf32>
    %157 = vector.shape_cast %156 : vector<1x1x64xf32> to vector<1x64xf32>
    %158 = vector.broadcast %157 : vector<1x64xf32> to vector<16x64xf32>
    %159 = arith.addf %155, %158 : vector<16x64xf32>
    %cst_52 = arith.constant 0.000000e+00 : f32
    %160 = vector.broadcast %cst_52 : f32 to vector<16x64xf32>
    %161 = arith.maximumf %159, %160 : vector<16x64xf32>
    %c0_53 = arith.constant 0 : index
    %c0_54 = arith.constant 0 : index
    %c0_55 = arith.constant 0 : index
    %162 = vector.load %arg7[%c0_53, %c0_54, %c0_55] : memref<2x64x32xf32, #tpu.memory_space<vmem>>, vector<1x64x32xf32>
    %163 = vector.shape_cast %162 : vector<1x64x32xf32> to vector<64x32xf32>
    %cst_56 = arith.constant dense<0.000000e+00> : vector<16x32xf32>
    %164 = tpu.matmul %161, %163, %cst_56 {dimension_numbers = #tpu.dot_dimension_numbers<[1], [0], [0], [1], [0, 0, 1, 1], [], []>} : vector<16x64xf32>, vector<64x32xf32>, vector<16x32xf32> -> vector<16x32xf32>
    %165 = vector.broadcast %18 : vector<1x32xf32> to vector<16x32xf32>
    %166 = arith.addf %164, %165 : vector<16x32xf32>
    %167 = arith.addf %152, %166 : vector<16x32xf32>
    %cst_57 = arith.constant dense<0.000000e+00> : vector<16xf32>
    %168 = vector.multi_reduction <add>, %167, %cst_57 [1] : vector<16x32xf32> to vector<16xf32>
    %169 = vector.shape_cast %168 : vector<16xf32> to vector<16x1xf32>
    %cst_58 = arith.constant 3.200000e+01 : f32
    %170 = vector.broadcast %cst_58 : f32 to vector<16x1xf32>
    %171 = arith.divf %169, %170 : vector<16x1xf32>
    %172 = arith.mulf %167, %167 : vector<16x32xf32>
    %cst_59 = arith.constant dense<0.000000e+00> : vector<16xf32>
    %173 = vector.multi_reduction <add>, %172, %cst_59 [1] : vector<16x32xf32> to vector<16xf32>
    %174 = vector.shape_cast %173 : vector<16xf32> to vector<16x1xf32>
    %cst_60 = arith.constant 3.200000e+01 : f32
    %175 = vector.broadcast %cst_60 : f32 to vector<16x1xf32>
    %176 = arith.divf %174, %175 : vector<16x1xf32>
    %177 = arith.mulf %171, %171 : vector<16x1xf32>
    %178 = arith.subf %176, %177 : vector<16x1xf32>
    %cst_61 = arith.constant 0.000000e+00 : f32
    %179 = vector.broadcast %cst_61 : f32 to vector<16x1xf32>
    %180 = arith.maximumf %178, %179 : vector<16x1xf32>
    %181 = vector.broadcast %171 : vector<16x1xf32> to vector<16x32xf32>
    %182 = arith.subf %167, %181 : vector<16x32xf32>
    %cst_62 = arith.constant 9.99999974E-6 : f32
    %183 = vector.broadcast %cst_62 : f32 to vector<16x1xf32>
    %184 = arith.addf %180, %183 : vector<16x1xf32>
    %185 = math.rsqrt %184 : vector<16x1xf32>
    %186 = vector.broadcast %185 : vector<16x1xf32> to vector<16x32xf32>
    %187 = arith.mulf %182, %186 : vector<16x32xf32>
    %188 = vector.broadcast %21 : vector<1x32xf32> to vector<16x32xf32>
    %189 = arith.mulf %187, %188 : vector<16x32xf32>
    %190 = vector.broadcast %22 : vector<1x32xf32> to vector<16x32xf32>
    %191 = arith.addf %189, %190 : vector<16x32xf32>
    %c1 = arith.constant 1 : index
    %c0_63 = arith.constant 0 : index
    %c0_64 = arith.constant 0 : index
    %192 = vector.load %arg8[%c1, %c0_63, %c0_64] : memref<2x9x32xf32, #tpu.memory_space<vmem>>, vector<1x9x32xf32>
    %193 = vector.shape_cast %192 : vector<1x9x32xf32> to vector<9x32xf32>
    %194 = vector.extract_strided_slice %193 {offsets = [0, 0], sizes = [1, 32], strides = [1, 1]} : vector<9x32xf32> to vector<1x32xf32>
    %195 = vector.extract_strided_slice %193 {offsets = [1, 0], sizes = [1, 32], strides = [1, 1]} : vector<9x32xf32> to vector<1x32xf32>
    %196 = vector.extract_strided_slice %193 {offsets = [2, 0], sizes = [1, 32], strides = [1, 1]} : vector<9x32xf32> to vector<1x32xf32>
    %197 = vector.extract_strided_slice %193 {offsets = [3, 0], sizes = [1, 32], strides = [1, 1]} : vector<9x32xf32> to vector<1x32xf32>
    %198 = vector.extract_strided_slice %193 {offsets = [4, 0], sizes = [1, 32], strides = [1, 1]} : vector<9x32xf32> to vector<1x32xf32>
    %199 = vector.extract_strided_slice %193 {offsets = [5, 0], sizes = [1, 32], strides = [1, 1]} : vector<9x32xf32> to vector<1x32xf32>
    %200 = vector.extract_strided_slice %193 {offsets = [6, 0], sizes = [1, 32], strides = [1, 1]} : vector<9x32xf32> to vector<1x32xf32>
    %201 = vector.extract_strided_slice %193 {offsets = [7, 0], sizes = [1, 32], strides = [1, 1]} : vector<9x32xf32> to vector<1x32xf32>
    %202 = vector.extract_strided_slice %193 {offsets = [8, 0], sizes = [1, 32], strides = [1, 1]} : vector<9x32xf32> to vector<1x32xf32>
    %203 = arith.addf %191, %11 : vector<16x32xf32>
    %c1_65 = arith.constant 1 : index
    %c0_66 = arith.constant 0 : index
    %c0_67 = arith.constant 0 : index
    %204 = vector.load %arg2[%c1_65, %c0_66, %c0_67] : memref<2x32x64xf32, #tpu.memory_space<vmem>>, vector<1x32x64xf32>
    %205 = vector.shape_cast %204 : vector<1x32x64xf32> to vector<32x64xf32>
    %cst_68 = arith.constant dense<0.000000e+00> : vector<16x64xf32>
    %206 = tpu.matmul %203, %205, %cst_68 {dimension_numbers = #tpu.dot_dimension_numbers<[1], [0], [0], [1], [0, 0, 1, 1], [], []>} : vector<16x32xf32>, vector<32x64xf32>, vector<16x64xf32> -> vector<16x64xf32>
    %207 = vector.extract_strided_slice %206 {offsets = [0, 0], sizes = [16, 32], strides = [1, 1]} : vector<16x64xf32> to vector<16x32xf32>
    %208 = vector.broadcast %194 : vector<1x32xf32> to vector<16x32xf32>
    %209 = arith.addf %207, %208 : vector<16x32xf32>
    %210 = vector.extract_strided_slice %206 {offsets = [0, 32], sizes = [16, 32], strides = [1, 1]} : vector<16x64xf32> to vector<16x32xf32>
    %211 = vector.broadcast %195 : vector<1x32xf32> to vector<16x32xf32>
    %212 = arith.addf %210, %211 : vector<16x32xf32>
    %c1_69 = arith.constant 1 : index
    %c0_70 = arith.constant 0 : index
    %c0_71 = arith.constant 0 : index
    %213 = vector.load %arg3[%c1_69, %c0_70, %c0_71] : memref<2x32x32xf32, #tpu.memory_space<vmem>>, vector<1x32x32xf32>
    %214 = vector.shape_cast %213 : vector<1x32x32xf32> to vector<32x32xf32>
    %cst_72 = arith.constant dense<0.000000e+00> : vector<16x32xf32>
    %215 = tpu.matmul %191, %214, %cst_72 {dimension_numbers = #tpu.dot_dimension_numbers<[1], [0], [0], [1], [0, 0, 1, 1], [], []>} : vector<16x32xf32>, vector<32x32xf32>, vector<16x32xf32> -> vector<16x32xf32>
    %216 = vector.broadcast %196 : vector<1x32xf32> to vector<16x32xf32>
    %217 = arith.addf %215, %216 : vector<16x32xf32>
    %218 = vector.extract_strided_slice %209 {offsets = [0, 0], sizes = [16, 8], strides = [1, 1]} : vector<16x32xf32> to vector<16x8xf32>
    %cst_73 = arith.constant 0.353553385 : f32
    %219 = vector.broadcast %cst_73 : f32 to vector<16x8xf32>
    %220 = arith.mulf %218, %219 : vector<16x8xf32>
    %221 = vector.shape_cast %220 : vector<16x8xf32> to vector<2x8x8xf32>
    %222 = vector.extract_strided_slice %212 {offsets = [0, 0], sizes = [16, 8], strides = [1, 1]} : vector<16x32xf32> to vector<16x8xf32>
    %223 = vector.shape_cast %222 : vector<16x8xf32> to vector<2x8x8xf32>
    %224 = vector.extract_strided_slice %217 {offsets = [0, 0], sizes = [16, 8], strides = [1, 1]} : vector<16x32xf32> to vector<16x8xf32>
    %225 = vector.shape_cast %224 : vector<16x8xf32> to vector<2x8x8xf32>
    "tpu.trace_start"() <{level = 10 : i32, message = "bqd,bkd->bqk"}> : () -> ()
    %cst_74 = arith.constant dense<0.000000e+00> : vector<2x8x8xf32>
    %226 = tpu.matmul %221, %223, %cst_74 {dimension_numbers = #tpu.dot_dimension_numbers<[2], [2], [1], [1], [0, 0, 0, 1, 1, 1], [0], [0]>} : vector<2x8x8xf32>, vector<2x8x8xf32>, vector<2x8x8xf32> -> vector<2x8x8xf32>
    "tpu.trace_stop"() : () -> ()
    %cst_75 = arith.constant dense<0xFF800000> : vector<2x8xf32>
    %227 = vector.multi_reduction <maximumf>, %226, %cst_75 [2] : vector<2x8x8xf32> to vector<2x8xf32>
    %228 = vector.shape_cast %227 : vector<2x8xf32> to vector<2x8x1xf32>
    %229 = vector.broadcast %228 : vector<2x8x1xf32> to vector<2x8x8xf32>
    %230 = arith.subf %226, %229 : vector<2x8x8xf32>
    %231 = math.exp %230 : vector<2x8x8xf32>
    %cst_76 = arith.constant dense<0.000000e+00> : vector<2x8xf32>
    %232 = vector.multi_reduction <add>, %231, %cst_76 [2] : vector<2x8x8xf32> to vector<2x8xf32>
    %233 = vector.shape_cast %232 : vector<2x8xf32> to vector<2x8x1xf32>
    %234 = tpu.reciprocal %233 : vector<2x8x1xf32> -> vector<2x8x1xf32>
    %235 = vector.broadcast %234 : vector<2x8x1xf32> to vector<2x8x8xf32>
    %236 = arith.mulf %231, %235 : vector<2x8x8xf32>
    "tpu.trace_start"() <{level = 10 : i32, message = "bqk,bkd->bqd"}> : () -> ()
    %cst_77 = arith.constant dense<0.000000e+00> : vector<2x8x8xf32>
    %237 = tpu.matmul %236, %225, %cst_77 {dimension_numbers = #tpu.dot_dimension_numbers<[2], [1], [1], [2], [0, 0, 0, 1, 1, 2], [0], [0]>} : vector<2x8x8xf32>, vector<2x8x8xf32>, vector<2x8x8xf32> -> vector<2x8x8xf32>
    "tpu.trace_stop"() : () -> ()
    %238 = vector.shape_cast %237 : vector<2x8x8xf32> to vector<16x8xf32>
    %239 = vector.extract_strided_slice %209 {offsets = [0, 8], sizes = [16, 8], strides = [1, 1]} : vector<16x32xf32> to vector<16x8xf32>
    %cst_78 = arith.constant 0.353553385 : f32
    %240 = vector.broadcast %cst_78 : f32 to vector<16x8xf32>
    %241 = arith.mulf %239, %240 : vector<16x8xf32>
    %242 = vector.shape_cast %241 : vector<16x8xf32> to vector<2x8x8xf32>
    %243 = vector.extract_strided_slice %212 {offsets = [0, 8], sizes = [16, 8], strides = [1, 1]} : vector<16x32xf32> to vector<16x8xf32>
    %244 = vector.shape_cast %243 : vector<16x8xf32> to vector<2x8x8xf32>
    %245 = vector.extract_strided_slice %217 {offsets = [0, 8], sizes = [16, 8], strides = [1, 1]} : vector<16x32xf32> to vector<16x8xf32>
    %246 = vector.shape_cast %245 : vector<16x8xf32> to vector<2x8x8xf32>
    "tpu.trace_start"() <{level = 10 : i32, message = "bqd,bkd->bqk"}> : () -> ()
    %cst_79 = arith.constant dense<0.000000e+00> : vector<2x8x8xf32>
    %247 = tpu.matmul %242, %244, %cst_79 {dimension_numbers = #tpu.dot_dimension_numbers<[2], [2], [1], [1], [0, 0, 0, 1, 1, 1], [0], [0]>} : vector<2x8x8xf32>, vector<2x8x8xf32>, vector<2x8x8xf32> -> vector<2x8x8xf32>
    "tpu.trace_stop"() : () -> ()
    %cst_80 = arith.constant dense<0xFF800000> : vector<2x8xf32>
    %248 = vector.multi_reduction <maximumf>, %247, %cst_80 [2] : vector<2x8x8xf32> to vector<2x8xf32>
    %249 = vector.shape_cast %248 : vector<2x8xf32> to vector<2x8x1xf32>
    %250 = vector.broadcast %249 : vector<2x8x1xf32> to vector<2x8x8xf32>
    %251 = arith.subf %247, %250 : vector<2x8x8xf32>
    %252 = math.exp %251 : vector<2x8x8xf32>
    %cst_81 = arith.constant dense<0.000000e+00> : vector<2x8xf32>
    %253 = vector.multi_reduction <add>, %252, %cst_81 [2] : vector<2x8x8xf32> to vector<2x8xf32>
    %254 = vector.shape_cast %253 : vector<2x8xf32> to vector<2x8x1xf32>
    %255 = tpu.reciprocal %254 : vector<2x8x1xf32> -> vector<2x8x1xf32>
    %256 = vector.broadcast %255 : vector<2x8x1xf32> to vector<2x8x8xf32>
    %257 = arith.mulf %252, %256 : vector<2x8x8xf32>
    "tpu.trace_start"() <{level = 10 : i32, message = "bqk,bkd->bqd"}> : () -> ()
    %cst_82 = arith.constant dense<0.000000e+00> : vector<2x8x8xf32>
    %258 = tpu.matmul %257, %246, %cst_82 {dimension_numbers = #tpu.dot_dimension_numbers<[2], [1], [1], [2], [0, 0, 0, 1, 1, 2], [0], [0]>} : vector<2x8x8xf32>, vector<2x8x8xf32>, vector<2x8x8xf32> -> vector<2x8x8xf32>
    "tpu.trace_stop"() : () -> ()
    %259 = vector.shape_cast %258 : vector<2x8x8xf32> to vector<16x8xf32>
    %260 = vector.extract_strided_slice %209 {offsets = [0, 16], sizes = [16, 8], strides = [1, 1]} : vector<16x32xf32> to vector<16x8xf32>
    %cst_83 = arith.constant 0.353553385 : f32
    %261 = vector.broadcast %cst_83 : f32 to vector<16x8xf32>
    %262 = arith.mulf %260, %261 : vector<16x8xf32>
    %263 = vector.shape_cast %262 : vector<16x8xf32> to vector<2x8x8xf32>
    %264 = vector.extract_strided_slice %212 {offsets = [0, 16], sizes = [16, 8], strides = [1, 1]} : vector<16x32xf32> to vector<16x8xf32>
    %265 = vector.shape_cast %264 : vector<16x8xf32> to vector<2x8x8xf32>
    %266 = vector.extract_strided_slice %217 {offsets = [0, 16], sizes = [16, 8], strides = [1, 1]} : vector<16x32xf32> to vector<16x8xf32>
    %267 = vector.shape_cast %266 : vector<16x8xf32> to vector<2x8x8xf32>
    "tpu.trace_start"() <{level = 10 : i32, message = "bqd,bkd->bqk"}> : () -> ()
    %cst_84 = arith.constant dense<0.000000e+00> : vector<2x8x8xf32>
    %268 = tpu.matmul %263, %265, %cst_84 {dimension_numbers = #tpu.dot_dimension_numbers<[2], [2], [1], [1], [0, 0, 0, 1, 1, 1], [0], [0]>} : vector<2x8x8xf32>, vector<2x8x8xf32>, vector<2x8x8xf32> -> vector<2x8x8xf32>
    "tpu.trace_stop"() : () -> ()
    %cst_85 = arith.constant dense<0xFF800000> : vector<2x8xf32>
    %269 = vector.multi_reduction <maximumf>, %268, %cst_85 [2] : vector<2x8x8xf32> to vector<2x8xf32>
    %270 = vector.shape_cast %269 : vector<2x8xf32> to vector<2x8x1xf32>
    %271 = vector.broadcast %270 : vector<2x8x1xf32> to vector<2x8x8xf32>
    %272 = arith.subf %268, %271 : vector<2x8x8xf32>
    %273 = math.exp %272 : vector<2x8x8xf32>
    %cst_86 = arith.constant dense<0.000000e+00> : vector<2x8xf32>
    %274 = vector.multi_reduction <add>, %273, %cst_86 [2] : vector<2x8x8xf32> to vector<2x8xf32>
    %275 = vector.shape_cast %274 : vector<2x8xf32> to vector<2x8x1xf32>
    %276 = tpu.reciprocal %275 : vector<2x8x1xf32> -> vector<2x8x1xf32>
    %277 = vector.broadcast %276 : vector<2x8x1xf32> to vector<2x8x8xf32>
    %278 = arith.mulf %273, %277 : vector<2x8x8xf32>
    "tpu.trace_start"() <{level = 10 : i32, message = "bqk,bkd->bqd"}> : () -> ()
    %cst_87 = arith.constant dense<0.000000e+00> : vector<2x8x8xf32>
    %279 = tpu.matmul %278, %267, %cst_87 {dimension_numbers = #tpu.dot_dimension_numbers<[2], [1], [1], [2], [0, 0, 0, 1, 1, 2], [0], [0]>} : vector<2x8x8xf32>, vector<2x8x8xf32>, vector<2x8x8xf32> -> vector<2x8x8xf32>
    "tpu.trace_stop"() : () -> ()
    %280 = vector.shape_cast %279 : vector<2x8x8xf32> to vector<16x8xf32>
    %281 = vector.extract_strided_slice %209 {offsets = [0, 24], sizes = [16, 8], strides = [1, 1]} : vector<16x32xf32> to vector<16x8xf32>
    %cst_88 = arith.constant 0.353553385 : f32
    %282 = vector.broadcast %cst_88 : f32 to vector<16x8xf32>
    %283 = arith.mulf %281, %282 : vector<16x8xf32>
    %284 = vector.shape_cast %283 : vector<16x8xf32> to vector<2x8x8xf32>
    %285 = vector.extract_strided_slice %212 {offsets = [0, 24], sizes = [16, 8], strides = [1, 1]} : vector<16x32xf32> to vector<16x8xf32>
    %286 = vector.shape_cast %285 : vector<16x8xf32> to vector<2x8x8xf32>
    %287 = vector.extract_strided_slice %217 {offsets = [0, 24], sizes = [16, 8], strides = [1, 1]} : vector<16x32xf32> to vector<16x8xf32>
    %288 = vector.shape_cast %287 : vector<16x8xf32> to vector<2x8x8xf32>
    "tpu.trace_start"() <{level = 10 : i32, message = "bqd,bkd->bqk"}> : () -> ()
    %cst_89 = arith.constant dense<0.000000e+00> : vector<2x8x8xf32>
    %289 = tpu.matmul %284, %286, %cst_89 {dimension_numbers = #tpu.dot_dimension_numbers<[2], [2], [1], [1], [0, 0, 0, 1, 1, 1], [0], [0]>} : vector<2x8x8xf32>, vector<2x8x8xf32>, vector<2x8x8xf32> -> vector<2x8x8xf32>
    "tpu.trace_stop"() : () -> ()
    %cst_90 = arith.constant dense<0xFF800000> : vector<2x8xf32>
    %290 = vector.multi_reduction <maximumf>, %289, %cst_90 [2] : vector<2x8x8xf32> to vector<2x8xf32>
    %291 = vector.shape_cast %290 : vector<2x8xf32> to vector<2x8x1xf32>
    %292 = vector.broadcast %291 : vector<2x8x1xf32> to vector<2x8x8xf32>
    %293 = arith.subf %289, %292 : vector<2x8x8xf32>
    %294 = math.exp %293 : vector<2x8x8xf32>
    %cst_91 = arith.constant dense<0.000000e+00> : vector<2x8xf32>
    %295 = vector.multi_reduction <add>, %294, %cst_91 [2] : vector<2x8x8xf32> to vector<2x8xf32>
    %296 = vector.shape_cast %295 : vector<2x8xf32> to vector<2x8x1xf32>
    %297 = tpu.reciprocal %296 : vector<2x8x1xf32> -> vector<2x8x1xf32>
    %298 = vector.broadcast %297 : vector<2x8x1xf32> to vector<2x8x8xf32>
    %299 = arith.mulf %294, %298 : vector<2x8x8xf32>
    "tpu.trace_start"() <{level = 10 : i32, message = "bqk,bkd->bqd"}> : () -> ()
    %cst_92 = arith.constant dense<0.000000e+00> : vector<2x8x8xf32>
    %300 = tpu.matmul %299, %288, %cst_92 {dimension_numbers = #tpu.dot_dimension_numbers<[2], [1], [1], [2], [0, 0, 0, 1, 1, 2], [0], [0]>} : vector<2x8x8xf32>, vector<2x8x8xf32>, vector<2x8x8xf32> -> vector<2x8x8xf32>
    "tpu.trace_stop"() : () -> ()
    %301 = vector.shape_cast %300 : vector<2x8x8xf32> to vector<16x8xf32>
    %302 = tpu.concatenate %238, %259, %280, %301 in 1 : vector<16x8xf32>, vector<16x8xf32>, vector<16x8xf32>, vector<16x8xf32> -> vector<16x32xf32>
    %c1_93 = arith.constant 1 : index
    %c0_94 = arith.constant 0 : index
    %c0_95 = arith.constant 0 : index
    %303 = vector.load %arg4[%c1_93, %c0_94, %c0_95] : memref<2x32x32xf32, #tpu.memory_space<vmem>>, vector<1x32x32xf32>
    %304 = vector.shape_cast %303 : vector<1x32x32xf32> to vector<32x32xf32>
    %cst_96 = arith.constant dense<0.000000e+00> : vector<16x32xf32>
    %305 = tpu.matmul %302, %304, %cst_96 {dimension_numbers = #tpu.dot_dimension_numbers<[1], [0], [0], [1], [0, 0, 1, 1], [], []>} : vector<16x32xf32>, vector<32x32xf32>, vector<16x32xf32> -> vector<16x32xf32>
    %306 = vector.broadcast %197 : vector<1x32xf32> to vector<16x32xf32>
    %307 = arith.addf %305, %306 : vector<16x32xf32>
    %308 = arith.addf %191, %307 : vector<16x32xf32>
    %cst_97 = arith.constant dense<0.000000e+00> : vector<16xf32>
    %309 = vector.multi_reduction <add>, %308, %cst_97 [1] : vector<16x32xf32> to vector<16xf32>
    %310 = vector.shape_cast %309 : vector<16xf32> to vector<16x1xf32>
    %cst_98 = arith.constant 3.200000e+01 : f32
    %311 = vector.broadcast %cst_98 : f32 to vector<16x1xf32>
    %312 = arith.divf %310, %311 : vector<16x1xf32>
    %313 = arith.mulf %308, %308 : vector<16x32xf32>
    %cst_99 = arith.constant dense<0.000000e+00> : vector<16xf32>
    %314 = vector.multi_reduction <add>, %313, %cst_99 [1] : vector<16x32xf32> to vector<16xf32>
    %315 = vector.shape_cast %314 : vector<16xf32> to vector<16x1xf32>
    %cst_100 = arith.constant 3.200000e+01 : f32
    %316 = vector.broadcast %cst_100 : f32 to vector<16x1xf32>
    %317 = arith.divf %315, %316 : vector<16x1xf32>
    %318 = arith.mulf %312, %312 : vector<16x1xf32>
    %319 = arith.subf %317, %318 : vector<16x1xf32>
    %cst_101 = arith.constant 0.000000e+00 : f32
    %320 = vector.broadcast %cst_101 : f32 to vector<16x1xf32>
    %321 = arith.maximumf %319, %320 : vector<16x1xf32>
    %322 = vector.broadcast %312 : vector<16x1xf32> to vector<16x32xf32>
    %323 = arith.subf %308, %322 : vector<16x32xf32>
    %cst_102 = arith.constant 9.99999974E-6 : f32
    %324 = vector.broadcast %cst_102 : f32 to vector<16x1xf32>
    %325 = arith.addf %321, %324 : vector<16x1xf32>
    %326 = math.rsqrt %325 : vector<16x1xf32>
    %327 = vector.broadcast %326 : vector<16x1xf32> to vector<16x32xf32>
    %328 = arith.mulf %323, %327 : vector<16x32xf32>
    %329 = vector.broadcast %199 : vector<1x32xf32> to vector<16x32xf32>
    %330 = arith.mulf %328, %329 : vector<16x32xf32>
    %331 = vector.broadcast %200 : vector<1x32xf32> to vector<16x32xf32>
    %332 = arith.addf %330, %331 : vector<16x32xf32>
    %c1_103 = arith.constant 1 : index
    %c0_104 = arith.constant 0 : index
    %c0_105 = arith.constant 0 : index
    %333 = vector.load %arg5[%c1_103, %c0_104, %c0_105] : memref<2x32x64xf32, #tpu.memory_space<vmem>>, vector<1x32x64xf32>
    %334 = vector.shape_cast %333 : vector<1x32x64xf32> to vector<32x64xf32>
    %cst_106 = arith.constant dense<0.000000e+00> : vector<16x64xf32>
    %335 = tpu.matmul %332, %334, %cst_106 {dimension_numbers = #tpu.dot_dimension_numbers<[1], [0], [0], [1], [0, 0, 1, 1], [], []>} : vector<16x32xf32>, vector<32x64xf32>, vector<16x64xf32> -> vector<16x64xf32>
    %c1_107 = arith.constant 1 : index
    %c0_108 = arith.constant 0 : index
    %c0_109 = arith.constant 0 : index
    %336 = vector.load %arg6[%c1_107, %c0_108, %c0_109] : memref<2x1x64xf32, #tpu.memory_space<vmem>>, vector<1x1x64xf32>
    %337 = vector.shape_cast %336 : vector<1x1x64xf32> to vector<1x64xf32>
    %338 = vector.broadcast %337 : vector<1x64xf32> to vector<16x64xf32>
    %339 = arith.addf %335, %338 : vector<16x64xf32>
    %cst_110 = arith.constant 0.000000e+00 : f32
    %340 = vector.broadcast %cst_110 : f32 to vector<16x64xf32>
    %341 = arith.maximumf %339, %340 : vector<16x64xf32>
    %c1_111 = arith.constant 1 : index
    %c0_112 = arith.constant 0 : index
    %c0_113 = arith.constant 0 : index
    %342 = vector.load %arg7[%c1_111, %c0_112, %c0_113] : memref<2x64x32xf32, #tpu.memory_space<vmem>>, vector<1x64x32xf32>
    %343 = vector.shape_cast %342 : vector<1x64x32xf32> to vector<64x32xf32>
    %cst_114 = arith.constant dense<0.000000e+00> : vector<16x32xf32>
    %344 = tpu.matmul %341, %343, %cst_114 {dimension_numbers = #tpu.dot_dimension_numbers<[1], [0], [0], [1], [0, 0, 1, 1], [], []>} : vector<16x64xf32>, vector<64x32xf32>, vector<16x32xf32> -> vector<16x32xf32>
    %345 = vector.broadcast %198 : vector<1x32xf32> to vector<16x32xf32>
    %346 = arith.addf %344, %345 : vector<16x32xf32>
    %347 = arith.addf %332, %346 : vector<16x32xf32>
    %cst_115 = arith.constant dense<0.000000e+00> : vector<16xf32>
    %348 = vector.multi_reduction <add>, %347, %cst_115 [1] : vector<16x32xf32> to vector<16xf32>
    %349 = vector.shape_cast %348 : vector<16xf32> to vector<16x1xf32>
    %cst_116 = arith.constant 3.200000e+01 : f32
    %350 = vector.broadcast %cst_116 : f32 to vector<16x1xf32>
    %351 = arith.divf %349, %350 : vector<16x1xf32>
    %352 = arith.mulf %347, %347 : vector<16x32xf32>
    %cst_117 = arith.constant dense<0.000000e+00> : vector<16xf32>
    %353 = vector.multi_reduction <add>, %352, %cst_117 [1] : vector<16x32xf32> to vector<16xf32>
    %354 = vector.shape_cast %353 : vector<16xf32> to vector<16x1xf32>
    %cst_118 = arith.constant 3.200000e+01 : f32
    %355 = vector.broadcast %cst_118 : f32 to vector<16x1xf32>
    %356 = arith.divf %354, %355 : vector<16x1xf32>
    %357 = arith.mulf %351, %351 : vector<16x1xf32>
    %358 = arith.subf %356, %357 : vector<16x1xf32>
    %cst_119 = arith.constant 0.000000e+00 : f32
    %359 = vector.broadcast %cst_119 : f32 to vector<16x1xf32>
    %360 = arith.maximumf %358, %359 : vector<16x1xf32>
    %361 = vector.broadcast %351 : vector<16x1xf32> to vector<16x32xf32>
    %362 = arith.subf %347, %361 : vector<16x32xf32>
    %cst_120 = arith.constant 9.99999974E-6 : f32
    %363 = vector.broadcast %cst_120 : f32 to vector<16x1xf32>
    %364 = arith.addf %360, %363 : vector<16x1xf32>
    %365 = math.rsqrt %364 : vector<16x1xf32>
    %366 = vector.broadcast %365 : vector<16x1xf32> to vector<16x32xf32>
    %367 = arith.mulf %362, %366 : vector<16x32xf32>
    %368 = vector.broadcast %201 : vector<1x32xf32> to vector<16x32xf32>
    %369 = arith.mulf %367, %368 : vector<16x32xf32>
    %370 = vector.broadcast %202 : vector<1x32xf32> to vector<16x32xf32>
    %371 = arith.addf %369, %370 : vector<16x32xf32>
    %c0_121 = arith.constant 0 : index
    %c0_122 = arith.constant 0 : index
    %372 = vector.load %arg9[%c0_121, %c0_122] : memref<2x32xf32, #tpu.memory_space<vmem>>, vector<2x32xf32>
    %373 = vector.extract_strided_slice %372 {offsets = [0, 0], sizes = [1, 32], strides = [1, 1]} : vector<2x32xf32> to vector<1x32xf32>
    %374 = vector.extract_strided_slice %372 {offsets = [1, 0], sizes = [1, 32], strides = [1, 1]} : vector<2x32xf32> to vector<1x32xf32>
    %cst_123 = arith.constant dense<0.000000e+00> : vector<16xf32>
    %375 = vector.multi_reduction <add>, %371, %cst_123 [1] : vector<16x32xf32> to vector<16xf32>
    %376 = vector.shape_cast %375 : vector<16xf32> to vector<16x1xf32>
    %cst_124 = arith.constant 3.200000e+01 : f32
    %377 = vector.broadcast %cst_124 : f32 to vector<16x1xf32>
    %378 = arith.divf %376, %377 : vector<16x1xf32>
    %379 = arith.mulf %371, %371 : vector<16x32xf32>
    %cst_125 = arith.constant dense<0.000000e+00> : vector<16xf32>
    %380 = vector.multi_reduction <add>, %379, %cst_125 [1] : vector<16x32xf32> to vector<16xf32>
    %381 = vector.shape_cast %380 : vector<16xf32> to vector<16x1xf32>
    %cst_126 = arith.constant 3.200000e+01 : f32
    %382 = vector.broadcast %cst_126 : f32 to vector<16x1xf32>
    %383 = arith.divf %381, %382 : vector<16x1xf32>
    %384 = arith.mulf %378, %378 : vector<16x1xf32>
    %385 = arith.subf %383, %384 : vector<16x1xf32>
    %cst_127 = arith.constant 0.000000e+00 : f32
    %386 = vector.broadcast %cst_127 : f32 to vector<16x1xf32>
    %387 = arith.maximumf %385, %386 : vector<16x1xf32>
    %388 = vector.broadcast %378 : vector<16x1xf32> to vector<16x32xf32>
    %389 = arith.subf %371, %388 : vector<16x32xf32>
    %cst_128 = arith.constant 9.99999974E-6 : f32
    %390 = vector.broadcast %cst_128 : f32 to vector<16x1xf32>
    %391 = arith.addf %387, %390 : vector<16x1xf32>
    %392 = math.rsqrt %391 : vector<16x1xf32>
    %393 = vector.broadcast %392 : vector<16x1xf32> to vector<16x32xf32>
    %394 = arith.mulf %389, %393 : vector<16x32xf32>
    %395 = vector.broadcast %373 : vector<1x32xf32> to vector<16x32xf32>
    %396 = arith.mulf %394, %395 : vector<16x32xf32>
    %397 = vector.broadcast %374 : vector<1x32xf32> to vector<16x32xf32>
    %398 = arith.addf %396, %397 : vector<16x32xf32>
    %399 = vector.shape_cast %398 : vector<16x32xf32> to vector<2x8x32xf32>
    %400 = vector.extract_strided_slice %399 {offsets = [0, 0, 0], sizes = [1, 8, 32], strides = [1, 1, 1]} : vector<2x8x32xf32> to vector<1x8x32xf32>
    %401 = vector.shape_cast %400 : vector<1x8x32xf32> to vector<8x32xf32>
    %402 = vector.shape_cast %401 : vector<8x32xf32> to vector<8x1x32xf32>
    %403 = vector.extract_strided_slice %399 {offsets = [1, 0, 0], sizes = [1, 8, 32], strides = [1, 1, 1]} : vector<2x8x32xf32> to vector<1x8x32xf32>
    %404 = vector.shape_cast %403 : vector<1x8x32xf32> to vector<8x32xf32>
    %405 = vector.shape_cast %404 : vector<8x32xf32> to vector<8x1x32xf32>
    %406 = tpu.concatenate %402, %405 in 1 : vector<8x1x32xf32>, vector<8x1x32xf32> -> vector<8x2x32xf32>
    %c0_129 = arith.constant 0 : index
    %c0_130 = arith.constant 0 : index
    %c0_131 = arith.constant 0 : index
    %407 = vector.load %arg10[%c0_129, %c0_130, %c0_131] : memref<8x2x32xf32, #tpu.memory_space<vmem>>, vector<8x2x32xf32>
    tpu.vector_store %arg10[%c0_129, %c0_130, %c0_131], %406 {strides = array<i32>} : memref<8x2x32xf32, #tpu.memory_space<vmem>>, vector<8x2x32xf32>,
    return
  }
}

</mosaic_0001>

<llo_original>
// kernel: tpu_custom_call.1
$region0: #{tpu_custom_call.1}
  #allocation0 [shape = 'u32[]', space=smem, size = 0x4, offset = 0x4, fixed_abs, tag = 'smem constant byte address 0x4 - core index']
  #allocation1 [shape = 'u32[144,128]{1,0:T(1,128)}', space=vmem, size = 0x12000, scoped, tag = 'internal scratch']
  %s0 = inlined_call_operand.hbm [shape: f32[8,2,32], index: 0, kind: input, shape index: {}]
  %s1 = inlined_call_operand.hbm [shape: f32[8,2,32], index: 1, kind: input, shape index: {}]
  %s2 = inlined_call_operand.vmem [shape: f32[2,32,64], index: 2, kind: input, shape index: {}]
  %s3 = inlined_call_operand.vmem [shape: f32[2,32,32], index: 3, kind: input, shape index: {}]
  %s4 = inlined_call_operand.vmem [shape: f32[2,32,32], index: 4, kind: input, shape index: {}]
  %s5 = inlined_call_operand.hbm [shape: f32[2,32,64], index: 5, kind: input, shape index: {}]
  %s6 = inlined_call_operand.vmem [shape: f32[2,1,64], index: 6, kind: input, shape index: {}]
  %s7 = inlined_call_operand.vmem [shape: f32[2,64,32], index: 7, kind: input, shape index: {}]
  %s8 = inlined_call_operand.vmem [shape: f32[2,9,32], index: 8, kind: input, shape index: {}]
  %s9 = inlined_call_operand.vmem [shape: f32[2,32], index: 9, kind: input, shape index: {}]
  %s10 = inlined_call_operand.hbm [shape: f32[8,2,32], index: 10, kind: output, shape index: {}]
  %s11 = sld [smem:[#allocation0]]
  $region62: #{tpu_custom_call.1} parent=0
    _
  %s13 = ssub.s32 1, %s11
  %s14 = scalar_select 0, %s13, %s11
  $region1: #{tpu_custom_call.1} parent=0
    #allocation2 [shape = 'u8[8192]{0}', space=vmem, size = 0x2000, scoped, tag = 'input window, operand 0, single buffered']
    #allocation3 [shape = 's32[1]{0}', space=sflag, size = 0x4, scoped, tag = 'scoped memory for tpu_custom_call.1']
    #allocation4 [shape = 's32[1]{0}', space=sflag, size = 0x4, scoped, tag = 'scoped memory for tpu_custom_call.1']
    #allocation5 [shape = 'u8[8192]{0}', space=vmem, size = 0x2000, scoped, tag = 'input window, operand 1, single buffered']
    #allocation6 [shape = 's32[1]{0}', space=sflag, size = 0x4, scoped, tag = 'scoped memory for tpu_custom_call.1']
    #allocation7 [shape = 'u8[32768]{0}', space=vmem, size = 0x8000, scoped, tag = 'input window, operand 5, single buffered']
    #allocation8 [shape = 'u8[8192]{0}', space=vmem, size = 0x2000, scoped, tag = 'output window, operand 0, single buffered']
    %15 = vsyncpa [#allocation3], 0
    %16 = vsyncpa [#allocation6], 0
    %17 = vsyncpa [#allocation4], 0
    // Predicated region
    $region2: #{tpu_custom_call.1} parent=1 // pred_check
      _
    $region3: #{tpu_custom_call.1} parent=1 // pred_check_branch
      %19 = sbr.rel (0) target = $region5
    $region4: #{tpu_custom_call.1} parent=1 // pred_region
      %s21 = ssub.s32 256, 256
      %22 = vsyncadd [#allocation3], %s21
      %s23 = sshll.u32 [#allocation2], 4
      %s24 = int_to_ptr.vmem [resolvable:$true] %s23
      %29 = dma.hbm_to_vmem [thread:$0]  %s0, 256, %s24, [#allocation3], 32, 32, 2
    $region5: #{tpu_custom_call.1} parent=1 // pred_fallthru
      _
    // Predicated region
    $region6: #{tpu_custom_call.1} parent=1 // pred_check
      _
    $region7: #{tpu_custom_call.1} parent=1 // pred_check_branch
      %31 = sbr.rel (0) target = $region9
    $region8: #{tpu_custom_call.1} parent=1 // pred_region
      %s33 = ssub.s32 256, 256
      %34 = vsyncadd [#allocation6], %s33
      %s35 = sshll.u32 [#allocation5], 4
      %s36 = int_to_ptr.vmem [resolvable:$true] %s35
      %41 = dma.hbm_to_vmem [thread:$0]  %s1, 256, %s36, [#allocation6], 32, 32, 2
    $region9: #{tpu_custom_call.1} parent=1 // pred_fallthru
      _
    // Predicated region
    $region10: #{tpu_custom_call.1} parent=1 // pred_check
      _
    $region11: #{tpu_custom_call.1} parent=1 // pred_check_branch
      %43 = sbr.rel (0) target = $region13
    $region12: #{tpu_custom_call.1} parent=1 // pred_region
      _
    $region13: #{tpu_custom_call.1} parent=1 // pred_fallthru
      _
    // Predicated region
    $region14: #{tpu_custom_call.1} parent=1 // pred_check
      _
    $region15: #{tpu_custom_call.1} parent=1 // pred_check_branch
      %45 = sbr.rel (0) target = $region17
    $region16: #{tpu_custom_call.1} parent=1 // pred_region
      _
    $region17: #{tpu_custom_call.1} parent=1 // pred_fallthru
      _
    // Predicated region
    $region18: #{tpu_custom_call.1} parent=1 // pred_check
      _
    $region19: #{tpu_custom_call.1} parent=1 // pred_check_branch
      %47 = sbr.rel (0) target = $region21
    $region20: #{tpu_custom_call.1} parent=1 // pred_region
      _
    $region21: #{tpu_custom_call.1} parent=1 // pred_fallthru
      _
    // Predicated region
    $region22: #{tpu_custom_call.1} parent=1 // pred_check
      _
    $region23: #{tpu_custom_call.1} parent=1 // pred_check_branch
      %49 = sbr.rel (0) target = $region25
    $region24: #{tpu_custom_call.1} parent=1 // pred_region
      %s51 = ssub.s32 1024, 1024
      %52 = vsyncadd [#allocation6], %s51
      %s53 = sshll.u32 [#allocation7], 4
      %s54 = int_to_ptr.vmem [resolvable:$true] %s53
      %59 = dma.hbm_to_vmem [thread:$0]  %s5, 1024, %s54, [#allocation6], 128, 128, 8
    $region25: #{tpu_custom_call.1} parent=1 // pred_fallthru
      _
    // Predicated region
    $region26: #{tpu_custom_call.1} parent=1 // pred_check
      _
    $region27: #{tpu_custom_call.1} parent=1 // pred_check_branch
      %61 = sbr.rel (0) target = $region29
    $region28: #{tpu_custom_call.1} parent=1 // pred_region
      _
    $region29: #{tpu_custom_call.1} parent=1 // pred_fallthru
      _
    // Predicated region
    $region30: #{tpu_custom_call.1} parent=1 // pred_check
      _
    $region31: #{tpu_custom_call.1} parent=1 // pred_check_branch
      %63 = sbr.rel (0) target = $region33
    $region32: #{tpu_custom_call.1} parent=1 // pred_region
      _
    $region33: #{tpu_custom_call.1} parent=1 // pred_fallthru
      _
    // Predicated region
    $region34: #{tpu_custom_call.1} parent=1 // pred_check
      _
    $region35: #{tpu_custom_call.1} parent=1 // pred_check_branch
      %65 = sbr.rel (0) target = $region37
    $region36: #{tpu_custom_call.1} parent=1 // pred_region
      _
    $region37: #{tpu_custom_call.1} parent=1 // pred_fallthru
      _
    // Predicated region
    $region38: #{tpu_custom_call.1} parent=1 // pred_check
      _
    $region39: #{tpu_custom_call.1} parent=1 // pred_check_branch
      %67 = sbr.rel (0) target = $region41
    $region40: #{tpu_custom_call.1} parent=1 // pred_region
      _
    $region41: #{tpu_custom_call.1} parent=1 // pred_fallthru
      _
    // Predicated region
    $region42: #{tpu_custom_call.1} parent=1 // pred_check
      _
    $region43: #{tpu_custom_call.1} parent=1 // pred_check_branch
      %69 = sbr.rel (0) target = $region45
    $region44: #{tpu_custom_call.1} parent=1 // pred_region
      %70 = dma.done [#allocation3], 256
    $region45: #{tpu_custom_call.1} parent=1 // pred_fallthru
      _
    // Predicated region
    $region46: #{tpu_custom_call.1} parent=1 // pred_check
      _
    $region47: #{tpu_custom_call.1} parent=1 // pred_check_branch
      %72 = sbr.rel (0) target = $region49
    $region48: #{tpu_custom_call.1} parent=1 // pred_region
      %73 = dma.done [#allocation6], 256
    $region49: #{tpu_custom_call.1} parent=1 // pred_fallthru
      _
    // Predicated region
    $region50: #{tpu_custom_call.1} parent=1 // pred_check
      _
    $region51: #{tpu_custom_call.1} parent=1 // pred_check_branch
      %75 = sbr.rel (0) target = $region53
    $region52: #{tpu_custom_call.1} parent=1 // pred_region
      %76 = dma.done [#allocation6], 1024
    $region53: #{tpu_custom_call.1} parent=1 // pred_fallthru
      _
    %v77 = vld [vmem:[#allocation2] sm:$0x3]
    %v78 = vld [vmem:[#allocation2 + $0x2] sm:$0x3]
    %v79 = vld [vmem:[#allocation2 + $0x4] sm:$0x3]
    %v80 = vld [vmem:[#allocation2 + $0x6] sm:$0x3]
    %v81 = vld [vmem:[#allocation2 + $0x8] sm:$0x3]
    %v82 = vld [vmem:[#allocation2 + $0xa] sm:$0x3]
    %v83 = vld [vmem:[#allocation2 + $0xc] sm:$0x3]
    %v84 = vld [vmem:[#allocation2 + $0xe] sm:$0x3]
    %v85 = vld [vmem:[#allocation5] sm:$0x3]
    %v86 = vld [vmem:[#allocation5 + $0x2] sm:$0x3]
    %v87 = vld [vmem:[#allocation5 + $0x4] sm:$0x3]
    %v88 = vld [vmem:[#allocation5 + $0x6] sm:$0x3]
    %v89 = vld [vmem:[#allocation5 + $0x8] sm:$0x3]
    %v90 = vld [vmem:[#allocation5 + $0xa] sm:$0x3]
    %v91 = vld [vmem:[#allocation5 + $0xc] sm:$0x3]
    %v92 = vld [vmem:[#allocation5 + $0xe] sm:$0x3]
    %v101 = vrot.slane %v78, 7
    %vm102 = vcmask 1041409
    %v103 = vsel %vm102, %v101, %v77
    %v104 = vrot.slane %v79, 6
    %vm105 = vcmask 1042434
    %v106 = vsel %vm105, %v104, %v103
    %v107 = vrot.slane %v80, 5
    %vm108 = vcmask 1043459
    %v109 = vsel %vm108, %v107, %v106
    %v110 = vrot.slane %v81, 4
    %vm111 = vcmask 1044484
    %v112 = vsel %vm111, %v110, %v109
    %v113 = vrot.slane %v82, 3
    %vm114 = vcmask 1045509
    %v115 = vsel %vm114, %v113, %v112
    %v116 = vrot.slane %v83, 2
    %vm117 = vcmask 1046534
    %v118 = vsel %vm117, %v116, %v115
    %v119 = vrot.slane %v84, 1
    %vm120 = vcmask 1047559
    %v121 = vsel %vm120, %v119, %v118
    %v123 = vrot.slane %v77, 1
    %v124 = vsel %vm102, %v78, %v123
    %v125 = vrot.slane %v79, 7
    %v126 = vsel %vm105, %v125, %v124
    %v127 = vrot.slane %v80, 6
    %v128 = vsel %vm108, %v127, %v126
    %v129 = vrot.slane %v81, 5
    %v130 = vsel %vm111, %v129, %v128
    %v131 = vrot.slane %v82, 4
    %v132 = vsel %vm114, %v131, %v130
    %v133 = vrot.slane %v83, 3
    %v134 = vsel %vm117, %v133, %v132
    %v135 = vrot.slane %v84, 2
    %v136 = vsel %vm120, %v135, %v134
    %v146 = vrot.slane %v86, 7
    %v147 = vsel %vm102, %v146, %v85
    %v148 = vrot.slane %v87, 6
    %v149 = vsel %vm105, %v148, %v147
    %v150 = vrot.slane %v88, 5
    %v151 = vsel %vm108, %v150, %v149
    %v152 = vrot.slane %v89, 4
    %v153 = vsel %vm111, %v152, %v151
    %v154 = vrot.slane %v90, 3
    %v155 = vsel %vm114, %v154, %v153
    %v156 = vrot.slane %v91, 2
    %v157 = vsel %vm117, %v156, %v155
    %v158 = vrot.slane %v92, 1
    %v159 = vsel %vm120, %v158, %v157
    %v161 = vrot.slane %v85, 1
    %v162 = vsel %vm102, %v86, %v161
    %v163 = vrot.slane %v87, 7
    %v164 = vsel %vm105, %v163, %v162
    %v165 = vrot.slane %v88, 6
    %v166 = vsel %vm108, %v165, %v164
    %v167 = vrot.slane %v89, 5
    %v168 = vsel %vm111, %v167, %v166
    %v169 = vrot.slane %v90, 4
    %v170 = vsel %vm114, %v169, %v168
    %v171 = vrot.slane %v91, 3
    %v172 = vsel %vm117, %v171, %v170
    %v173 = vrot.slane %v92, 2
    %v174 = vsel %vm120, %v173, %v172
    %v176 = vld [vmem:[%s8] sm:$0xff]
    %v177 = vld [vmem:[%s8 + $0x8] sm:$0x1]
    %v178 = vadd.f32 %v121, %v159
    %v179 = vadd.f32 %v136, %v174
    %v180 = vld [vmem:[%s2] sm:$0xff]
    %v181 = vld [vmem:[%s2 + $0x8] sm:$0xff]
    %v182 = vld [vmem:[%s2 + $0x10] sm:$0xff]
    %v183 = vld [vmem:[%s2 + $0x18] sm:$0xff]
    %vm184 = vcmask 261120
    %v186 = vsel %vm184, %v178, 0
    %v189 = vsel %vm184, %v179, 0
    %191 = vmatprep.subr.mxu0 0.0
    %192 = vmatpush1.msra.mxu0 %v180
    %193 = vmatprep.subr.mxu0 0.0
    %194 = vmatpush1.msra.mxu0 %v181
    %195 = vmatprep.subr.mxu0 0.0
    %196 = vmatpush1.msra.mxu0 %v182
    %197 = vmatprep.subr.mxu0 0.0
    %198 = vmatpush1.msra.mxu0 %v183
    %199 = vmatprep.subr.mxu0 0.0
    %200 = vmatpush1.msra.mxu0 0.0
    %201 = vmatprep.subr.mxu0 0.0
    %202 = vmatpush1.msra.mxu0 0.0
    %203 = vmatprep.subr.mxu0 0.0
    %204 = vmatpush1.msra.mxu0 0.0
    %205 = vmatprep.subr.mxu0 0.0
    %206 = vmatpush1.msra.mxu0 0.0
    %207 = vmatprep.subr.mxu0 0.0
    %208 = vmatpush1.msra.mxu0 0.0
    %209 = vmatprep.subr.mxu0 0.0
    %210 = vmatpush1.msra.mxu0 0.0
    %211 = vmatprep.subr.mxu0 0.0
    %212 = vmatpush1.msra.mxu0 0.0
    %213 = vmatprep.subr.mxu0 0.0
    %214 = vmatpush1.msra.mxu0 0.0
    %215 = vmatprep.subr.mxu0 0.0
    %216 = vmatpush1.msra.mxu0 0.0
    %217 = vmatprep.subr.mxu0 0.0
    %218 = vmatpush1.msra.mxu0 0.0
    %219 = vmatprep.subr.mxu0 0.0
    %220 = vmatpush1.msra.mxu0 0.0
    %221 = vmatprep.subr.mxu0 0.0
    %222 = vmatpush1.msra.mxu0 0.0
    %223 = vmatprep.subr.mxu0 0.0
    %224 = vmatpush1.msra.mxu0 0.0
    %225 = vmatprep.subr.mxu0 0.0
    %226 = vmatpush1.msra.mxu0 0.0
    %227 = vmatprep.subr.mxu0 0.0
    %228 = vmatpush1.msra.mxu0 0.0
    %229 = vmatprep.subr.mxu0 0.0
    %230 = vmatpush1.msra.mxu0 0.0
    %231 = vmatprep.subr.mxu0 0.0
    %232 = vmatpush1.msra.mxu0 0.0
    %233 = vmatprep.subr.mxu0 0.0
    %234 = vmatpush1.msra.mxu0 0.0
    %235 = vmatprep.subr.mxu0 0.0
    %236 = vmatpush1.msra.mxu0 0.0
    %237 = vmatprep.subr.mxu0 0.0
    %238 = vmatpush1.msra.mxu0 0.0
    %239 = vmatprep.subr.mxu0 0.0
    %240 = vmatpush1.msra.mxu0 0.0
    %241 = vmatprep.subr.mxu0 0.0
    %242 = vmatpush1.msra.mxu0 0.0
    %243 = vmatprep.subr.mxu0 0.0
    %244 = vmatpush1.msra.mxu0 0.0
    %245 = vmatprep.subr.mxu0 0.0
    %246 = vmatpush1.msra.mxu0 0.0
    %247 = vmatprep.subr.mxu0 0.0
    %248 = vmatpush1.msra.mxu0 0.0
    %249 = vmatprep.subr.mxu0 0.0
    %250 = vmatpush1.msra.mxu0 0.0
    %251 = vmatprep.subr.mxu0 0.0
    %252 = vmatpush1.msra.mxu0 0.0
    %253 = vmatprep.subr.mxu0 0.0
    %254 = vmatpush1.msra.mxu0 0.0
    %255 = vmatprep.mubr.f32.mxu0 0.0
    %256 = vmatmul.mubr.f32.gmra.mrb[0].mxu0 %v186
    %v257 = vpop.f32.mrb[0].mxu0
    %v258 = vadd.f32 0.0, %v257
    %v259 = vpop.f32.mrb[0].mxu0
    %260 = vmatprep.mubr.f32.mxu0 0.0
    %261 = vmatmul.mubr.f32.gmra.mrb[0].mxu0 %v189
    %v262 = vpop.f32.mrb[0].mxu0
    %v263 = vadd.f32 0.0, %v262
    %v264 = vpop.f32.mrb[0].mxu0
    %265 = vdwg.mxu0
    %v266 = vlaneseq
    %v267 = vshrl.u32 %v266, 7
    %v268 = vsub.s32 0, %v267
    %v269 = vrot.slane %v176, %v268
    %v270 = vadd.f32 %v258, %v269
    %v271 = vadd.f32 %v263, %v269
    %v272 = vlaneseq
    %v273 = vshrl.u32 %v272, 7
    %v274 = vsub.s32 1, %v273
    %v275 = vrot.slane %v176, %v274
    %277 = vrot.lane.b32.xlu0 %v275, 32
    %v278 = vpop.permute.xlu0 %277
    %v280 = vadd.f32 %v258, %v278
    %v281 = vadd.f32 %v263, %v278
    %v282 = vld [vmem:[%s3] sm:$0xff]
    %v283 = vld [vmem:[%s3 + $0x8] sm:$0xff]
    %v284 = vld [vmem:[%s3 + $0x10] sm:$0xff]
    %v285 = vld [vmem:[%s3 + $0x18] sm:$0xff]
    %v286 = vlaneseq
    %v287 = vshrl.u32 %v286, 7
    %v288 = vsub.s32 2, %v287
    %v289 = vrot.slane %v176, %v288
    %v290 = vsel %vm184, %v121, 0
    %v292 = vsel %vm184, %v136, 0
    %294 = vmatprep.subr.mxu0 0.0
    %295 = vmatpush1.msra.mxu0 %v282
    %296 = vmatprep.subr.mxu0 0.0
    %297 = vmatpush1.msra.mxu0 %v283
    %298 = vmatprep.subr.mxu0 0.0
    %299 = vmatpush1.msra.mxu0 %v284
    %300 = vmatprep.subr.mxu0 0.0
    %301 = vmatpush1.msra.mxu0 %v285
    %302 = vmatprep.subr.mxu0 0.0
    %303 = vmatpush1.msra.mxu0 0.0
    %304 = vmatprep.subr.mxu0 0.0
    %305 = vmatpush1.msra.mxu0 0.0
    %306 = vmatprep.subr.mxu0 0.0
    %307 = vmatpush1.msra.mxu0 0.0
    %308 = vmatprep.subr.mxu0 0.0
    %309 = vmatpush1.msra.mxu0 0.0
    %310 = vmatprep.subr.mxu0 0.0
    %311 = vmatpush1.msra.mxu0 0.0
    %312 = vmatprep.subr.mxu0 0.0
    %313 = vmatpush1.msra.mxu0 0.0
    %314 = vmatprep.subr.mxu0 0.0
    %315 = vmatpush1.msra.mxu0 0.0
    %316 = vmatprep.subr.mxu0 0.0
    %317 = vmatpush1.msra.mxu0 0.0
    %318 = vmatprep.subr.mxu0 0.0
    %319 = vmatpush1.msra.mxu0 0.0
    %320 = vmatprep.subr.mxu0 0.0
    %321 = vmatpush1.msra.mxu0 0.0
    %322 = vmatprep.subr.mxu0 0.0
    %323 = vmatpush1.msra.mxu0 0.0
    %324 = vmatprep.subr.mxu0 0.0
    %325 = vmatpush1.msra.mxu0 0.0
    %326 = vmatprep.subr.mxu0 0.0
    %327 = vmatpush1.msra.mxu0 0.0
    %328 = vmatprep.subr.mxu0 0.0
    %329 = vmatpush1.msra.mxu0 0.0
    %330 = vmatprep.subr.mxu0 0.0
    %331 = vmatpush1.msra.mxu0 0.0
    %332 = vmatprep.subr.mxu0 0.0
    %333 = vmatpush1.msra.mxu0 0.0
    %334 = vmatprep.subr.mxu0 0.0
    %335 = vmatpush1.msra.mxu0 0.0
    %336 = vmatprep.subr.mxu0 0.0
    %337 = vmatpush1.msra.mxu0 0.0
    %338 = vmatprep.subr.mxu0 0.0
    %339 = vmatpush1.msra.mxu0 0.0
    %340 = vmatprep.subr.mxu0 0.0
    %341 = vmatpush1.msra.mxu0 0.0
    %342 = vmatprep.subr.mxu0 0.0
    %343 = vmatpush1.msra.mxu0 0.0
    %344 = vmatprep.subr.mxu0 0.0
    %345 = vmatpush1.msra.mxu0 0.0
    %346 = vmatprep.subr.mxu0 0.0
    %347 = vmatpush1.msra.mxu0 0.0
    %348 = vmatprep.subr.mxu0 0.0
    %349 = vmatpush1.msra.mxu0 0.0
    %350 = vmatprep.subr.mxu0 0.0
    %351 = vmatpush1.msra.mxu0 0.0
    %352 = vmatprep.subr.mxu0 0.0
    %353 = vmatpush1.msra.mxu0 0.0
    %354 = vmatprep.subr.mxu0 0.0
    %355 = vmatpush1.msra.mxu0 0.0
    %356 = vmatprep.subr.mxu0 0.0
    %357 = vmatpush1.msra.mxu0 0.0
    %358 = vmatprep.mubr.f32.mxu0 0.0
    %359 = vmatmul.mubr.f32.gmra.mrb[0].mxu0 %v290
    %v360 = vpop.f32.mrb[0].mxu0
    %v361 = vadd.f32 %v289, %v360
    %v362 = vpop.f32.mrb[0].mxu0
    %363 = vmatprep.mubr.f32.mxu0 0.0
    %364 = vmatmul.mubr.f32.gmra.mrb[0].mxu0 %v292
    %v365 = vpop.f32.mrb[0].mxu0
    %v366 = vadd.f32 %v289, %v365
    %v367 = vpop.f32.mrb[0].mxu0
    %368 = vdwg.mxu0
    %v369 = vmul.f32 %v270, 0.35355338
    %v370 = vmul.f32 %v271, 0.35355338
    %372 = vrot.lane.b32.xlu0 %v280, 96
    %v373 = vpop.permute.xlu0 %372
    %vm374 = vcmask 64512
    %v376 = vsel %vm374, %v369, 0
    %v378 = vsel %vm374, %v373, 0
    %380 = vmatprep.subr.mxu0 0.0
    %381 = vmatpush1.xpose.msra.mxu0 %v378
    %382 = vmatprep.subr.mxu0 0.0
    %383 = vmatpush1.xpose.msra.mxu0 0.0
    %384 = vmatprep.subr.mxu0 0.0
    %385 = vmatpush1.xpose.msra.mxu0 0.0
    %386 = vmatprep.subr.mxu0 0.0
    %387 = vmatpush1.xpose.msra.mxu0 0.0
    %388 = vmatprep.subr.mxu0 0.0
    %389 = vmatpush1.xpose.msra.mxu0 0.0
    %390 = vmatprep.subr.mxu0 0.0
    %391 = vmatpush1.xpose.msra.mxu0 0.0
    %392 = vmatprep.subr.mxu0 0.0
    %393 = vmatpush1.xpose.msra.mxu0 0.0
    %394 = vmatprep.subr.mxu0 0.0
    %395 = vmatpush1.xpose.msra.mxu0 0.0
    %396 = vmatprep.subr.mxu0 0.0
    %397 = vmatpush1.xpose.msra.mxu0 0.0
    %398 = vmatprep.subr.mxu0 0.0
    %399 = vmatpush1.xpose.msra.mxu0 0.0
    %400 = vmatprep.subr.mxu0 0.0
    %401 = vmatpush1.xpose.msra.mxu0 0.0
    %402 = vmatprep.subr.mxu0 0.0
    %403 = vmatpush1.xpose.msra.mxu0 0.0
    %404 = vmatprep.subr.mxu0 0.0
    %405 = vmatpush1.xpose.msra.mxu0 0.0
    %406 = vmatprep.subr.mxu0 0.0
    %407 = vmatpush1.xpose.msra.mxu0 0.0
    %408 = vmatprep.subr.mxu0 0.0
    %409 = vmatpush1.xpose.msra.mxu0 0.0
    %410 = vmatprep.subr.mxu0 0.0
    %411 = vmatpush1.xpose.msra.mxu0 0.0
    %412 = vmatprep.subr.mxu0 0.0
    %413 = vmatpush1.xpose.msra.mxu0 0.0
    %414 = vmatprep.subr.mxu0 0.0
    %415 = vmatpush1.xpose.msra.mxu0 0.0
    %416 = vmatprep.subr.mxu0 0.0
    %417 = vmatpush1.xpose.msra.mxu0 0.0
    %418 = vmatprep.subr.mxu0 0.0
    %419 = vmatpush1.xpose.msra.mxu0 0.0
    %420 = vmatprep.subr.mxu0 0.0
    %421 = vmatpush1.xpose.msra.mxu0 0.0
    %422 = vmatprep.subr.mxu0 0.0
    %423 = vmatpush1.xpose.msra.mxu0 0.0
    %424 = vmatprep.subr.mxu0 0.0
    %425 = vmatpush1.xpose.msra.mxu0 0.0
    %426 = vmatprep.subr.mxu0 0.0
    %427 = vmatpush1.xpose.msra.mxu0 0.0
    %428 = vmatprep.subr.mxu0 0.0
    %429 = vmatpush1.xpose.msra.mxu0 0.0
    %430 = vmatprep.subr.mxu0 0.0
    %431 = vmatpush1.xpose.msra.mxu0 0.0
    %432 = vmatprep.subr.mxu0 0.0
    %433 = vmatpush1.xpose.msra.mxu0 0.0
    %434 = vmatprep.subr.mxu0 0.0
    %435 = vmatpush1.xpose.msra.mxu0 0.0
    %436 = vmatprep.subr.mxu0 0.0
    %437 = vmatpush1.xpose.msra.mxu0 0.0
    %438 = vmatprep.subr.mxu0 0.0
    %439 = vmatpush1.xpose.msra.mxu0 0.0
    %440 = vmatprep.subr.mxu0 0.0
    %441 = vmatpush1.xpose.msra.mxu0 0.0
    %442 = vmatprep.subr.mxu0 0.0
    %443 = vmatpush1.xpose.msra.mxu0 0.0
    %444 = vmatprep.mubr.f32.mxu0 0.0
    %445 = vmatmul.mubr.f32.gmra.mrb[0].mxu0 %v376
    %v446 = vpop.f32.mrb[0].mxu0
    %v447 = vadd.f32 0.0, %v446
    %v448 = vpop.f32.mrb[0].mxu0
    %449 = vdwg.mxu0
    %451 = vrot.lane.b32.xlu0 %v281, 96
    %v452 = vpop.permute.xlu0 %451
    %v454 = vsel %vm374, %v370, 0
    %v456 = vsel %vm374, %v452, 0
    %458 = vmatprep.subr.mxu0 0.0
    %459 = vmatpush1.xpose.msra.mxu0 %v456
    %460 = vmatprep.subr.mxu0 0.0
    %461 = vmatpush1.xpose.msra.mxu0 0.0
    %462 = vmatprep.subr.mxu0 0.0
    %463 = vmatpush1.xpose.msra.mxu0 0.0
    %464 = vmatprep.subr.mxu0 0.0
    %465 = vmatpush1.xpose.msra.mxu0 0.0
    %466 = vmatprep.subr.mxu0 0.0
    %467 = vmatpush1.xpose.msra.mxu0 0.0
    %468 = vmatprep.subr.mxu0 0.0
    %469 = vmatpush1.xpose.msra.mxu0 0.0
    %470 = vmatprep.subr.mxu0 0.0
    %471 = vmatpush1.xpose.msra.mxu0 0.0
    %472 = vmatprep.subr.mxu0 0.0
    %473 = vmatpush1.xpose.msra.mxu0 0.0
    %474 = vmatprep.subr.mxu0 0.0
    %475 = vmatpush1.xpose.msra.mxu0 0.0
    %476 = vmatprep.subr.mxu0 0.0
    %477 = vmatpush1.xpose.msra.mxu0 0.0
    %478 = vmatprep.subr.mxu0 0.0
    %479 = vmatpush1.xpose.msra.mxu0 0.0
    %480 = vmatprep.subr.mxu0 0.0
    %481 = vmatpush1.xpose.msra.mxu0 0.0
    %482 = vmatprep.subr.mxu0 0.0
    %483 = vmatpush1.xpose.msra.mxu0 0.0
    %484 = vmatprep.subr.mxu0 0.0
    %485 = vmatpush1.xpose.msra.mxu0 0.0
    %486 = vmatprep.subr.mxu0 0.0
    %487 = vmatpush1.xpose.msra.mxu0 0.0
    %488 = vmatprep.subr.mxu0 0.0
    %489 = vmatpush1.xpose.msra.mxu0 0.0
    %490 = vmatprep.subr.mxu0 0.0
    %491 = vmatpush1.xpose.msra.mxu0 0.0
    %492 = vmatprep.subr.mxu0 0.0
    %493 = vmatpush1.xpose.msra.mxu0 0.0
    %494 = vmatprep.subr.mxu0 0.0
    %495 = vmatpush1.xpose.msra.mxu0 0.0
    %496 = vmatprep.subr.mxu0 0.0
    %497 = vmatpush1.xpose.msra.mxu0 0.0
    %498 = vmatprep.subr.mxu0 0.0
    %499 = vmatpush1.xpose.msra.mxu0 0.0
    %500 = vmatprep.subr.mxu0 0.0
    %501 = vmatpush1.xpose.msra.mxu0 0.0
    %502 = vmatprep.subr.mxu0 0.0
    %503 = vmatpush1.xpose.msra.mxu0 0.0
    %504 = vmatprep.subr.mxu0 0.0
    %505 = vmatpush1.xpose.msra.mxu0 0.0
    %506 = vmatprep.subr.mxu0 0.0
    %507 = vmatpush1.xpose.msra.mxu0 0.0
    %508 = vmatprep.subr.mxu0 0.0
    %509 = vmatpush1.xpose.msra.mxu0 0.0
    %510 = vmatprep.subr.mxu0 0.0
    %511 = vmatpush1.xpose.msra.mxu0 0.0
    %512 = vmatprep.subr.mxu0 0.0
    %513 = vmatpush1.xpose.msra.mxu0 0.0
    %514 = vmatprep.subr.mxu0 0.0
    %515 = vmatpush1.xpose.msra.mxu0 0.0
    %516 = vmatprep.subr.mxu0 0.0
    %517 = vmatpush1.xpose.msra.mxu0 0.0
    %518 = vmatprep.subr.mxu0 0.0
    %519 = vmatpush1.xpose.msra.mxu0 0.0
    %520 = vmatprep.subr.mxu0 0.0
    %521 = vmatpush1.xpose.msra.mxu0 0.0
    %522 = vmatprep.mubr.f32.mxu0 0.0
    %523 = vmatmul.mubr.f32.gmra.mrb[0].mxu0 %v454
    %v524 = vpop.f32.mrb[0].mxu0
    %v525 = vadd.f32 0.0, %v524
    %v526 = vpop.f32.mrb[0].mxu0
    %527 = vdwg.mxu0
    %v528 = vsel %vm374, %v447, -inf
    %529 = vmax.xlane.f32.xlu0 %v528
    %v530 = vpop.xlane.xlu0 %529
    %v531 = vsel %vm374, %v525, -inf
    %532 = vmax.xlane.f32.xlu0 %v531
    %v533 = vpop.xlane.xlu0 %532
    %v534 = vsub.f32 %v447, %v530
    %v535 = vsub.f32 %v525, %v533
    %v536 = vmul.f32 %v534, 1.442695
    %v537 = vpow.pop %v536
    %v538 = vmul.f32 %v535, 1.442695
    %v539 = vpow.pop %v538
    %v540 = vsel %vm374, %v537, 0.0
    %541 = vadd.xlane.f32.xlu0 %v540
    %v542 = vpop.xlane.xlu0 %541
    %v543 = vsel %vm374, %v539, 0.0
    %544 = vadd.xlane.f32.xlu0 %v543
    %v545 = vpop.xlane.xlu0 %544
    %v546 = vrcp.pop %v542
    %v547 = vrcp.pop %v545
    %v548 = vmul.f32 %v537, %v546
    %v549 = vmul.f32 %v539, %v547
    %v551 = vsel %vm374, %v548, 0
    %553 = vmatprep.subr.mxu0 0.0
    %554 = vmatpush1.msra.mxu0 %v361
    %555 = vmatprep.subr.mxu0 0.0
    %556 = vmatpush1.msra.mxu0 0.0
    %557 = vmatprep.subr.mxu0 0.0
    %558 = vmatpush1.msra.mxu0 0.0
    %559 = vmatprep.subr.mxu0 0.0
    %560 = vmatpush1.msra.mxu0 0.0
    %561 = vmatprep.subr.mxu0 0.0
    %562 = vmatpush1.msra.mxu0 0.0
    %563 = vmatprep.subr.mxu0 0.0
    %564 = vmatpush1.msra.mxu0 0.0
    %565 = vmatprep.subr.mxu0 0.0
    %566 = vmatpush1.msra.mxu0 0.0
    %567 = vmatprep.subr.mxu0 0.0
    %568 = vmatpush1.msra.mxu0 0.0
    %569 = vmatprep.subr.mxu0 0.0
    %570 = vmatpush1.msra.mxu0 0.0
    %571 = vmatprep.subr.mxu0 0.0
    %572 = vmatpush1.msra.mxu0 0.0
    %573 = vmatprep.subr.mxu0 0.0
    %574 = vmatpush1.msra.mxu0 0.0
    %575 = vmatprep.subr.mxu0 0.0
    %576 = vmatpush1.msra.mxu0 0.0
    %577 = vmatprep.subr.mxu0 0.0
    %578 = vmatpush1.msra.mxu0 0.0
    %579 = vmatprep.subr.mxu0 0.0
    %580 = vmatpush1.msra.mxu0 0.0
    %581 = vmatprep.subr.mxu0 0.0
    %582 = vmatpush1.msra.mxu0 0.0
    %583 = vmatprep.subr.mxu0 0.0
    %584 = vmatpush1.msra.mxu0 0.0
    %585 = vmatprep.subr.mxu0 0.0
    %586 = vmatpush1.msra.mxu0 0.0
    %587 = vmatprep.subr.mxu0 0.0
    %588 = vmatpush1.msra.mxu0 0.0
    %589 = vmatprep.subr.mxu0 0.0
    %590 = vmatpush1.msra.mxu0 0.0
    %591 = vmatprep.subr.mxu0 0.0
    %592 = vmatpush1.msra.mxu0 0.0
    %593 = vmatprep.subr.mxu0 0.0
    %594 = vmatpush1.msra.mxu0 0.0
    %595 = vmatprep.subr.mxu0 0.0
    %596 = vmatpush1.msra.mxu0 0.0
    %597 = vmatprep.subr.mxu0 0.0
    %598 = vmatpush1.msra.mxu0 0.0
    %599 = vmatprep.subr.mxu0 0.0
    %600 = vmatpush1.msra.mxu0 0.0
    %601 = vmatprep.subr.mxu0 0.0
    %602 = vmatpush1.msra.mxu0 0.0
    %603 = vmatprep.subr.mxu0 0.0
    %604 = vmatpush1.msra.mxu0 0.0
    %605 = vmatprep.subr.mxu0 0.0
    %606 = vmatpush1.msra.mxu0 0.0
    %607 = vmatprep.subr.mxu0 0.0
    %608 = vmatpush1.msra.mxu0 0.0
    %609 = vmatprep.subr.mxu0 0.0
    %610 = vmatpush1.msra.mxu0 0.0
    %611 = vmatprep.subr.mxu0 0.0
    %612 = vmatpush1.msra.mxu0 0.0
    %613 = vmatprep.subr.mxu0 0.0
    %614 = vmatpush1.msra.mxu0 0.0
    %615 = vmatprep.subr.mxu0 0.0
    %616 = vmatpush1.msra.mxu0 0.0
    %617 = vmatprep.mubr.f32.mxu0 0.0
    %618 = vmatmul.mubr.f32.gmra.mrb[0].mxu0 %v551
    %v619 = vpop.f32.mrb[0].mxu0
    %v620 = vadd.f32 0.0, %v619
    %v621 = vpop.f32.mrb[0].mxu0
    %622 = vdwg.mxu0
    %v624 = vsel %vm374, %v549, 0
    %626 = vmatprep.subr.mxu0 0.0
    %627 = vmatpush1.msra.mxu0 %v366
    %628 = vmatprep.subr.mxu0 0.0
    %629 = vmatpush1.msra.mxu0 0.0
    %630 = vmatprep.subr.mxu0 0.0
    %631 = vmatpush1.msra.mxu0 0.0
    %632 = vmatprep.subr.mxu0 0.0
    %633 = vmatpush1.msra.mxu0 0.0
    %634 = vmatprep.subr.mxu0 0.0
    %635 = vmatpush1.msra.mxu0 0.0
    %636 = vmatprep.subr.mxu0 0.0
    %637 = vmatpush1.msra.mxu0 0.0
    %638 = vmatprep.subr.mxu0 0.0
    %639 = vmatpush1.msra.mxu0 0.0
    %640 = vmatprep.subr.mxu0 0.0
    %641 = vmatpush1.msra.mxu0 0.0
    %642 = vmatprep.subr.mxu0 0.0
    %643 = vmatpush1.msra.mxu0 0.0
    %644 = vmatprep.subr.mxu0 0.0
    %645 = vmatpush1.msra.mxu0 0.0
    %646 = vmatprep.subr.mxu0 0.0
    %647 = vmatpush1.msra.mxu0 0.0
    %648 = vmatprep.subr.mxu0 0.0
    %649 = vmatpush1.msra.mxu0 0.0
    %650 = vmatprep.subr.mxu0 0.0
    %651 = vmatpush1.msra.mxu0 0.0
    %652 = vmatprep.subr.mxu0 0.0
    %653 = vmatpush1.msra.mxu0 0.0
    %654 = vmatprep.subr.mxu0 0.0
    %655 = vmatpush1.msra.mxu0 0.0
    %656 = vmatprep.subr.mxu0 0.0
    %657 = vmatpush1.msra.mxu0 0.0
    %658 = vmatprep.subr.mxu0 0.0
    %659 = vmatpush1.msra.mxu0 0.0
    %660 = vmatprep.subr.mxu0 0.0
    %661 = vmatpush1.msra.mxu0 0.0
    %662 = vmatprep.subr.mxu0 0.0
    %663 = vmatpush1.msra.mxu0 0.0
    %664 = vmatprep.subr.mxu0 0.0
    %665 = vmatpush1.msra.mxu0 0.0
    %666 = vmatprep.subr.mxu0 0.0
    %667 = vmatpush1.msra.mxu0 0.0
    %668 = vmatprep.subr.mxu0 0.0
    %669 = vmatpush1.msra.mxu0 0.0
    %670 = vmatprep.subr.mxu0 0.0
    %671 = vmatpush1.msra.mxu0 0.0
    %672 = vmatprep.subr.mxu0 0.0
    %673 = vmatpush1.msra.mxu0 0.0
    %674 = vmatprep.subr.mxu0 0.0
    %675 = vmatpush1.msra.mxu0 0.0
    %676 = vmatprep.subr.mxu0 0.0
    %677 = vmatpush1.msra.mxu0 0.0
    %678 = vmatprep.subr.mxu0 0.0
    %679 = vmatpush1.msra.mxu0 0.0
    %680 = vmatprep.subr.mxu0 0.0
    %681 = vmatpush1.msra.mxu0 0.0
    %682 = vmatprep.subr.mxu0 0.0
    %683 = vmatpush1.msra.mxu0 0.0
    %684 = vmatprep.subr.mxu0 0.0
    %685 = vmatpush1.msra.mxu0 0.0
    %686 = vmatprep.subr.mxu0 0.0
    %687 = vmatpush1.msra.mxu0 0.0
    %688 = vmatprep.subr.mxu0 0.0
    %689 = vmatpush1.msra.mxu0 0.0
    %690 = vmatprep.mubr.f32.mxu0 0.0
    %691 = vmatmul.mubr.f32.gmra.mrb[0].mxu0 %v624
    %v692 = vpop.f32.mrb[0].mxu0
    %v693 = vadd.f32 0.0, %v692
    %v694 = vpop.f32.mrb[0].mxu0
    %695 = vdwg.mxu0
    %696 = vrot.lane.b32.xlu0 %v369, 120
    %v697 = vpop.permute.xlu0 %696
    %698 = vrot.lane.b32.xlu0 %v280, 88
    %v699 = vpop.permute.xlu0 %698
    %v700 = vsel %vm374, %v697, 0
    %v702 = vsel %vm374, %v699, 0
    %704 = vmatprep.subr.mxu0 0.0
    %705 = vmatpush1.xpose.msra.mxu0 %v702
    %706 = vmatprep.subr.mxu0 0.0
    %707 = vmatpush1.xpose.msra.mxu0 0.0
    %708 = vmatprep.subr.mxu0 0.0
    %709 = vmatpush1.xpose.msra.mxu0 0.0
    %710 = vmatprep.subr.mxu0 0.0
    %711 = vmatpush1.xpose.msra.mxu0 0.0
    %712 = vmatprep.subr.mxu0 0.0
    %713 = vmatpush1.xpose.msra.mxu0 0.0
    %714 = vmatprep.subr.mxu0 0.0
    %715 = vmatpush1.xpose.msra.mxu0 0.0
    %716 = vmatprep.subr.mxu0 0.0
    %717 = vmatpush1.xpose.msra.mxu0 0.0
    %718 = vmatprep.subr.mxu0 0.0
    %719 = vmatpush1.xpose.msra.mxu0 0.0
    %720 = vmatprep.subr.mxu0 0.0
    %721 = vmatpush1.xpose.msra.mxu0 0.0
    %722 = vmatprep.subr.mxu0 0.0
    %723 = vmatpush1.xpose.msra.mxu0 0.0
    %724 = vmatprep.subr.mxu0 0.0
    %725 = vmatpush1.xpose.msra.mxu0 0.0
    %726 = vmatprep.subr.mxu0 0.0
    %727 = vmatpush1.xpose.msra.mxu0 0.0
    %728 = vmatprep.subr.mxu0 0.0
    %729 = vmatpush1.xpose.msra.mxu0 0.0
    %730 = vmatprep.subr.mxu0 0.0
    %731 = vmatpush1.xpose.msra.mxu0 0.0
    %732 = vmatprep.subr.mxu0 0.0
    %733 = vmatpush1.xpose.msra.mxu0 0.0
    %734 = vmatprep.subr.mxu0 0.0
    %735 = vmatpush1.xpose.msra.mxu0 0.0
    %736 = vmatprep.subr.mxu0 0.0
    %737 = vmatpush1.xpose.msra.mxu0 0.0
    %738 = vmatprep.subr.mxu0 0.0
    %739 = vmatpush1.xpose.msra.mxu0 0.0
    %740 = vmatprep.subr.mxu0 0.0
    %741 = vmatpush1.xpose.msra.mxu0 0.0
    %742 = vmatprep.subr.mxu0 0.0
    %743 = vmatpush1.xpose.msra.mxu0 0.0
    %744 = vmatprep.subr.mxu0 0.0
    %745 = vmatpush1.xpose.msra.mxu0 0.0
    %746 = vmatprep.subr.mxu0 0.0
    %747 = vmatpush1.xpose.msra.mxu0 0.0
    %748 = vmatprep.subr.mxu0 0.0
    %749 = vmatpush1.xpose.msra.mxu0 0.0
    %750 = vmatprep.subr.mxu0 0.0
    %751 = vmatpush1.xpose.msra.mxu0 0.0
    %752 = vmatprep.subr.mxu0 0.0
    %753 = vmatpush1.xpose.msra.mxu0 0.0
    %754 = vmatprep.subr.mxu0 0.0
    %755 = vmatpush1.xpose.msra.mxu0 0.0
    %756 = vmatprep.subr.mxu0 0.0
    %757 = vmatpush1.xpose.msra.mxu0 0.0
    %758 = vmatprep.subr.mxu0 0.0
    %759 = vmatpush1.xpose.msra.mxu0 0.0
    %760 = vmatprep.subr.mxu0 0.0
    %761 = vmatpush1.xpose.msra.mxu0 0.0
    %762 = vmatprep.subr.mxu0 0.0
    %763 = vmatpush1.xpose.msra.mxu0 0.0
    %764 = vmatprep.subr.mxu0 0.0
    %765 = vmatpush1.xpose.msra.mxu0 0.0
    %766 = vmatprep.subr.mxu0 0.0
    %767 = vmatpush1.xpose.msra.mxu0 0.0
    %768 = vmatprep.mubr.f32.mxu0 0.0
    %769 = vmatmul.mubr.f32.gmra.mrb[0].mxu0 %v700
    %v770 = vpop.f32.mrb[0].mxu0
    %v771 = vadd.f32 0.0, %v770
    %v772 = vpop.f32.mrb[0].mxu0
    %773 = vdwg.mxu0
    %774 = vrot.lane.b32.xlu0 %v370, 120
    %v775 = vpop.permute.xlu0 %774
    %776 = vrot.lane.b32.xlu0 %v281, 88
    %v777 = vpop.permute.xlu0 %776
    %v778 = vsel %vm374, %v775, 0
    %v780 = vsel %vm374, %v777, 0
    %782 = vmatprep.subr.mxu0 0.0
    %783 = vmatpush1.xpose.msra.mxu0 %v780
    %784 = vmatprep.subr.mxu0 0.0
    %785 = vmatpush1.xpose.msra.mxu0 0.0
    %786 = vmatprep.subr.mxu0 0.0
    %787 = vmatpush1.xpose.msra.mxu0 0.0
    %788 = vmatprep.subr.mxu0 0.0
    %789 = vmatpush1.xpose.msra.mxu0 0.0
    %790 = vmatprep.subr.mxu0 0.0
    %791 = vmatpush1.xpose.msra.mxu0 0.0
    %792 = vmatprep.subr.mxu0 0.0
    %793 = vmatpush1.xpose.msra.mxu0 0.0
    %794 = vmatprep.subr.mxu0 0.0
    %795 = vmatpush1.xpose.msra.mxu0 0.0
    %796 = vmatprep.subr.mxu0 0.0
    %797 = vmatpush1.xpose.msra.mxu0 0.0
    %798 = vmatprep.subr.mxu0 0.0
    %799 = vmatpush1.xpose.msra.mxu0 0.0
    %800 = vmatprep.subr.mxu0 0.0
    %801 = vmatpush1.xpose.msra.mxu0 0.0
    %802 = vmatprep.subr.mxu0 0.0
    %803 = vmatpush1.xpose.msra.mxu0 0.0
    %804 = vmatprep.subr.mxu0 0.0
    %805 = vmatpush1.xpose.msra.mxu0 0.0
    %806 = vmatprep.subr.mxu0 0.0
    %807 = vmatpush1.xpose.msra.mxu0 0.0
    %808 = vmatprep.subr.mxu0 0.0
    %809 = vmatpush1.xpose.msra.mxu0 0.0
    %810 = vmatprep.subr.mxu0 0.0
    %811 = vmatpush1.xpose.msra.mxu0 0.0
    %812 = vmatprep.subr.mxu0 0.0
    %813 = vmatpush1.xpose.msra.mxu0 0.0
    %814 = vmatprep.subr.mxu0 0.0
    %815 = vmatpush1.xpose.msra.mxu0 0.0
    %816 = vmatprep.subr.mxu0 0.0
    %817 = vmatpush1.xpose.msra.mxu0 0.0
    %818 = vmatprep.subr.mxu0 0.0
    %819 = vmatpush1.xpose.msra.mxu0 0.0
    %820 = vmatprep.subr.mxu0 0.0
    %821 = vmatpush1.xpose.msra.mxu0 0.0
    %822 = vmatprep.subr.mxu0 0.0
    %823 = vmatpush1.xpose.msra.mxu0 0.0
    %824 = vmatprep.subr.mxu0 0.0
    %825 = vmatpush1.xpose.msra.mxu0 0.0
    %826 = vmatprep.subr.mxu0 0.0
    %827 = vmatpush1.xpose.msra.mxu0 0.0
    %828 = vmatprep.subr.mxu0 0.0
    %829 = vmatpush1.xpose.msra.mxu0 0.0
    %830 = vmatprep.subr.mxu0 0.0
    %831 = vmatpush1.xpose.msra.mxu0 0.0
    %832 = vmatprep.subr.mxu0 0.0
    %833 = vmatpush1.xpose.msra.mxu0 0.0
    %834 = vmatprep.subr.mxu0 0.0
    %835 = vmatpush1.xpose.msra.mxu0 0.0
    %836 = vmatprep.subr.mxu0 0.0
    %837 = vmatpush1.xpose.msra.mxu0 0.0
    %838 = vmatprep.subr.mxu0 0.0
    %839 = vmatpush1.xpose.msra.mxu0 0.0
    %840 = vmatprep.subr.mxu0 0.0
    %841 = vmatpush1.xpose.msra.mxu0 0.0
    %842 = vmatprep.subr.mxu0 0.0
    %843 = vmatpush1.xpose.msra.mxu0 0.0
    %844 = vmatprep.subr.mxu0 0.0
    %845 = vmatpush1.xpose.msra.mxu0 0.0
    %846 = vmatprep.mubr.f32.mxu0 0.0
    %847 = vmatmul.mubr.f32.gmra.mrb[0].mxu0 %v778
    %v848 = vpop.f32.mrb[0].mxu0
    %v849 = vadd.f32 0.0, %v848
    %v850 = vpop.f32.mrb[0].mxu0
    %851 = vdwg.mxu0
    %v852 = vsel %vm374, %v771, -inf
    %853 = vmax.xlane.f32.xlu0 %v852
    %v854 = vpop.xlane.xlu0 %853
    %v855 = vsel %vm374, %v849, -inf
    %856 = vmax.xlane.f32.xlu0 %v855
    %v857 = vpop.xlane.xlu0 %856
    %v858 = vsub.f32 %v771, %v854
    %v859 = vsub.f32 %v849, %v857
    %v860 = vmul.f32 %v858, 1.442695
    %v861 = vpow.pop %v860
    %v862 = vmul.f32 %v859, 1.442695
    %v863 = vpow.pop %v862
    %v864 = vsel %vm374, %v861, 0.0
    %865 = vadd.xlane.f32.xlu0 %v864
    %v866 = vpop.xlane.xlu0 %865
    %v867 = vsel %vm374, %v863, 0.0
    %868 = vadd.xlane.f32.xlu0 %v867
    %v869 = vpop.xlane.xlu0 %868
    %v870 = vrcp.pop %v866
    %v871 = vrcp.pop %v869
    %v872 = vmul.f32 %v861, %v870
    %v873 = vmul.f32 %v863, %v871
    %875 = vrot.lane.b32.xlu0 %v361, 120
    %v876 = vpop.permute.xlu0 %875
    %v879 = vsel %vm374, %v872, 0
    %881 = vmatprep.subr.mxu0 0.0
    %882 = vmatpush1.msra.mxu0 %v876
    %883 = vmatprep.subr.mxu0 0.0
    %884 = vmatpush1.msra.mxu0 0.0
    %885 = vmatprep.subr.mxu0 0.0
    %886 = vmatpush1.msra.mxu0 0.0
    %887 = vmatprep.subr.mxu0 0.0
    %888 = vmatpush1.msra.mxu0 0.0
    %889 = vmatprep.subr.mxu0 0.0
    %890 = vmatpush1.msra.mxu0 0.0
    %891 = vmatprep.subr.mxu0 0.0
    %892 = vmatpush1.msra.mxu0 0.0
    %893 = vmatprep.subr.mxu0 0.0
    %894 = vmatpush1.msra.mxu0 0.0
    %895 = vmatprep.subr.mxu0 0.0
    %896 = vmatpush1.msra.mxu0 0.0
    %897 = vmatprep.subr.mxu0 0.0
    %898 = vmatpush1.msra.mxu0 0.0
    %899 = vmatprep.subr.mxu0 0.0
    %900 = vmatpush1.msra.mxu0 0.0
    %901 = vmatprep.subr.mxu0 0.0
    %902 = vmatpush1.msra.mxu0 0.0
    %903 = vmatprep.subr.mxu0 0.0
    %904 = vmatpush1.msra.mxu0 0.0
    %905 = vmatprep.subr.mxu0 0.0
    %906 = vmatpush1.msra.mxu0 0.0
    %907 = vmatprep.subr.mxu0 0.0
    %908 = vmatpush1.msra.mxu0 0.0
    %909 = vmatprep.subr.mxu0 0.0
    %910 = vmatpush1.msra.mxu0 0.0
    %911 = vmatprep.subr.mxu0 0.0
    %912 = vmatpush1.msra.mxu0 0.0
    %913 = vmatprep.subr.mxu0 0.0
    %914 = vmatpush1.msra.mxu0 0.0
    %915 = vmatprep.subr.mxu0 0.0
    %916 = vmatpush1.msra.mxu0 0.0
    %917 = vmatprep.subr.mxu0 0.0
    %918 = vmatpush1.msra.mxu0 0.0
    %919 = vmatprep.subr.mxu0 0.0
    %920 = vmatpush1.msra.mxu0 0.0
    %921 = vmatprep.subr.mxu0 0.0
    %922 = vmatpush1.msra.mxu0 0.0
    %923 = vmatprep.subr.mxu0 0.0
    %924 = vmatpush1.msra.mxu0 0.0
    %925 = vmatprep.subr.mxu0 0.0
    %926 = vmatpush1.msra.mxu0 0.0
    %927 = vmatprep.subr.mxu0 0.0
    %928 = vmatpush1.msra.mxu0 0.0
    %929 = vmatprep.subr.mxu0 0.0
    %930 = vmatpush1.msra.mxu0 0.0
    %931 = vmatprep.subr.mxu0 0.0
    %932 = vmatpush1.msra.mxu0 0.0
    %933 = vmatprep.subr.mxu0 0.0
    %934 = vmatpush1.msra.mxu0 0.0
    %935 = vmatprep.subr.mxu0 0.0
    %936 = vmatpush1.msra.mxu0 0.0
    %937 = vmatprep.subr.mxu0 0.0
    %938 = vmatpush1.msra.mxu0 0.0
    %939 = vmatprep.subr.mxu0 0.0
    %940 = vmatpush1.msra.mxu0 0.0
    %941 = vmatprep.subr.mxu0 0.0
    %942 = vmatpush1.msra.mxu0 0.0
    %943 = vmatprep.subr.mxu0 0.0
    %944 = vmatpush1.msra.mxu0 0.0
    %945 = vmatprep.mubr.f32.mxu0 0.0
    %946 = vmatmul.mubr.f32.gmra.mrb[0].mxu0 %v879
    %v947 = vpop.f32.mrb[0].mxu0
    %v948 = vadd.f32 0.0, %v947
    %v949 = vpop.f32.mrb[0].mxu0
    %950 = vdwg.mxu0
    %952 = vrot.lane.b32.xlu0 %v366, 120
    %v953 = vpop.permute.xlu0 %952
    %v956 = vsel %vm374, %v873, 0
    %958 = vmatprep.subr.mxu0 0.0
    %959 = vmatpush1.msra.mxu0 %v953
    %960 = vmatprep.subr.mxu0 0.0
    %961 = vmatpush1.msra.mxu0 0.0
    %962 = vmatprep.subr.mxu0 0.0
    %963 = vmatpush1.msra.mxu0 0.0
    %964 = vmatprep.subr.mxu0 0.0
    %965 = vmatpush1.msra.mxu0 0.0
    %966 = vmatprep.subr.mxu0 0.0
    %967 = vmatpush1.msra.mxu0 0.0
    %968 = vmatprep.subr.mxu0 0.0
    %969 = vmatpush1.msra.mxu0 0.0
    %970 = vmatprep.subr.mxu0 0.0
    %971 = vmatpush1.msra.mxu0 0.0
    %972 = vmatprep.subr.mxu0 0.0
    %973 = vmatpush1.msra.mxu0 0.0
    %974 = vmatprep.subr.mxu0 0.0
    %975 = vmatpush1.msra.mxu0 0.0
    %976 = vmatprep.subr.mxu0 0.0
    %977 = vmatpush1.msra.mxu0 0.0
    %978 = vmatprep.subr.mxu0 0.0
    %979 = vmatpush1.msra.mxu0 0.0
    %980 = vmatprep.subr.mxu0 0.0
    %981 = vmatpush1.msra.mxu0 0.0
    %982 = vmatprep.subr.mxu0 0.0
    %983 = vmatpush1.msra.mxu0 0.0
    %984 = vmatprep.subr.mxu0 0.0
    %985 = vmatpush1.msra.mxu0 0.0
    %986 = vmatprep.subr.mxu0 0.0
    %987 = vmatpush1.msra.mxu0 0.0
    %988 = vmatprep.subr.mxu0 0.0
    %989 = vmatpush1.msra.mxu0 0.0
    %990 = vmatprep.subr.mxu0 0.0
    %991 = vmatpush1.msra.mxu0 0.0
    %992 = vmatprep.subr.mxu0 0.0
    %993 = vmatpush1.msra.mxu0 0.0
    %994 = vmatprep.subr.mxu0 0.0
    %995 = vmatpush1.msra.mxu0 0.0
    %996 = vmatprep.subr.mxu0 0.0
    %997 = vmatpush1.msra.mxu0 0.0
    %998 = vmatprep.subr.mxu0 0.0
    %999 = vmatpush1.msra.mxu0 0.0
    %1000 = vmatprep.subr.mxu0 0.0
    %1001 = vmatpush1.msra.mxu0 0.0
    %1002 = vmatprep.subr.mxu0 0.0
    %1003 = vmatpush1.msra.mxu0 0.0
    %1004 = vmatprep.subr.mxu0 0.0
    %1005 = vmatpush1.msra.mxu0 0.0
    %1006 = vmatprep.subr.mxu0 0.0
    %1007 = vmatpush1.msra.mxu0 0.0
    %1008 = vmatprep.subr.mxu0 0.0
    %1009 = vmatpush1.msra.mxu0 0.0
    %1010 = vmatprep.subr.mxu0 0.0
    %1011 = vmatpush1.msra.mxu0 0.0
    %1012 = vmatprep.subr.mxu0 0.0
    %1013 = vmatpush1.msra.mxu0 0.0
    %1014 = vmatprep.subr.mxu0 0.0
    %1015 = vmatpush1.msra.mxu0 0.0
    %1016 = vmatprep.subr.mxu0 0.0
    %1017 = vmatpush1.msra.mxu0 0.0
    %1018 = vmatprep.subr.mxu0 0.0
    %1019 = vmatpush1.msra.mxu0 0.0
    %1020 = vmatprep.subr.mxu0 0.0
    %1021 = vmatpush1.msra.mxu0 0.0
    %1022 = vmatprep.mubr.f32.mxu0 0.0
    %1023 = vmatmul.mubr.f32.gmra.mrb[0].mxu0 %v956
    %v1024 = vpop.f32.mrb[0].mxu0
    %v1025 = vadd.f32 0.0, %v1024
    %v1026 = vpop.f32.mrb[0].mxu0
    %1027 = vdwg.mxu0
    %1028 = vrot.lane.b32.xlu0 %v369, 112
    %v1029 = vpop.permute.xlu0 %1028
    %1030 = vrot.lane.b32.xlu0 %v280, 80
    %v1031 = vpop.permute.xlu0 %1030
    %v1032 = vsel %vm374, %v1029, 0
    %v1034 = vsel %vm374, %v1031, 0
    %1036 = vmatprep.subr.mxu0 0.0
    %1037 = vmatpush1.xpose.msra.mxu0 %v1034
    %1038 = vmatprep.subr.mxu0 0.0
    %1039 = vmatpush1.xpose.msra.mxu0 0.0
    %1040 = vmatprep.subr.mxu0 0.0
    %1041 = vmatpush1.xpose.msra.mxu0 0.0
    %1042 = vmatprep.subr.mxu0 0.0
    %1043 = vmatpush1.xpose.msra.mxu0 0.0
    %1044 = vmatprep.subr.mxu0 0.0
    %1045 = vmatpush1.xpose.msra.mxu0 0.0
    %1046 = vmatprep.subr.mxu0 0.0
    %1047 = vmatpush1.xpose.msra.mxu0 0.0
    %1048 = vmatprep.subr.mxu0 0.0
    %1049 = vmatpush1.xpose.msra.mxu0 0.0
    %1050 = vmatprep.subr.mxu0 0.0
    %1051 = vmatpush1.xpose.msra.mxu0 0.0
    %1052 = vmatprep.subr.mxu0 0.0
    %1053 = vmatpush1.xpose.msra.mxu0 0.0
    %1054 = vmatprep.subr.mxu0 0.0
    %1055 = vmatpush1.xpose.msra.mxu0 0.0
    %1056 = vmatprep.subr.mxu0 0.0
    %1057 = vmatpush1.xpose.msra.mxu0 0.0
    %1058 = vmatprep.subr.mxu0 0.0
    %1059 = vmatpush1.xpose.msra.mxu0 0.0
    %1060 = vmatprep.subr.mxu0 0.0
    %1061 = vmatpush1.xpose.msra.mxu0 0.0
    %1062 = vmatprep.subr.mxu0 0.0
    %1063 = vmatpush1.xpose.msra.mxu0 0.0
    %1064 = vmatprep.subr.mxu0 0.0
    %1065 = vmatpush1.xpose.msra.mxu0 0.0
    %1066 = vmatprep.subr.mxu0 0.0
    %1067 = vmatpush1.xpose.msra.mxu0 0.0
    %1068 = vmatprep.subr.mxu0 0.0
    %1069 = vmatpush1.xpose.msra.mxu0 0.0
    %1070 = vmatprep.subr.mxu0 0.0
    %1071 = vmatpush1.xpose.msra.mxu0 0.0
    %1072 = vmatprep.subr.mxu0 0.0
    %1073 = vmatpush1.xpose.msra.mxu0 0.0
    %1074 = vmatprep.subr.mxu0 0.0
    %1075 = vmatpush1.xpose.msra.mxu0 0.0
    %1076 = vmatprep.subr.mxu0 0.0
    %1077 = vmatpush1.xpose.msra.mxu0 0.0
    %1078 = vmatprep.subr.mxu0 0.0
    %1079 = vmatpush1.xpose.msra.mxu0 0.0
    %1080 = vmatprep.subr.mxu0 0.0
    %1081 = vmatpush1.xpose.msra.mxu0 0.0
    %1082 = vmatprep.subr.mxu0 0.0
    %1083 = vmatpush1.xpose.msra.mxu0 0.0
    %1084 = vmatprep.subr.mxu0 0.0
    %1085 = vmatpush1.xpose.msra.mxu0 0.0
    %1086 = vmatprep.subr.mxu0 0.0
    %1087 = vmatpush1.xpose.msra.mxu0 0.0
    %1088 = vmatprep.subr.mxu0 0.0
    %1089 = vmatpush1.xpose.msra.mxu0 0.0
    %1090 = vmatprep.subr.mxu0 0.0
    %1091 = vmatpush1.xpose.msra.mxu0 0.0
    %1092 = vmatprep.subr.mxu0 0.0
    %1093 = vmatpush1.xpose.msra.mxu0 0.0
    %1094 = vmatprep.subr.mxu0 0.0
    %1095 = vmatpush1.xpose.msra.mxu0 0.0
    %1096 = vmatprep.subr.mxu0 0.0
    %1097 = vmatpush1.xpose.msra.mxu0 0.0
    %1098 = vmatprep.subr.mxu0 0.0
    %1099 = vmatpush1.xpose.msra.mxu0 0.0
    %1100 = vmatprep.mubr.f32.mxu0 0.0
    %1101 = vmatmul.mubr.f32.gmra.mrb[0].mxu0 %v1032
    %v1102 = vpop.f32.mrb[0].mxu0
    %v1103 = vadd.f32 0.0, %v1102
    %v1104 = vpop.f32.mrb[0].mxu0
    %1105 = vdwg.mxu0
    %1106 = vrot.lane.b32.xlu0 %v370, 112
    %v1107 = vpop.permute.xlu0 %1106
    %1108 = vrot.lane.b32.xlu0 %v281, 80
    %v1109 = vpop.permute.xlu0 %1108
    %v1110 = vsel %vm374, %v1107, 0
    %v1112 = vsel %vm374, %v1109, 0
    %1114 = vmatprep.subr.mxu0 0.0
    %1115 = vmatpush1.xpose.msra.mxu0 %v1112
    %1116 = vmatprep.subr.mxu0 0.0
    %1117 = vmatpush1.xpose.msra.mxu0 0.0
    %1118 = vmatprep.subr.mxu0 0.0
    %1119 = vmatpush1.xpose.msra.mxu0 0.0
    %1120 = vmatprep.subr.mxu0 0.0
    %1121 = vmatpush1.xpose.msra.mxu0 0.0
    %1122 = vmatprep.subr.mxu0 0.0
    %1123 = vmatpush1.xpose.msra.mxu0 0.0
    %1124 = vmatprep.subr.mxu0 0.0
    %1125 = vmatpush1.xpose.msra.mxu0 0.0
    %1126 = vmatprep.subr.mxu0 0.0
    %1127 = vmatpush1.xpose.msra.mxu0 0.0
    %1128 = vmatprep.subr.mxu0 0.0
    %1129 = vmatpush1.xpose.msra.mxu0 0.0
    %1130 = vmatprep.subr.mxu0 0.0
    %1131 = vmatpush1.xpose.msra.mxu0 0.0
    %1132 = vmatprep.subr.mxu0 0.0
    %1133 = vmatpush1.xpose.msra.mxu0 0.0
    %1134 = vmatprep.subr.mxu0 0.0
    %1135 = vmatpush1.xpose.msra.mxu0 0.0
    %1136 = vmatprep.subr.mxu0 0.0
    %1137 = vmatpush1.xpose.msra.mxu0 0.0
    %1138 = vmatprep.subr.mxu0 0.0
    %1139 = vmatpush1.xpose.msra.mxu0 0.0
    %1140 = vmatprep.subr.mxu0 0.0
    %1141 = vmatpush1.xpose.msra.mxu0 0.0
    %1142 = vmatprep.subr.mxu0 0.0
    %1143 = vmatpush1.xpose.msra.mxu0 0.0
    %1144 = vmatprep.subr.mxu0 0.0
    %1145 = vmatpush1.xpose.msra.mxu0 0.0
    %1146 = vmatprep.subr.mxu0 0.0
    %1147 = vmatpush1.xpose.msra.mxu0 0.0
    %1148 = vmatprep.subr.mxu0 0.0
    %1149 = vmatpush1.xpose.msra.mxu0 0.0
    %1150 = vmatprep.subr.mxu0 0.0
    %1151 = vmatpush1.xpose.msra.mxu0 0.0
    %1152 = vmatprep.subr.mxu0 0.0
    %1153 = vmatpush1.xpose.msra.mxu0 0.0
    %1154 = vmatprep.subr.mxu0 0.0
    %1155 = vmatpush1.xpose.msra.mxu0 0.0
    %1156 = vmatprep.subr.mxu0 0.0
    %1157 = vmatpush1.xpose.msra.mxu0 0.0
    %1158 = vmatprep.subr.mxu0 0.0
    %1159 = vmatpush1.xpose.msra.mxu0 0.0
    %1160 = vmatprep.subr.mxu0 0.0
    %1161 = vmatpush1.xpose.msra.mxu0 0.0
    %1162 = vmatprep.subr.mxu0 0.0
    %1163 = vmatpush1.xpose.msra.mxu0 0.0
    %1164 = vmatprep.subr.mxu0 0.0
    %1165 = vmatpush1.xpose.msra.mxu0 0.0
    %1166 = vmatprep.subr.mxu0 0.0
    %1167 = vmatpush1.xpose.msra.mxu0 0.0
    %1168 = vmatprep.subr.mxu0 0.0
    %1169 = vmatpush1.xpose.msra.mxu0 0.0
    %1170 = vmatprep.subr.mxu0 0.0
    %1171 = vmatpush1.xpose.msra.mxu0 0.0
    %1172 = vmatprep.subr.mxu0 0.0
    %1173 = vmatpush1.xpose.msra.mxu0 0.0
    %1174 = vmatprep.subr.mxu0 0.0
    %1175 = vmatpush1.xpose.msra.mxu0 0.0
    %1176 = vmatprep.subr.mxu0 0.0
    %1177 = vmatpush1.xpose.msra.mxu0 0.0
    %1178 = vmatprep.mubr.f32.mxu0 0.0
    %1179 = vmatmul.mubr.f32.gmra.mrb[0].mxu0 %v1110
    %v1180 = vpop.f32.mrb[0].mxu0
    %v1181 = vadd.f32 0.0, %v1180
    %v1182 = vpop.f32.mrb[0].mxu0
    %1183 = vdwg.mxu0
    %v1184 = vsel %vm374, %v1103, -inf
    %1185 = vmax.xlane.f32.xlu0 %v1184
    %v1186 = vpop.xlane.xlu0 %1185
    %v1187 = vsel %vm374, %v1181, -inf
    %1188 = vmax.xlane.f32.xlu0 %v1187
    %v1189 = vpop.xlane.xlu0 %1188
    %v1190 = vsub.f32 %v1103, %v1186
    %v1191 = vsub.f32 %v1181, %v1189
    %v1192 = vmul.f32 %v1190, 1.442695
    %v1193 = vpow.pop %v1192
    %v1194 = vmul.f32 %v1191, 1.442695
    %v1195 = vpow.pop %v1194
    %v1196 = vsel %vm374, %v1193, 0.0
    %1197 = vadd.xlane.f32.xlu0 %v1196
    %v1198 = vpop.xlane.xlu0 %1197
    %v1199 = vsel %vm374, %v1195, 0.0
    %1200 = vadd.xlane.f32.xlu0 %v1199
    %v1201 = vpop.xlane.xlu0 %1200
    %v1202 = vrcp.pop %v1198
    %v1203 = vrcp.pop %v1201
    %v1204 = vmul.f32 %v1193, %v1202
    %v1205 = vmul.f32 %v1195, %v1203
    %1206 = vrot.lane.b32.xlu0 %v361, 112
    %v1207 = vpop.permute.xlu0 %1206
    %v1210 = vsel %vm374, %v1204, 0
    %1212 = vmatprep.subr.mxu0 0.0
    %1213 = vmatpush1.msra.mxu0 %v1207
    %1214 = vmatprep.subr.mxu0 0.0
    %1215 = vmatpush1.msra.mxu0 0.0
    %1216 = vmatprep.subr.mxu0 0.0
    %1217 = vmatpush1.msra.mxu0 0.0
    %1218 = vmatprep.subr.mxu0 0.0
    %1219 = vmatpush1.msra.mxu0 0.0
    %1220 = vmatprep.subr.mxu0 0.0
    %1221 = vmatpush1.msra.mxu0 0.0
    %1222 = vmatprep.subr.mxu0 0.0
    %1223 = vmatpush1.msra.mxu0 0.0
    %1224 = vmatprep.subr.mxu0 0.0
    %1225 = vmatpush1.msra.mxu0 0.0
    %1226 = vmatprep.subr.mxu0 0.0
    %1227 = vmatpush1.msra.mxu0 0.0
    %1228 = vmatprep.subr.mxu0 0.0
    %1229 = vmatpush1.msra.mxu0 0.0
    %1230 = vmatprep.subr.mxu0 0.0
    %1231 = vmatpush1.msra.mxu0 0.0
    %1232 = vmatprep.subr.mxu0 0.0
    %1233 = vmatpush1.msra.mxu0 0.0
    %1234 = vmatprep.subr.mxu0 0.0
    %1235 = vmatpush1.msra.mxu0 0.0
    %1236 = vmatprep.subr.mxu0 0.0
    %1237 = vmatpush1.msra.mxu0 0.0
    %1238 = vmatprep.subr.mxu0 0.0
    %1239 = vmatpush1.msra.mxu0 0.0
    %1240 = vmatprep.subr.mxu0 0.0
    %1241 = vmatpush1.msra.mxu0 0.0
    %1242 = vmatprep.subr.mxu0 0.0
    %1243 = vmatpush1.msra.mxu0 0.0
    %1244 = vmatprep.subr.mxu0 0.0
    %1245 = vmatpush1.msra.mxu0 0.0
    %1246 = vmatprep.subr.mxu0 0.0
    %1247 = vmatpush1.msra.mxu0 0.0
    %1248 = vmatprep.subr.mxu0 0.0
    %1249 = vmatpush1.msra.mxu0 0.0
    %1250 = vmatprep.subr.mxu0 0.0
    %1251 = vmatpush1.msra.mxu0 0.0
    %1252 = vmatprep.subr.mxu0 0.0
    %1253 = vmatpush1.msra.mxu0 0.0
    %1254 = vmatprep.subr.mxu0 0.0
    %1255 = vmatpush1.msra.mxu0 0.0
    %1256 = vmatprep.subr.mxu0 0.0
    %1257 = vmatpush1.msra.mxu0 0.0
    %1258 = vmatprep.subr.mxu0 0.0
    %1259 = vmatpush1.msra.mxu0 0.0
    %1260 = vmatprep.subr.mxu0 0.0
    %1261 = vmatpush1.msra.mxu0 0.0
    %1262 = vmatprep.subr.mxu0 0.0
    %1263 = vmatpush1.msra.mxu0 0.0
    %1264 = vmatprep.subr.mxu0 0.0
    %1265 = vmatpush1.msra.mxu0 0.0
    %1266 = vmatprep.subr.mxu0 0.0
    %1267 = vmatpush1.msra.mxu0 0.0
    %1268 = vmatprep.subr.mxu0 0.0
    %1269 = vmatpush1.msra.mxu0 0.0
    %1270 = vmatprep.subr.mxu0 0.0
    %1271 = vmatpush1.msra.mxu0 0.0
    %1272 = vmatprep.subr.mxu0 0.0
    %1273 = vmatpush1.msra.mxu0 0.0
    %1274 = vmatprep.subr.mxu0 0.0
    %1275 = vmatpush1.msra.mxu0 0.0
    %1276 = vmatprep.mubr.f32.mxu0 0.0
    %1277 = vmatmul.mubr.f32.gmra.mrb[0].mxu0 %v1210
    %v1278 = vpop.f32.mrb[0].mxu0
    %v1279 = vadd.f32 0.0, %v1278
    %v1280 = vpop.f32.mrb[0].mxu0
    %1281 = vdwg.mxu0
    %1282 = vrot.lane.b32.xlu0 %v366, 112
    %v1283 = vpop.permute.xlu0 %1282
    %v1286 = vsel %vm374, %v1205, 0
    %1288 = vmatprep.subr.mxu0 0.0
    %1289 = vmatpush1.msra.mxu0 %v1283
    %1290 = vmatprep.subr.mxu0 0.0
    %1291 = vmatpush1.msra.mxu0 0.0
    %1292 = vmatprep.subr.mxu0 0.0
    %1293 = vmatpush1.msra.mxu0 0.0
    %1294 = vmatprep.subr.mxu0 0.0
    %1295 = vmatpush1.msra.mxu0 0.0
    %1296 = vmatprep.subr.mxu0 0.0
    %1297 = vmatpush1.msra.mxu0 0.0
    %1298 = vmatprep.subr.mxu0 0.0
    %1299 = vmatpush1.msra.mxu0 0.0
    %1300 = vmatprep.subr.mxu0 0.0
    %1301 = vmatpush1.msra.mxu0 0.0
    %1302 = vmatprep.subr.mxu0 0.0
    %1303 = vmatpush1.msra.mxu0 0.0
    %1304 = vmatprep.subr.mxu0 0.0
    %1305 = vmatpush1.msra.mxu0 0.0
    %1306 = vmatprep.subr.mxu0 0.0
    %1307 = vmatpush1.msra.mxu0 0.0
    %1308 = vmatprep.subr.mxu0 0.0
    %1309 = vmatpush1.msra.mxu0 0.0
    %1310 = vmatprep.subr.mxu0 0.0
    %1311 = vmatpush1.msra.mxu0 0.0
    %1312 = vmatprep.subr.mxu0 0.0
    %1313 = vmatpush1.msra.mxu0 0.0
    %1314 = vmatprep.subr.mxu0 0.0
    %1315 = vmatpush1.msra.mxu0 0.0
    %1316 = vmatprep.subr.mxu0 0.0
    %1317 = vmatpush1.msra.mxu0 0.0
    %1318 = vmatprep.subr.mxu0 0.0
    %1319 = vmatpush1.msra.mxu0 0.0
    %1320 = vmatprep.subr.mxu0 0.0
    %1321 = vmatpush1.msra.mxu0 0.0
    %1322 = vmatprep.subr.mxu0 0.0
    %1323 = vmatpush1.msra.mxu0 0.0
    %1324 = vmatprep.subr.mxu0 0.0
    %1325 = vmatpush1.msra.mxu0 0.0
    %1326 = vmatprep.subr.mxu0 0.0
    %1327 = vmatpush1.msra.mxu0 0.0
    %1328 = vmatprep.subr.mxu0 0.0
    %1329 = vmatpush1.msra.mxu0 0.0
    %1330 = vmatprep.subr.mxu0 0.0
    %1331 = vmatpush1.msra.mxu0 0.0
    %1332 = vmatprep.subr.mxu0 0.0
    %1333 = vmatpush1.msra.mxu0 0.0
    %1334 = vmatprep.subr.mxu0 0.0
    %1335 = vmatpush1.msra.mxu0 0.0
    %1336 = vmatprep.subr.mxu0 0.0
    %1337 = vmatpush1.msra.mxu0 0.0
    %1338 = vmatprep.subr.mxu0 0.0
    %1339 = vmatpush1.msra.mxu0 0.0
    %1340 = vmatprep.subr.mxu0 0.0
    %1341 = vmatpush1.msra.mxu0 0.0
    %1342 = vmatprep.subr.mxu0 0.0
    %1343 = vmatpush1.msra.mxu0 0.0
    %1344 = vmatprep.subr.mxu0 0.0
    %1345 = vmatpush1.msra.mxu0 0.0
    %1346 = vmatprep.subr.mxu0 0.0
    %1347 = vmatpush1.msra.mxu0 0.0
    %1348 = vmatprep.subr.mxu0 0.0
    %1349 = vmatpush1.msra.mxu0 0.0
    %1350 = vmatprep.subr.mxu0 0.0
    %1351 = vmatpush1.msra.mxu0 0.0
    %1352 = vmatprep.mubr.f32.mxu0 0.0
    %1353 = vmatmul.mubr.f32.gmra.mrb[0].mxu0 %v1286
    %v1354 = vpop.f32.mrb[0].mxu0
    %v1355 = vadd.f32 0.0, %v1354
    %v1356 = vpop.f32.mrb[0].mxu0
    %1357 = vdwg.mxu0
    %1358 = vrot.lane.b32.xlu0 %v369, 104
    %v1359 = vpop.permute.xlu0 %1358
    %1360 = vrot.lane.b32.xlu0 %v280, 72
    %v1361 = vpop.permute.xlu0 %1360
    %v1362 = vsel %vm374, %v1359, 0
    %v1364 = vsel %vm374, %v1361, 0
    %1366 = vmatprep.subr.mxu0 0.0
    %1367 = vmatpush1.xpose.msra.mxu0 %v1364
    %1368 = vmatprep.subr.mxu0 0.0
    %1369 = vmatpush1.xpose.msra.mxu0 0.0
    %1370 = vmatprep.subr.mxu0 0.0
    %1371 = vmatpush1.xpose.msra.mxu0 0.0
    %1372 = vmatprep.subr.mxu0 0.0
    %1373 = vmatpush1.xpose.msra.mxu0 0.0
    %1374 = vmatprep.subr.mxu0 0.0
    %1375 = vmatpush1.xpose.msra.mxu0 0.0
    %1376 = vmatprep.subr.mxu0 0.0
    %1377 = vmatpush1.xpose.msra.mxu0 0.0
    %1378 = vmatprep.subr.mxu0 0.0
    %1379 = vmatpush1.xpose.msra.mxu0 0.0
    %1380 = vmatprep.subr.mxu0 0.0
    %1381 = vmatpush1.xpose.msra.mxu0 0.0
    %1382 = vmatprep.subr.mxu0 0.0
    %1383 = vmatpush1.xpose.msra.mxu0 0.0
    %1384 = vmatprep.subr.mxu0 0.0
    %1385 = vmatpush1.xpose.msra.mxu0 0.0
    %1386 = vmatprep.subr.mxu0 0.0
    %1387 = vmatpush1.xpose.msra.mxu0 0.0
    %1388 = vmatprep.subr.mxu0 0.0
    %1389 = vmatpush1.xpose.msra.mxu0 0.0
    %1390 = vmatprep.subr.mxu0 0.0
    %1391 = vmatpush1.xpose.msra.mxu0 0.0
    %1392 = vmatprep.subr.mxu0 0.0
    %1393 = vmatpush1.xpose.msra.mxu0 0.0
    %1394 = vmatprep.subr.mxu0 0.0
    %1395 = vmatpush1.xpose.msra.mxu0 0.0
    %1396 = vmatprep.subr.mxu0 0.0
    %1397 = vmatpush1.xpose.msra.mxu0 0.0
    %1398 = vmatprep.subr.mxu0 0.0
    %1399 = vmatpush1.xpose.msra.mxu0 0.0
    %1400 = vmatprep.subr.mxu0 0.0
    %1401 = vmatpush1.xpose.msra.mxu0 0.0
    %1402 = vmatprep.subr.mxu0 0.0
    %1403 = vmatpush1.xpose.msra.mxu0 0.0
    %1404 = vmatprep.subr.mxu0 0.0
    %1405 = vmatpush1.xpose.msra.mxu0 0.0
    %1406 = vmatprep.subr.mxu0 0.0
    %1407 = vmatpush1.xpose.msra.mxu0 0.0
    %1408 = vmatprep.subr.mxu0 0.0
    %1409 = vmatpush1.xpose.msra.mxu0 0.0
    %1410 = vmatprep.subr.mxu0 0.0
    %1411 = vmatpush1.xpose.msra.mxu0 0.0
    %1412 = vmatprep.subr.mxu0 0.0
    %1413 = vmatpush1.xpose.msra.mxu0 0.0
    %1414 = vmatprep.subr.mxu0 0.0
    %1415 = vmatpush1.xpose.msra.mxu0 0.0
    %1416 = vmatprep.subr.mxu0 0.0
    %1417 = vmatpush1.xpose.msra.mxu0 0.0
    %1418 = vmatprep.subr.mxu0 0.0
    %1419 = vmatpush1.xpose.msra.mxu0 0.0
    %1420 = vmatprep.subr.mxu0 0.0
    %1421 = vmatpush1.xpose.msra.mxu0 0.0
    %1422 = vmatprep.subr.mxu0 0.0
    %1423 = vmatpush1.xpose.msra.mxu0 0.0
    %1424 = vmatprep.subr.mxu0 0.0
    %1425 = vmatpush1.xpose.msra.mxu0 0.0
    %1426 = vmatprep.subr.mxu0 0.0
    %1427 = vmatpush1.xpose.msra.mxu0 0.0
    %1428 = vmatprep.subr.mxu0 0.0
    %1429 = vmatpush1.xpose.msra.mxu0 0.0
    %1430 = vmatprep.mubr.f32.mxu0 0.0
    %1431 = vmatmul.mubr.f32.gmra.mrb[0].mxu0 %v1362
    %v1432 = vpop.f32.mrb[0].mxu0
    %v1433 = vadd.f32 0.0, %v1432
    %v1434 = vpop.f32.mrb[0].mxu0
    %1435 = vdwg.mxu0
    %1436 = vrot.lane.b32.xlu0 %v370, 104
    %v1437 = vpop.permute.xlu0 %1436
    %1438 = vrot.lane.b32.xlu0 %v281, 72
    %v1439 = vpop.permute.xlu0 %1438
    %v1440 = vsel %vm374, %v1437, 0
    %v1442 = vsel %vm374, %v1439, 0
    %1444 = vmatprep.subr.mxu0 0.0
    %1445 = vmatpush1.xpose.msra.mxu0 %v1442
    %1446 = vmatprep.subr.mxu0 0.0
    %1447 = vmatpush1.xpose.msra.mxu0 0.0
    %1448 = vmatprep.subr.mxu0 0.0
    %1449 = vmatpush1.xpose.msra.mxu0 0.0
    %1450 = vmatprep.subr.mxu0 0.0
    %1451 = vmatpush1.xpose.msra.mxu0 0.0
    %1452 = vmatprep.subr.mxu0 0.0
    %1453 = vmatpush1.xpose.msra.mxu0 0.0
    %1454 = vmatprep.subr.mxu0 0.0
    %1455 = vmatpush1.xpose.msra.mxu0 0.0
    %1456 = vmatprep.subr.mxu0 0.0
    %1457 = vmatpush1.xpose.msra.mxu0 0.0
    %1458 = vmatprep.subr.mxu0 0.0
    %1459 = vmatpush1.xpose.msra.mxu0 0.0
    %1460 = vmatprep.subr.mxu0 0.0
    %1461 = vmatpush1.xpose.msra.mxu0 0.0
    %1462 = vmatprep.subr.mxu0 0.0
    %1463 = vmatpush1.xpose.msra.mxu0 0.0
    %1464 = vmatprep.subr.mxu0 0.0
    %1465 = vmatpush1.xpose.msra.mxu0 0.0
    %1466 = vmatprep.subr.mxu0 0.0
    %1467 = vmatpush1.xpose.msra.mxu0 0.0
    %1468 = vmatprep.subr.mxu0 0.0
    %1469 = vmatpush1.xpose.msra.mxu0 0.0
    %1470 = vmatprep.subr.mxu0 0.0
    %1471 = vmatpush1.xpose.msra.mxu0 0.0
    %1472 = vmatprep.subr.mxu0 0.0
    %1473 = vmatpush1.xpose.msra.mxu0 0.0
    %1474 = vmatprep.subr.mxu0 0.0
    %1475 = vmatpush1.xpose.msra.mxu0 0.0
    %1476 = vmatprep.subr.mxu0 0.0
    %1477 = vmatpush1.xpose.msra.mxu0 0.0
    %1478 = vmatprep.subr.mxu0 0.0
    %1479 = vmatpush1.xpose.msra.mxu0 0.0
    %1480 = vmatprep.subr.mxu0 0.0
    %1481 = vmatpush1.xpose.msra.mxu0 0.0
    %1482 = vmatprep.subr.mxu0 0.0
    %1483 = vmatpush1.xpose.msra.mxu0 0.0
    %1484 = vmatprep.subr.mxu0 0.0
    %1485 = vmatpush1.xpose.msra.mxu0 0.0
    %1486 = vmatprep.subr.mxu0 0.0
    %1487 = vmatpush1.xpose.msra.mxu0 0.0
    %1488 = vmatprep.subr.mxu0 0.0
    %1489 = vmatpush1.xpose.msra.mxu0 0.0
    %1490 = vmatprep.subr.mxu0 0.0
    %1491 = vmatpush1.xpose.msra.mxu0 0.0
    %1492 = vmatprep.subr.mxu0 0.0
    %1493 = vmatpush1.xpose.msra.mxu0 0.0
    %1494 = vmatprep.subr.mxu0 0.0
    %1495 = vmatpush1.xpose.msra.mxu0 0.0
    %1496 = vmatprep.subr.mxu0 0.0
    %1497 = vmatpush1.xpose.msra.mxu0 0.0
    %1498 = vmatprep.subr.mxu0 0.0
    %1499 = vmatpush1.xpose.msra.mxu0 0.0
    %1500 = vmatprep.subr.mxu0 0.0
    %1501 = vmatpush1.xpose.msra.mxu0 0.0
    %1502 = vmatprep.subr.mxu0 0.0
    %1503 = vmatpush1.xpose.msra.mxu0 0.0
    %1504 = vmatprep.subr.mxu0 0.0
    %1505 = vmatpush1.xpose.msra.mxu0 0.0
    %1506 = vmatprep.subr.mxu0 0.0
    %1507 = vmatpush1.xpose.msra.mxu0 0.0
    %1508 = vmatprep.mubr.f32.mxu0 0.0
    %1509 = vmatmul.mubr.f32.gmra.mrb[0].mxu0 %v1440
    %v1510 = vpop.f32.mrb[0].mxu0
    %v1511 = vadd.f32 0.0, %v1510
    %v1512 = vpop.f32.mrb[0].mxu0
    %1513 = vdwg.mxu0
    %v1514 = vsel %vm374, %v1433, -inf
    %1515 = vmax.xlane.f32.xlu0 %v1514
    %v1516 = vpop.xlane.xlu0 %1515
    %v1517 = vsel %vm374, %v1511, -inf
    %1518 = vmax.xlane.f32.xlu0 %v1517
    %v1519 = vpop.xlane.xlu0 %1518
    %v1520 = vsub.f32 %v1433, %v1516
    %v1521 = vsub.f32 %v1511, %v1519
    %v1522 = vmul.f32 %v1520, 1.442695
    %v1523 = vpow.pop %v1522
    %v1524 = vmul.f32 %v1521, 1.442695
    %v1525 = vpow.pop %v1524
    %v1526 = vsel %vm374, %v1523, 0.0
    %1527 = vadd.xlane.f32.xlu0 %v1526
    %v1528 = vpop.xlane.xlu0 %1527
    %v1529 = vsel %vm374, %v1525, 0.0
    %1530 = vadd.xlane.f32.xlu0 %v1529
    %v1531 = vpop.xlane.xlu0 %1530
    %v1532 = vrcp.pop %v1528
    %v1533 = vrcp.pop %v1531
    %v1534 = vmul.f32 %v1523, %v1532
    %v1535 = vmul.f32 %v1525, %v1533
    %1536 = vrot.lane.b32.xlu0 %v361, 104
    %v1537 = vpop.permute.xlu0 %1536
    %v1540 = vsel %vm374, %v1534, 0
    %1542 = vmatprep.subr.mxu0 0.0
    %1543 = vmatpush1.msra.mxu0 %v1537
    %1544 = vmatprep.subr.mxu0 0.0
    %1545 = vmatpush1.msra.mxu0 0.0
    %1546 = vmatprep.subr.mxu0 0.0
    %1547 = vmatpush1.msra.mxu0 0.0
    %1548 = vmatprep.subr.mxu0 0.0
    %1549 = vmatpush1.msra.mxu0 0.0
    %1550 = vmatprep.subr.mxu0 0.0
    %1551 = vmatpush1.msra.mxu0 0.0
    %1552 = vmatprep.subr.mxu0 0.0
    %1553 = vmatpush1.msra.mxu0 0.0
    %1554 = vmatprep.subr.mxu0 0.0
    %1555 = vmatpush1.msra.mxu0 0.0
    %1556 = vmatprep.subr.mxu0 0.0
    %1557 = vmatpush1.msra.mxu0 0.0
    %1558 = vmatprep.subr.mxu0 0.0
    %1559 = vmatpush1.msra.mxu0 0.0
    %1560 = vmatprep.subr.mxu0 0.0
    %1561 = vmatpush1.msra.mxu0 0.0
    %1562 = vmatprep.subr.mxu0 0.0
    %1563 = vmatpush1.msra.mxu0 0.0
    %1564 = vmatprep.subr.mxu0 0.0
    %1565 = vmatpush1.msra.mxu0 0.0
    %1566 = vmatprep.subr.mxu0 0.0
    %1567 = vmatpush1.msra.mxu0 0.0
    %1568 = vmatprep.subr.mxu0 0.0
    %1569 = vmatpush1.msra.mxu0 0.0
    %1570 = vmatprep.subr.mxu0 0.0
    %1571 = vmatpush1.msra.mxu0 0.0
    %1572 = vmatprep.subr.mxu0 0.0
    %1573 = vmatpush1.msra.mxu0 0.0
    %1574 = vmatprep.subr.mxu0 0.0
    %1575 = vmatpush1.msra.mxu0 0.0
    %1576 = vmatprep.subr.mxu0 0.0
    %1577 = vmatpush1.msra.mxu0 0.0
    %1578 = vmatprep.subr.mxu0 0.0
    %1579 = vmatpush1.msra.mxu0 0.0
    %1580 = vmatprep.subr.mxu0 0.0
    %1581 = vmatpush1.msra.mxu0 0.0
    %1582 = vmatprep.subr.mxu0 0.0
    %1583 = vmatpush1.msra.mxu0 0.0
    %1584 = vmatprep.subr.mxu0 0.0
    %1585 = vmatpush1.msra.mxu0 0.0
    %1586 = vmatprep.subr.mxu0 0.0
    %1587 = vmatpush1.msra.mxu0 0.0
    %1588 = vmatprep.subr.mxu0 0.0
    %1589 = vmatpush1.msra.mxu0 0.0
    %1590 = vmatprep.subr.mxu0 0.0
    %1591 = vmatpush1.msra.mxu0 0.0
    %1592 = vmatprep.subr.mxu0 0.0
    %1593 = vmatpush1.msra.mxu0 0.0
    %1594 = vmatprep.subr.mxu0 0.0
    %1595 = vmatpush1.msra.mxu0 0.0
    %1596 = vmatprep.subr.mxu0 0.0
    %1597 = vmatpush1.msra.mxu0 0.0
    %1598 = vmatprep.subr.mxu0 0.0
    %1599 = vmatpush1.msra.mxu0 0.0
    %1600 = vmatprep.subr.mxu0 0.0
    %1601 = vmatpush1.msra.mxu0 0.0
    %1602 = vmatprep.subr.mxu0 0.0
    %1603 = vmatpush1.msra.mxu0 0.0
    %1604 = vmatprep.subr.mxu0 0.0
    %1605 = vmatpush1.msra.mxu0 0.0
    %1606 = vmatprep.mubr.f32.mxu0 0.0
    %1607 = vmatmul.mubr.f32.gmra.mrb[0].mxu0 %v1540
    %v1608 = vpop.f32.mrb[0].mxu0
    %v1609 = vadd.f32 0.0, %v1608
    %v1610 = vpop.f32.mrb[0].mxu0
    %1611 = vdwg.mxu0
    %1612 = vrot.lane.b32.xlu0 %v366, 104
    %v1613 = vpop.permute.xlu0 %1612
    %v1616 = vsel %vm374, %v1535, 0
    %1618 = vmatprep.subr.mxu0 0.0
    %1619 = vmatpush1.msra.mxu0 %v1613
    %1620 = vmatprep.subr.mxu0 0.0
    %1621 = vmatpush1.msra.mxu0 0.0
    %1622 = vmatprep.subr.mxu0 0.0
    %1623 = vmatpush1.msra.mxu0 0.0
    %1624 = vmatprep.subr.mxu0 0.0
    %1625 = vmatpush1.msra.mxu0 0.0
    %1626 = vmatprep.subr.mxu0 0.0
    %1627 = vmatpush1.msra.mxu0 0.0
    %1628 = vmatprep.subr.mxu0 0.0
    %1629 = vmatpush1.msra.mxu0 0.0
    %1630 = vmatprep.subr.mxu0 0.0
    %1631 = vmatpush1.msra.mxu0 0.0
    %1632 = vmatprep.subr.mxu0 0.0
    %1633 = vmatpush1.msra.mxu0 0.0
    %1634 = vmatprep.subr.mxu0 0.0
    %1635 = vmatpush1.msra.mxu0 0.0
    %1636 = vmatprep.subr.mxu0 0.0
    %1637 = vmatpush1.msra.mxu0 0.0
    %1638 = vmatprep.subr.mxu0 0.0
    %1639 = vmatpush1.msra.mxu0 0.0
    %1640 = vmatprep.subr.mxu0 0.0
    %1641 = vmatpush1.msra.mxu0 0.0
    %1642 = vmatprep.subr.mxu0 0.0
    %1643 = vmatpush1.msra.mxu0 0.0
    %1644 = vmatprep.subr.mxu0 0.0
    %1645 = vmatpush1.msra.mxu0 0.0
    %1646 = vmatprep.subr.mxu0 0.0
    %1647 = vmatpush1.msra.mxu0 0.0
    %1648 = vmatprep.subr.mxu0 0.0
    %1649 = vmatpush1.msra.mxu0 0.0
    %1650 = vmatprep.subr.mxu0 0.0
    %1651 = vmatpush1.msra.mxu0 0.0
    %1652 = vmatprep.subr.mxu0 0.0
    %1653 = vmatpush1.msra.mxu0 0.0
    %1654 = vmatprep.subr.mxu0 0.0
    %1655 = vmatpush1.msra.mxu0 0.0
    %1656 = vmatprep.subr.mxu0 0.0
    %1657 = vmatpush1.msra.mxu0 0.0
    %1658 = vmatprep.subr.mxu0 0.0
    %1659 = vmatpush1.msra.mxu0 0.0
    %1660 = vmatprep.subr.mxu0 0.0
    %1661 = vmatpush1.msra.mxu0 0.0
    %1662 = vmatprep.subr.mxu0 0.0
    %1663 = vmatpush1.msra.mxu0 0.0
    %1664 = vmatprep.subr.mxu0 0.0
    %1665 = vmatpush1.msra.mxu0 0.0
    %1666 = vmatprep.subr.mxu0 0.0
    %1667 = vmatpush1.msra.mxu0 0.0
    %1668 = vmatprep.subr.mxu0 0.0
    %1669 = vmatpush1.msra.mxu0 0.0
    %1670 = vmatprep.subr.mxu0 0.0
    %1671 = vmatpush1.msra.mxu0 0.0
    %1672 = vmatprep.subr.mxu0 0.0
    %1673 = vmatpush1.msra.mxu0 0.0
    %1674 = vmatprep.subr.mxu0 0.0
    %1675 = vmatpush1.msra.mxu0 0.0
    %1676 = vmatprep.subr.mxu0 0.0
    %1677 = vmatpush1.msra.mxu0 0.0
    %1678 = vmatprep.subr.mxu0 0.0
    %1679 = vmatpush1.msra.mxu0 0.0
    %1680 = vmatprep.subr.mxu0 0.0
    %1681 = vmatpush1.msra.mxu0 0.0
    %1682 = vmatprep.mubr.f32.mxu0 0.0
    %1683 = vmatmul.mubr.f32.gmra.mrb[0].mxu0 %v1616
    %v1684 = vpop.f32.mrb[0].mxu0
    %v1685 = vadd.f32 0.0, %v1684
    %v1686 = vpop.f32.mrb[0].mxu0
    %1687 = vdwg.mxu0
    %1690 = vrot.lane.b32.xlu0 %v948, 8
    %v1691 = vpop.permute.xlu0 %1690
    %1692 = vrot.lane.b32.xlu0 %v1025, 8
    %v1693 = vpop.permute.xlu0 %1692
    %1698 = vrot.lane.b32.xlu0 %v1279, 16
    %v1699 = vpop.permute.xlu0 %1698
    %1700 = vrot.lane.b32.xlu0 %v1355, 16
    %v1701 = vpop.permute.xlu0 %1700
    %1706 = vrot.lane.b32.xlu0 %v1609, 24
    %v1707 = vpop.permute.xlu0 %1706
    %1708 = vrot.lane.b32.xlu0 %v1685, 24
    %v1709 = vpop.permute.xlu0 %1708
    %v1712 = vsel %vm374, %v620, %v1691
    %v1713 = vsel %vm374, %v693, %v1693
    %vm1714 = vcmask 130048
    %v1715 = vsel %vm1714, %v1712, %v1699
    %v1716 = vsel %vm1714, %v1713, %v1701
    %vm1717 = vcmask 195584
    %v1718 = vsel %vm1717, %v1715, %v1707
    %v1719 = vsel %vm1717, %v1716, %v1709
    %v1720 = vld [vmem:[%s4] sm:$0xff]
    %v1721 = vld [vmem:[%s4 + $0x8] sm:$0xff]
    %v1722 = vld [vmem:[%s4 + $0x10] sm:$0xff]
    %v1723 = vld [vmem:[%s4 + $0x18] sm:$0xff]
    %v1724 = vlaneseq
    %v1725 = vshrl.u32 %v1724, 7
    %v1726 = vsub.s32 3, %v1725
    %v1727 = vrot.slane %v176, %v1726
    %v1729 = vsel %vm184, %v1718, 0
    %v1732 = vsel %vm184, %v1719, 0
    %1734 = vmatprep.subr.mxu0 0.0
    %1735 = vmatpush1.msra.mxu0 %v1720
    %1736 = vmatprep.subr.mxu0 0.0
    %1737 = vmatpush1.msra.mxu0 %v1721
    %1738 = vmatprep.subr.mxu0 0.0
    %1739 = vmatpush1.msra.mxu0 %v1722
    %1740 = vmatprep.subr.mxu0 0.0
    %1741 = vmatpush1.msra.mxu0 %v1723
    %1742 = vmatprep.subr.mxu0 0.0
    %1743 = vmatpush1.msra.mxu0 0.0
    %1744 = vmatprep.subr.mxu0 0.0
    %1745 = vmatpush1.msra.mxu0 0.0
    %1746 = vmatprep.subr.mxu0 0.0
    %1747 = vmatpush1.msra.mxu0 0.0
    %1748 = vmatprep.subr.mxu0 0.0
    %1749 = vmatpush1.msra.mxu0 0.0
    %1750 = vmatprep.subr.mxu0 0.0
    %1751 = vmatpush1.msra.mxu0 0.0
    %1752 = vmatprep.subr.mxu0 0.0
    %1753 = vmatpush1.msra.mxu0 0.0
    %1754 = vmatprep.subr.mxu0 0.0
    %1755 = vmatpush1.msra.mxu0 0.0
    %1756 = vmatprep.subr.mxu0 0.0
    %1757 = vmatpush1.msra.mxu0 0.0
    %1758 = vmatprep.subr.mxu0 0.0
    %1759 = vmatpush1.msra.mxu0 0.0
    %1760 = vmatprep.subr.mxu0 0.0
    %1761 = vmatpush1.msra.mxu0 0.0
    %1762 = vmatprep.subr.mxu0 0.0
    %1763 = vmatpush1.msra.mxu0 0.0
    %1764 = vmatprep.subr.mxu0 0.0
    %1765 = vmatpush1.msra.mxu0 0.0
    %1766 = vmatprep.subr.mxu0 0.0
    %1767 = vmatpush1.msra.mxu0 0.0
    %1768 = vmatprep.subr.mxu0 0.0
    %1769 = vmatpush1.msra.mxu0 0.0
    %1770 = vmatprep.subr.mxu0 0.0
    %1771 = vmatpush1.msra.mxu0 0.0
    %1772 = vmatprep.subr.mxu0 0.0
    %1773 = vmatpush1.msra.mxu0 0.0
    %1774 = vmatprep.subr.mxu0 0.0
    %1775 = vmatpush1.msra.mxu0 0.0
    %1776 = vmatprep.subr.mxu0 0.0
    %1777 = vmatpush1.msra.mxu0 0.0
    %1778 = vmatprep.subr.mxu0 0.0
    %1779 = vmatpush1.msra.mxu0 0.0
    %1780 = vmatprep.subr.mxu0 0.0
    %1781 = vmatpush1.msra.mxu0 0.0
    %1782 = vmatprep.subr.mxu0 0.0
    %1783 = vmatpush1.msra.mxu0 0.0
    %1784 = vmatprep.subr.mxu0 0.0
    %1785 = vmatpush1.msra.mxu0 0.0
    %1786 = vmatprep.subr.mxu0 0.0
    %1787 = vmatpush1.msra.mxu0 0.0
    %1788 = vmatprep.subr.mxu0 0.0
    %1789 = vmatpush1.msra.mxu0 0.0
    %1790 = vmatprep.subr.mxu0 0.0
    %1791 = vmatpush1.msra.mxu0 0.0
    %1792 = vmatprep.subr.mxu0 0.0
    %1793 = vmatpush1.msra.mxu0 0.0
    %1794 = vmatprep.subr.mxu0 0.0
    %1795 = vmatpush1.msra.mxu0 0.0
    %1796 = vmatprep.subr.mxu0 0.0
    %1797 = vmatpush1.msra.mxu0 0.0
    %1798 = vmatprep.mubr.f32.mxu0 0.0
    %1799 = vmatmul.mubr.f32.gmra.mrb[0].mxu0 %v1729
    %v1800 = vpop.f32.mrb[0].mxu0
    %v1801 = vadd.f32 %v1727, %v1800
    %v1802 = vpop.f32.mrb[0].mxu0
    %1803 = vmatprep.mubr.f32.mxu0 0.0
    %1804 = vmatmul.mubr.f32.gmra.mrb[0].mxu0 %v1732
    %v1805 = vpop.f32.mrb[0].mxu0
    %v1806 = vadd.f32 %v1727, %v1805
    %v1807 = vpop.f32.mrb[0].mxu0
    %1808 = vdwg.mxu0
    %v1809 = vadd.f32 %v121, %v1801
    %v1810 = vadd.f32 %v136, %v1806
    %v1811 = vsel %vm184, %v1809, 0.0
    %1812 = vadd.xlane.f32.xlu0 %v1811
    %v1813 = vpop.xlane.xlu0 %1812
    %v1814 = vsel %vm184, %v1810, 0.0
    %1815 = vadd.xlane.f32.xlu0 %v1814
    %v1816 = vpop.xlane.xlu0 %1815
    %v1817 = vrcp.pop 32.0
    %v1818 = vmul.f32 %v1813, %v1817
    %v1819 = vmul.f32 %v1816, %v1817
    %v1820 = vmul.f32 %v1809, %v1809
    %v1821 = vmul.f32 %v1810, %v1810
    %v1822 = vsel %vm184, %v1820, 0.0
    %1823 = vadd.xlane.f32.xlu0 %v1822
    %v1824 = vpop.xlane.xlu0 %1823
    %v1825 = vsel %vm184, %v1821, 0.0
    %1826 = vadd.xlane.f32.xlu0 %v1825
    %v1827 = vpop.xlane.xlu0 %1826
    %v1828 = vmul.f32 %v1824, %v1817
    %v1829 = vmul.f32 %v1827, %v1817
    %v1830 = vmul.f32 %v1818, %v1818
    %v1831 = vmul.f32 %v1819, %v1819
    %v1832 = vsub.f32 %v1828, %v1830
    %v1833 = vsub.f32 %v1829, %v1831
    %v1834 = vmax.f32 %v1832, 0.0
    %v1835 = vmax.f32 %v1833, 0.0
    %v1836 = vsub.f32 %v1809, %v1818
    %v1837 = vsub.f32 %v1810, %v1819
    %v1838 = vadd.f32 %v1834, 1e-05
    %v1839 = vadd.f32 %v1835, 1e-05
    %v1840 = vrsqrt.pop %v1838
    %v1841 = vrsqrt.pop %v1839
    %v1842 = vmul.f32 %v1836, %v1840
    %v1843 = vmul.f32 %v1837, %v1841
    %v1844 = vlaneseq
    %v1845 = vshrl.u32 %v1844, 7
    %v1846 = vsub.s32 5, %v1845
    %v1847 = vrot.slane %v176, %v1846
    %v1848 = vmul.f32 %v1842, %v1847
    %v1849 = vmul.f32 %v1843, %v1847
    %v1850 = vlaneseq
    %v1851 = vshrl.u32 %v1850, 7
    %v1852 = vsub.s32 6, %v1851
    %v1853 = vrot.slane %v176, %v1852
    %v1854 = vadd.f32 %v1848, %v1853
    %v1855 = vadd.f32 %v1849, %v1853
    %v1856 = vld [vmem:[#allocation7] sm:$0xff]
    %v1857 = vld [vmem:[#allocation7 + $0x8] sm:$0xff]
    %v1858 = vld [vmem:[#allocation7 + $0x10] sm:$0xff]
    %v1859 = vld [vmem:[#allocation7 + $0x18] sm:$0xff]
    %v1860 = vld [vmem:[%s6] sm:$0x1]
    %v1862 = vlaneseq
    %v1863 = vshrl.u32 %v1862, 7
    %v1864 = vsub.s32 0, %v1863
    %v1865 = vrot.slane %v1860, %v1864
    %v1868 = vsel %vm184, %v1854, 0
    %v1871 = vsel %vm184, %v1855, 0
    %1873 = vmatprep.subr.mxu0 0.0
    %1874 = vmatpush1.msra.mxu0 %v1856
    %1875 = vmatprep.subr.mxu0 0.0
    %1876 = vmatpush1.msra.mxu0 %v1857
    %1877 = vmatprep.subr.mxu0 0.0
    %1878 = vmatpush1.msra.mxu0 %v1858
    %1879 = vmatprep.subr.mxu0 0.0
    %1880 = vmatpush1.msra.mxu0 %v1859
    %1881 = vmatprep.subr.mxu0 0.0
    %1882 = vmatpush1.msra.mxu0 0.0
    %1883 = vmatprep.subr.mxu0 0.0
    %1884 = vmatpush1.msra.mxu0 0.0
    %1885 = vmatprep.subr.mxu0 0.0
    %1886 = vmatpush1.msra.mxu0 0.0
    %1887 = vmatprep.subr.mxu0 0.0
    %1888 = vmatpush1.msra.mxu0 0.0
    %1889 = vmatprep.subr.mxu0 0.0
    %1890 = vmatpush1.msra.mxu0 0.0
    %1891 = vmatprep.subr.mxu0 0.0
    %1892 = vmatpush1.msra.mxu0 0.0
    %1893 = vmatprep.subr.mxu0 0.0
    %1894 = vmatpush1.msra.mxu0 0.0
    %1895 = vmatprep.subr.mxu0 0.0
    %1896 = vmatpush1.msra.mxu0 0.0
    %1897 = vmatprep.subr.mxu0 0.0
    %1898 = vmatpush1.msra.mxu0 0.0
    %1899 = vmatprep.subr.mxu0 0.0
    %1900 = vmatpush1.msra.mxu0 0.0
    %1901 = vmatprep.subr.mxu0 0.0
    %1902 = vmatpush1.msra.mxu0 0.0
    %1903 = vmatprep.subr.mxu0 0.0
    %1904 = vmatpush1.msra.mxu0 0.0
    %1905 = vmatprep.subr.mxu0 0.0
    %1906 = vmatpush1.msra.mxu0 0.0
    %1907 = vmatprep.subr.mxu0 0.0
    %1908 = vmatpush1.msra.mxu0 0.0
    %1909 = vmatprep.subr.mxu0 0.0
    %1910 = vmatpush1.msra.mxu0 0.0
    %1911 = vmatprep.subr.mxu0 0.0
    %1912 = vmatpush1.msra.mxu0 0.0
    %1913 = vmatprep.subr.mxu0 0.0
    %1914 = vmatpush1.msra.mxu0 0.0
    %1915 = vmatprep.subr.mxu0 0.0
    %1916 = vmatpush1.msra.mxu0 0.0
    %1917 = vmatprep.subr.mxu0 0.0
    %1918 = vmatpush1.msra.mxu0 0.0
    %1919 = vmatprep.subr.mxu0 0.0
    %1920 = vmatpush1.msra.mxu0 0.0
    %1921 = vmatprep.subr.mxu0 0.0
    %1922 = vmatpush1.msra.mxu0 0.0
    %1923 = vmatprep.subr.mxu0 0.0
    %1924 = vmatpush1.msra.mxu0 0.0
    %1925 = vmatprep.subr.mxu0 0.0
    %1926 = vmatpush1.msra.mxu0 0.0
    %1927 = vmatprep.subr.mxu0 0.0
    %1928 = vmatpush1.msra.mxu0 0.0
    %1929 = vmatprep.subr.mxu0 0.0
    %1930 = vmatpush1.msra.mxu0 0.0
    %1931 = vmatprep.subr.mxu0 0.0
    %1932 = vmatpush1.msra.mxu0 0.0
    %1933 = vmatprep.subr.mxu0 0.0
    %1934 = vmatpush1.msra.mxu0 0.0
    %1935 = vmatprep.subr.mxu0 0.0
    %1936 = vmatpush1.msra.mxu0 0.0
    %1937 = vmatprep.mubr.f32.mxu0 0.0
    %1938 = vmatmul.mubr.f32.gmra.mrb[0].mxu0 %v1868
    %v1939 = vpop.f32.mrb[0].mxu0
    %v1940 = vadd.f32 %v1865, %v1939
    %v1941 = vpop.f32.mrb[0].mxu0
    %1942 = vmatprep.mubr.f32.mxu0 0.0
    %1943 = vmatmul.mubr.f32.gmra.mrb[0].mxu0 %v1871
    %v1944 = vpop.f32.mrb[0].mxu0
    %v1945 = vadd.f32 %v1865, %v1944
    %v1946 = vpop.f32.mrb[0].mxu0
    %1947 = vdwg.mxu0
    %v1948 = vmax.f32 %v1940, 0.0
    %v1949 = vmax.f32 %v1945, 0.0
    %v1950 = vld [vmem:[%s7] sm:$0xff]
    %v1951 = vld [vmem:[%s7 + $0x8] sm:$0xff]
    %v1952 = vld [vmem:[%s7 + $0x10] sm:$0xff]
    %v1953 = vld [vmem:[%s7 + $0x18] sm:$0xff]
    %v1954 = vld [vmem:[%s7 + $0x20] sm:$0xff]
    %v1955 = vld [vmem:[%s7 + $0x28] sm:$0xff]
    %v1956 = vld [vmem:[%s7 + $0x30] sm:$0xff]
    %v1957 = vld [vmem:[%s7 + $0x38] sm:$0xff]
    %v1958 = vlaneseq
    %v1959 = vshrl.u32 %v1958, 7
    %v1960 = vsub.s32 4, %v1959
    %v1961 = vrot.slane %v176, %v1960
    %vm1962 = vcmask 523264
    %v1964 = vsel %vm1962, %v1948, 0
    %v1967 = vsel %vm1962, %v1949, 0
    %1969 = vmatprep.subr.mxu0 0.0
    %1970 = vmatpush1.msra.mxu0 %v1950
    %1971 = vmatprep.subr.mxu0 0.0
    %1972 = vmatpush1.msra.mxu0 %v1951
    %1973 = vmatprep.subr.mxu0 0.0
    %1974 = vmatpush1.msra.mxu0 %v1952
    %1975 = vmatprep.subr.mxu0 0.0
    %1976 = vmatpush1.msra.mxu0 %v1953
    %1977 = vmatprep.subr.mxu0 0.0
    %1978 = vmatpush1.msra.mxu0 %v1954
    %1979 = vmatprep.subr.mxu0 0.0
    %1980 = vmatpush1.msra.mxu0 %v1955
    %1981 = vmatprep.subr.mxu0 0.0
    %1982 = vmatpush1.msra.mxu0 %v1956
    %1983 = vmatprep.subr.mxu0 0.0
    %1984 = vmatpush1.msra.mxu0 %v1957
    %1985 = vmatprep.subr.mxu0 0.0
    %1986 = vmatpush1.msra.mxu0 0.0
    %1987 = vmatprep.subr.mxu0 0.0
    %1988 = vmatpush1.msra.mxu0 0.0
    %1989 = vmatprep.subr.mxu0 0.0
    %1990 = vmatpush1.msra.mxu0 0.0
    %1991 = vmatprep.subr.mxu0 0.0
    %1992 = vmatpush1.msra.mxu0 0.0
    %1993 = vmatprep.subr.mxu0 0.0
    %1994 = vmatpush1.msra.mxu0 0.0
    %1995 = vmatprep.subr.mxu0 0.0
    %1996 = vmatpush1.msra.mxu0 0.0
    %1997 = vmatprep.subr.mxu0 0.0
    %1998 = vmatpush1.msra.mxu0 0.0
    %1999 = vmatprep.subr.mxu0 0.0
    %2000 = vmatpush1.msra.mxu0 0.0
    %2001 = vmatprep.subr.mxu0 0.0
    %2002 = vmatpush1.msra.mxu0 0.0
    %2003 = vmatprep.subr.mxu0 0.0
    %2004 = vmatpush1.msra.mxu0 0.0
    %2005 = vmatprep.subr.mxu0 0.0
    %2006 = vmatpush1.msra.mxu0 0.0
    %2007 = vmatprep.subr.mxu0 0.0
    %2008 = vmatpush1.msra.mxu0 0.0
    %2009 = vmatprep.subr.mxu0 0.0
    %2010 = vmatpush1.msra.mxu0 0.0
    %2011 = vmatprep.subr.mxu0 0.0
    %2012 = vmatpush1.msra.mxu0 0.0
    %2013 = vmatprep.subr.mxu0 0.0
    %2014 = vmatpush1.msra.mxu0 0.0
    %2015 = vmatprep.subr.mxu0 0.0
    %2016 = vmatpush1.msra.mxu0 0.0
    %2017 = vmatprep.subr.mxu0 0.0
    %2018 = vmatpush1.msra.mxu0 0.0
    %2019 = vmatprep.subr.mxu0 0.0
    %2020 = vmatpush1.msra.mxu0 0.0
    %2021 = vmatprep.subr.mxu0 0.0
    %2022 = vmatpush1.msra.mxu0 0.0
    %2023 = vmatprep.subr.mxu0 0.0
    %2024 = vmatpush1.msra.mxu0 0.0
    %2025 = vmatprep.subr.mxu0 0.0
    %2026 = vmatpush1.msra.mxu0 0.0
    %2027 = vmatprep.subr.mxu0 0.0
    %2028 = vmatpush1.msra.mxu0 0.0
    %2029 = vmatprep.subr.mxu0 0.0
    %2030 = vmatpush1.msra.mxu0 0.0
    %2031 = vmatprep.subr.mxu0 0.0
    %2032 = vmatpush1.msra.mxu0 0.0
    %2033 = vmatprep.mubr.f32.mxu0 0.0
    %2034 = vmatmul.mubr.f32.gmra.mrb[0].mxu0 %v1964
    %v2035 = vpop.f32.mrb[0].mxu0
    %v2036 = vadd.f32 %v1961, %v2035
    %v2037 = vpop.f32.mrb[0].mxu0
    %2038 = vmatprep.mubr.f32.mxu0 0.0
    %2039 = vmatmul.mubr.f32.gmra.mrb[0].mxu0 %v1967
    %v2040 = vpop.f32.mrb[0].mxu0
    %v2041 = vadd.f32 %v1961, %v2040
    %v2042 = vpop.f32.mrb[0].mxu0
    %2043 = vdwg.mxu0
    %v2044 = vadd.f32 %v1854, %v2036
    %v2045 = vadd.f32 %v1855, %v2041
    %v2046 = vsel %vm184, %v2044, 0.0
    %2047 = vadd.xlane.f32.xlu0 %v2046
    %v2048 = vpop.xlane.xlu0 %2047
    %v2049 = vsel %vm184, %v2045, 0.0
    %2050 = vadd.xlane.f32.xlu0 %v2049
    %v2051 = vpop.xlane.xlu0 %2050
    %v2052 = vmul.f32 %v2048, %v1817
    %v2053 = vmul.f32 %v2051, %v1817
    %v2054 = vmul.f32 %v2044, %v2044
    %v2055 = vmul.f32 %v2045, %v2045
    %v2056 = vsel %vm184, %v2054, 0.0
    %2057 = vadd.xlane.f32.xlu0 %v2056
    %v2058 = vpop.xlane.xlu0 %2057
    %v2059 = vsel %vm184, %v2055, 0.0
    %2060 = vadd.xlane.f32.xlu0 %v2059
    %v2061 = vpop.xlane.xlu0 %2060
    %v2062 = vmul.f32 %v2058, %v1817
    %v2063 = vmul.f32 %v2061, %v1817
    %v2064 = vmul.f32 %v2052, %v2052
    %v2065 = vmul.f32 %v2053, %v2053
    %v2066 = vsub.f32 %v2062, %v2064
    %v2067 = vsub.f32 %v2063, %v2065
    %v2068 = vmax.f32 %v2066, 0.0
    %v2069 = vmax.f32 %v2067, 0.0
    %v2070 = vsub.f32 %v2044, %v2052
    %v2071 = vsub.f32 %v2045, %v2053
    %v2072 = vadd.f32 %v2068, 1e-05
    %v2073 = vadd.f32 %v2069, 1e-05
    %v2074 = vrsqrt.pop %v2072
    %v2075 = vrsqrt.pop %v2073
    %v2076 = vmul.f32 %v2070, %v2074
    %v2077 = vmul.f32 %v2071, %v2075
    %v2078 = vlaneseq
    %v2079 = vshrl.u32 %v2078, 7
    %v2080 = vsub.s32 7, %v2079
    %v2081 = vrot.slane %v176, %v2080
    %v2082 = vmul.f32 %v2076, %v2081
    %v2083 = vmul.f32 %v2077, %v2081
    %v2084 = vlaneseq
    %v2085 = vshrl.u32 %v2084, 7
    %v2086 = vsub.s32 0, %v2085
    %v2087 = vrot.slane %v177, %v2086
    %v2088 = vadd.f32 %v2082, %v2087
    %v2089 = vadd.f32 %v2083, %v2087
    %s2090 = scalar_lea.vmem %s8, 16
    %v2091 = vld [vmem:[%s2090] sm:$0xff]
    %v2092 = vld [vmem:[%s2090 + $0x8] sm:$0x1]
    %v2093 = vadd.f32 %v2088, %v159
    %v2094 = vadd.f32 %v2089, %v174
    %s2095 = scalar_lea.vmem %s2, 32
    %v2096 = vld [vmem:[%s2095] sm:$0xff]
    %v2097 = vld [vmem:[%s2095 + $0x8] sm:$0xff]
    %v2098 = vld [vmem:[%s2095 + $0x10] sm:$0xff]
    %v2099 = vld [vmem:[%s2095 + $0x18] sm:$0xff]
    %v2101 = vsel %vm184, %v2093, 0
    %v2104 = vsel %vm184, %v2094, 0
    %2106 = vmatprep.subr.mxu0 0.0
    %2107 = vmatpush1.msra.mxu0 %v2096
    %2108 = vmatprep.subr.mxu0 0.0
    %2109 = vmatpush1.msra.mxu0 %v2097
    %2110 = vmatprep.subr.mxu0 0.0
    %2111 = vmatpush1.msra.mxu0 %v2098
    %2112 = vmatprep.subr.mxu0 0.0
    %2113 = vmatpush1.msra.mxu0 %v2099
    %2114 = vmatprep.subr.mxu0 0.0
    %2115 = vmatpush1.msra.mxu0 0.0
    %2116 = vmatprep.subr.mxu0 0.0
    %2117 = vmatpush1.msra.mxu0 0.0
    %2118 = vmatprep.subr.mxu0 0.0
    %2119 = vmatpush1.msra.mxu0 0.0
    %2120 = vmatprep.subr.mxu0 0.0
    %2121 = vmatpush1.msra.mxu0 0.0
    %2122 = vmatprep.subr.mxu0 0.0
    %2123 = vmatpush1.msra.mxu0 0.0
    %2124 = vmatprep.subr.mxu0 0.0
    %2125 = vmatpush1.msra.mxu0 0.0
    %2126 = vmatprep.subr.mxu0 0.0
    %2127 = vmatpush1.msra.mxu0 0.0
    %2128 = vmatprep.subr.mxu0 0.0
    %2129 = vmatpush1.msra.mxu0 0.0
    %2130 = vmatprep.subr.mxu0 0.0
    %2131 = vmatpush1.msra.mxu0 0.0
    %2132 = vmatprep.subr.mxu0 0.0
    %2133 = vmatpush1.msra.mxu0 0.0
    %2134 = vmatprep.subr.mxu0 0.0
    %2135 = vmatpush1.msra.mxu0 0.0
    %2136 = vmatprep.subr.mxu0 0.0
    %2137 = vmatpush1.msra.mxu0 0.0
    %2138 = vmatprep.subr.mxu0 0.0
    %2139 = vmatpush1.msra.mxu0 0.0
    %2140 = vmatprep.subr.mxu0 0.0
    %2141 = vmatpush1.msra.mxu0 0.0
    %2142 = vmatprep.subr.mxu0 0.0
    %2143 = vmatpush1.msra.mxu0 0.0
    %2144 = vmatprep.subr.mxu0 0.0
    %2145 = vmatpush1.msra.mxu0 0.0
    %2146 = vmatprep.subr.mxu0 0.0
    %2147 = vmatpush1.msra.mxu0 0.0
    %2148 = vmatprep.subr.mxu0 0.0
    %2149 = vmatpush1.msra.mxu0 0.0
    %2150 = vmatprep.subr.mxu0 0.0
    %2151 = vmatpush1.msra.mxu0 0.0
    %2152 = vmatprep.subr.mxu0 0.0
    %2153 = vmatpush1.msra.mxu0 0.0
    %2154 = vmatprep.subr.mxu0 0.0
    %2155 = vmatpush1.msra.mxu0 0.0
    %2156 = vmatprep.subr.mxu0 0.0
    %2157 = vmatpush1.msra.mxu0 0.0
    %2158 = vmatprep.subr.mxu0 0.0
    %2159 = vmatpush1.msra.mxu0 0.0
    %2160 = vmatprep.subr.mxu0 0.0
    %2161 = vmatpush1.msra.mxu0 0.0
    %2162 = vmatprep.subr.mxu0 0.0
    %2163 = vmatpush1.msra.mxu0 0.0
    %2164 = vmatprep.subr.mxu0 0.0
    %2165 = vmatpush1.msra.mxu0 0.0
    %2166 = vmatprep.subr.mxu0 0.0
    %2167 = vmatpush1.msra.mxu0 0.0
    %2168 = vmatprep.subr.mxu0 0.0
    %2169 = vmatpush1.msra.mxu0 0.0
    %2170 = vmatprep.mubr.f32.mxu0 0.0
    %2171 = vmatmul.mubr.f32.gmra.mrb[0].mxu0 %v2101
    %v2172 = vpop.f32.mrb[0].mxu0
    %v2173 = vadd.f32 0.0, %v2172
    %v2174 = vpop.f32.mrb[0].mxu0
    %2175 = vmatprep.mubr.f32.mxu0 0.0
    %2176 = vmatmul.mubr.f32.gmra.mrb[0].mxu0 %v2104
    %v2177 = vpop.f32.mrb[0].mxu0
    %v2178 = vadd.f32 0.0, %v2177
    %v2179 = vpop.f32.mrb[0].mxu0
    %2180 = vdwg.mxu0
    %v2181 = vlaneseq
    %v2182 = vshrl.u32 %v2181, 7
    %v2183 = vsub.s32 0, %v2182
    %v2184 = vrot.slane %v2091, %v2183
    %v2185 = vadd.f32 %v2173, %v2184
    %v2186 = vadd.f32 %v2178, %v2184
    %v2187 = vlaneseq
    %v2188 = vshrl.u32 %v2187, 7
    %v2189 = vsub.s32 1, %v2188
    %v2190 = vrot.slane %v2091, %v2189
    %2192 = vrot.lane.b32.xlu0 %v2190, 32
    %v2193 = vpop.permute.xlu0 %2192
    %v2195 = vadd.f32 %v2173, %v2193
    %v2196 = vadd.f32 %v2178, %v2193
    %s2197 = scalar_lea.vmem %s3, 32
    %v2198 = vld [vmem:[%s2197] sm:$0xff]
    %v2199 = vld [vmem:[%s2197 + $0x8] sm:$0xff]
    %v2200 = vld [vmem:[%s2197 + $0x10] sm:$0xff]
    %v2201 = vld [vmem:[%s2197 + $0x18] sm:$0xff]
    %v2202 = vlaneseq
    %v2203 = vshrl.u32 %v2202, 7
    %v2204 = vsub.s32 2, %v2203
    %v2205 = vrot.slane %v2091, %v2204
    %v2207 = vsel %vm184, %v2088, 0
    %v2210 = vsel %vm184, %v2089, 0
    %2212 = vmatprep.subr.mxu0 0.0
    %2213 = vmatpush1.msra.mxu0 %v2198
    %2214 = vmatprep.subr.mxu0 0.0
    %2215 = vmatpush1.msra.mxu0 %v2199
    %2216 = vmatprep.subr.mxu0 0.0
    %2217 = vmatpush1.msra.mxu0 %v2200
    %2218 = vmatprep.subr.mxu0 0.0
    %2219 = vmatpush1.msra.mxu0 %v2201
    %2220 = vmatprep.subr.mxu0 0.0
    %2221 = vmatpush1.msra.mxu0 0.0
    %2222 = vmatprep.subr.mxu0 0.0
    %2223 = vmatpush1.msra.mxu0 0.0
    %2224 = vmatprep.subr.mxu0 0.0
    %2225 = vmatpush1.msra.mxu0 0.0
    %2226 = vmatprep.subr.mxu0 0.0
    %2227 = vmatpush1.msra.mxu0 0.0
    %2228 = vmatprep.subr.mxu0 0.0
    %2229 = vmatpush1.msra.mxu0 0.0
    %2230 = vmatprep.subr.mxu0 0.0
    %2231 = vmatpush1.msra.mxu0 0.0
    %2232 = vmatprep.subr.mxu0 0.0
    %2233 = vmatpush1.msra.mxu0 0.0
    %2234 = vmatprep.subr.mxu0 0.0
    %2235 = vmatpush1.msra.mxu0 0.0
    %2236 = vmatprep.subr.mxu0 0.0
    %2237 = vmatpush1.msra.mxu0 0.0
    %2238 = vmatprep.subr.mxu0 0.0
    %2239 = vmatpush1.msra.mxu0 0.0
    %2240 = vmatprep.subr.mxu0 0.0
    %2241 = vmatpush1.msra.mxu0 0.0
    %2242 = vmatprep.subr.mxu0 0.0
    %2243 = vmatpush1.msra.mxu0 0.0
    %2244 = vmatprep.subr.mxu0 0.0
    %2245 = vmatpush1.msra.mxu0 0.0
    %2246 = vmatprep.subr.mxu0 0.0
    %2247 = vmatpush1.msra.mxu0 0.0
    %2248 = vmatprep.subr.mxu0 0.0
    %2249 = vmatpush1.msra.mxu0 0.0
    %2250 = vmatprep.subr.mxu0 0.0
    %2251 = vmatpush1.msra.mxu0 0.0
    %2252 = vmatprep.subr.mxu0 0.0
    %2253 = vmatpush1.msra.mxu0 0.0
    %2254 = vmatprep.subr.mxu0 0.0
    %2255 = vmatpush1.msra.mxu0 0.0
    %2256 = vmatprep.subr.mxu0 0.0
    %2257 = vmatpush1.msra.mxu0 0.0
    %2258 = vmatprep.subr.mxu0 0.0
    %2259 = vmatpush1.msra.mxu0 0.0
    %2260 = vmatprep.subr.mxu0 0.0
    %2261 = vmatpush1.msra.mxu0 0.0
    %2262 = vmatprep.subr.mxu0 0.0
    %2263 = vmatpush1.msra.mxu0 0.0
    %2264 = vmatprep.subr.mxu0 0.0
    %2265 = vmatpush1.msra.mxu0 0.0
    %2266 = vmatprep.subr.mxu0 0.0
    %2267 = vmatpush1.msra.mxu0 0.0
    %2268 = vmatprep.subr.mxu0 0.0
    %2269 = vmatpush1.msra.mxu0 0.0
    %2270 = vmatprep.subr.mxu0 0.0
    %2271 = vmatpush1.msra.mxu0 0.0
    %2272 = vmatprep.subr.mxu0 0.0
    %2273 = vmatpush1.msra.mxu0 0.0
    %2274 = vmatprep.subr.mxu0 0.0
    %2275 = vmatpush1.msra.mxu0 0.0
    %2276 = vmatprep.mubr.f32.mxu0 0.0
    %2277 = vmatmul.mubr.f32.gmra.mrb[0].mxu0 %v2207
    %v2278 = vpop.f32.mrb[0].mxu0
    %v2279 = vadd.f32 %v2205, %v2278
    %v2280 = vpop.f32.mrb[0].mxu0
    %2281 = vmatprep.mubr.f32.mxu0 0.0
    %2282 = vmatmul.mubr.f32.gmra.mrb[0].mxu0 %v2210
    %v2283 = vpop.f32.mrb[0].mxu0
    %v2284 = vadd.f32 %v2205, %v2283
    %v2285 = vpop.f32.mrb[0].mxu0
    %2286 = vdwg.mxu0
    %v2287 = vmul.f32 %v2185, 0.35355338
    %v2288 = vmul.f32 %v2186, 0.35355338
    %2290 = vrot.lane.b32.xlu0 %v2195, 96
    %v2291 = vpop.permute.xlu0 %2290
    %v2293 = vsel %vm374, %v2287, 0
    %v2295 = vsel %vm374, %v2291, 0
    %2297 = vmatprep.subr.mxu0 0.0
    %2298 = vmatpush1.xpose.msra.mxu0 %v2295
    %2299 = vmatprep.subr.mxu0 0.0
    %2300 = vmatpush1.xpose.msra.mxu0 0.0
    %2301 = vmatprep.subr.mxu0 0.0
    %2302 = vmatpush1.xpose.msra.mxu0 0.0
    %2303 = vmatprep.subr.mxu0 0.0
    %2304 = vmatpush1.xpose.msra.mxu0 0.0
    %2305 = vmatprep.subr.mxu0 0.0
    %2306 = vmatpush1.xpose.msra.mxu0 0.0
    %2307 = vmatprep.subr.mxu0 0.0
    %2308 = vmatpush1.xpose.msra.mxu0 0.0
    %2309 = vmatprep.subr.mxu0 0.0
    %2310 = vmatpush1.xpose.msra.mxu0 0.0
    %2311 = vmatprep.subr.mxu0 0.0
    %2312 = vmatpush1.xpose.msra.mxu0 0.0
    %2313 = vmatprep.subr.mxu0 0.0
    %2314 = vmatpush1.xpose.msra.mxu0 0.0
    %2315 = vmatprep.subr.mxu0 0.0
    %2316 = vmatpush1.xpose.msra.mxu0 0.0
    %2317 = vmatprep.subr.mxu0 0.0
    %2318 = vmatpush1.xpose.msra.mxu0 0.0
    %2319 = vmatprep.subr.mxu0 0.0
    %2320 = vmatpush1.xpose.msra.mxu0 0.0
    %2321 = vmatprep.subr.mxu0 0.0
    %2322 = vmatpush1.xpose.msra.mxu0 0.0
    %2323 = vmatprep.subr.mxu0 0.0
    %2324 = vmatpush1.xpose.msra.mxu0 0.0
    %2325 = vmatprep.subr.mxu0 0.0
    %2326 = vmatpush1.xpose.msra.mxu0 0.0
    %2327 = vmatprep.subr.mxu0 0.0
    %2328 = vmatpush1.xpose.msra.mxu0 0.0
    %2329 = vmatprep.subr.mxu0 0.0
    %2330 = vmatpush1.xpose.msra.mxu0 0.0
    %2331 = vmatprep.subr.mxu0 0.0
    %2332 = vmatpush1.xpose.msra.mxu0 0.0
    %2333 = vmatprep.subr.mxu0 0.0
    %2334 = vmatpush1.xpose.msra.mxu0 0.0
    %2335 = vmatprep.subr.mxu0 0.0
    %2336 = vmatpush1.xpose.msra.mxu0 0.0
    %2337 = vmatprep.subr.mxu0 0.0
    %2338 = vmatpush1.xpose.msra.mxu0 0.0
    %2339 = vmatprep.subr.mxu0 0.0
    %2340 = vmatpush1.xpose.msra.mxu0 0.0
    %2341 = vmatprep.subr.mxu0 0.0
    %2342 = vmatpush1.xpose.msra.mxu0 0.0
    %2343 = vmatprep.subr.mxu0 0.0
    %2344 = vmatpush1.xpose.msra.mxu0 0.0
    %2345 = vmatprep.subr.mxu0 0.0
    %2346 = vmatpush1.xpose.msra.mxu0 0.0
    %2347 = vmatprep.subr.mxu0 0.0
    %2348 = vmatpush1.xpose.msra.mxu0 0.0
    %2349 = vmatprep.subr.mxu0 0.0
    %2350 = vmatpush1.xpose.msra.mxu0 0.0
    %2351 = vmatprep.subr.mxu0 0.0
    %2352 = vmatpush1.xpose.msra.mxu0 0.0
    %2353 = vmatprep.subr.mxu0 0.0
    %2354 = vmatpush1.xpose.msra.mxu0 0.0
    %2355 = vmatprep.subr.mxu0 0.0
    %2356 = vmatpush1.xpose.msra.mxu0 0.0
    %2357 = vmatprep.subr.mxu0 0.0
    %2358 = vmatpush1.xpose.msra.mxu0 0.0
    %2359 = vmatprep.subr.mxu0 0.0
    %2360 = vmatpush1.xpose.msra.mxu0 0.0
    %2361 = vmatprep.mubr.f32.mxu0 0.0
    %2362 = vmatmul.mubr.f32.gmra.mrb[0].mxu0 %v2293
    %v2363 = vpop.f32.mrb[0].mxu0
    %v2364 = vadd.f32 0.0, %v2363
    %v2365 = vpop.f32.mrb[0].mxu0
    %2366 = vdwg.mxu0
    %2368 = vrot.lane.b32.xlu0 %v2196, 96
    %v2369 = vpop.permute.xlu0 %2368
    %v2371 = vsel %vm374, %v2288, 0
    %v2373 = vsel %vm374, %v2369, 0
    %2375 = vmatprep.subr.mxu0 0.0
    %2376 = vmatpush1.xpose.msra.mxu0 %v2373
    %2377 = vmatprep.subr.mxu0 0.0
    %2378 = vmatpush1.xpose.msra.mxu0 0.0
    %2379 = vmatprep.subr.mxu0 0.0
    %2380 = vmatpush1.xpose.msra.mxu0 0.0
    %2381 = vmatprep.subr.mxu0 0.0
    %2382 = vmatpush1.xpose.msra.mxu0 0.0
    %2383 = vmatprep.subr.mxu0 0.0
    %2384 = vmatpush1.xpose.msra.mxu0 0.0
    %2385 = vmatprep.subr.mxu0 0.0
    %2386 = vmatpush1.xpose.msra.mxu0 0.0
    %2387 = vmatprep.subr.mxu0 0.0
    %2388 = vmatpush1.xpose.msra.mxu0 0.0
    %2389 = vmatprep.subr.mxu0 0.0
    %2390 = vmatpush1.xpose.msra.mxu0 0.0
    %2391 = vmatprep.subr.mxu0 0.0
    %2392 = vmatpush1.xpose.msra.mxu0 0.0
    %2393 = vmatprep.subr.mxu0 0.0
    %2394 = vmatpush1.xpose.msra.mxu0 0.0
    %2395 = vmatprep.subr.mxu0 0.0
    %2396 = vmatpush1.xpose.msra.mxu0 0.0
    %2397 = vmatprep.subr.mxu0 0.0
    %2398 = vmatpush1.xpose.msra.mxu0 0.0
    %2399 = vmatprep.subr.mxu0 0.0
    %2400 = vmatpush1.xpose.msra.mxu0 0.0
    %2401 = vmatprep.subr.mxu0 0.0
    %2402 = vmatpush1.xpose.msra.mxu0 0.0
    %2403 = vmatprep.subr.mxu0 0.0
    %2404 = vmatpush1.xpose.msra.mxu0 0.0
    %2405 = vmatprep.subr.mxu0 0.0
    %2406 = vmatpush1.xpose.msra.mxu0 0.0
    %2407 = vmatprep.subr.mxu0 0.0
    %2408 = vmatpush1.xpose.msra.mxu0 0.0
    %2409 = vmatprep.subr.mxu0 0.0
    %2410 = vmatpush1.xpose.msra.mxu0 0.0
    %2411 = vmatprep.subr.mxu0 0.0
    %2412 = vmatpush1.xpose.msra.mxu0 0.0
    %2413 = vmatprep.subr.mxu0 0.0
    %2414 = vmatpush1.xpose.msra.mxu0 0.0
    %2415 = vmatprep.subr.mxu0 0.0
    %2416 = vmatpush1.xpose.msra.mxu0 0.0
    %2417 = vmatprep.subr.mxu0 0.0
    %2418 = vmatpush1.xpose.msra.mxu0 0.0
    %2419 = vmatprep.subr.mxu0 0.0
    %2420 = vmatpush1.xpose.msra.mxu0 0.0
    %2421 = vmatprep.subr.mxu0 0.0
    %2422 = vmatpush1.xpose.msra.mxu0 0.0
    %2423 = vmatprep.subr.mxu0 0.0
    %2424 = vmatpush1.xpose.msra.mxu0 0.0
    %2425 = vmatprep.subr.mxu0 0.0
    %2426 = vmatpush1.xpose.msra.mxu0 0.0
    %2427 = vmatprep.subr.mxu0 0.0
    %2428 = vmatpush1.xpose.msra.mxu0 0.0
    %2429 = vmatprep.subr.mxu0 0.0
    %2430 = vmatpush1.xpose.msra.mxu0 0.0
    %2431 = vmatprep.subr.mxu0 0.0
    %2432 = vmatpush1.xpose.msra.mxu0 0.0
    %2433 = vmatprep.subr.mxu0 0.0
    %2434 = vmatpush1.xpose.msra.mxu0 0.0
    %2435 = vmatprep.subr.mxu0 0.0
    %2436 = vmatpush1.xpose.msra.mxu0 0.0
    %2437 = vmatprep.subr.mxu0 0.0
    %2438 = vmatpush1.xpose.msra.mxu0 0.0
    %2439 = vmatprep.mubr.f32.mxu0 0.0
    %2440 = vmatmul.mubr.f32.gmra.mrb[0].mxu0 %v2371
    %v2441 = vpop.f32.mrb[0].mxu0
    %v2442 = vadd.f32 0.0, %v2441
    %v2443 = vpop.f32.mrb[0].mxu0
    %2444 = vdwg.mxu0
    %v2445 = vsel %vm374, %v2364, -inf
    %2446 = vmax.xlane.f32.xlu0 %v2445
    %v2447 = vpop.xlane.xlu0 %2446
    %v2448 = vsel %vm374, %v2442, -inf
    %2449 = vmax.xlane.f32.xlu0 %v2448
    %v2450 = vpop.xlane.xlu0 %2449
    %v2451 = vsub.f32 %v2364, %v2447
    %v2452 = vsub.f32 %v2442, %v2450
    %v2453 = vmul.f32 %v2451, 1.442695
    %v2454 = vpow.pop %v2453
    %v2455 = vmul.f32 %v2452, 1.442695
    %v2456 = vpow.pop %v2455
    %v2457 = vsel %vm374, %v2454, 0.0
    %2458 = vadd.xlane.f32.xlu0 %v2457
    %v2459 = vpop.xlane.xlu0 %2458
    %v2460 = vsel %vm374, %v2456, 0.0
    %2461 = vadd.xlane.f32.xlu0 %v2460
    %v2462 = vpop.xlane.xlu0 %2461
    %v2463 = vrcp.pop %v2459
    %v2464 = vrcp.pop %v2462
    %v2465 = vmul.f32 %v2454, %v2463
    %v2466 = vmul.f32 %v2456, %v2464
    %v2468 = vsel %vm374, %v2465, 0
    %2470 = vmatprep.subr.mxu0 0.0
    %2471 = vmatpush1.msra.mxu0 %v2279
    %2472 = vmatprep.subr.mxu0 0.0
    %2473 = vmatpush1.msra.mxu0 0.0
    %2474 = vmatprep.subr.mxu0 0.0
    %2475 = vmatpush1.msra.mxu0 0.0
    %2476 = vmatprep.subr.mxu0 0.0
    %2477 = vmatpush1.msra.mxu0 0.0
    %2478 = vmatprep.subr.mxu0 0.0
    %2479 = vmatpush1.msra.mxu0 0.0
    %2480 = vmatprep.subr.mxu0 0.0
    %2481 = vmatpush1.msra.mxu0 0.0
    %2482 = vmatprep.subr.mxu0 0.0
    %2483 = vmatpush1.msra.mxu0 0.0
    %2484 = vmatprep.subr.mxu0 0.0
    %2485 = vmatpush1.msra.mxu0 0.0
    %2486 = vmatprep.subr.mxu0 0.0
    %2487 = vmatpush1.msra.mxu0 0.0
    %2488 = vmatprep.subr.mxu0 0.0
    %2489 = vmatpush1.msra.mxu0 0.0
    %2490 = vmatprep.subr.mxu0 0.0
    %2491 = vmatpush1.msra.mxu0 0.0
    %2492 = vmatprep.subr.mxu0 0.0
    %2493 = vmatpush1.msra.mxu0 0.0
    %2494 = vmatprep.subr.mxu0 0.0
    %2495 = vmatpush1.msra.mxu0 0.0
    %2496 = vmatprep.subr.mxu0 0.0
    %2497 = vmatpush1.msra.mxu0 0.0
    %2498 = vmatprep.subr.mxu0 0.0
    %2499 = vmatpush1.msra.mxu0 0.0
    %2500 = vmatprep.subr.mxu0 0.0
    %2501 = vmatpush1.msra.mxu0 0.0
    %2502 = vmatprep.subr.mxu0 0.0
    %2503 = vmatpush1.msra.mxu0 0.0
    %2504 = vmatprep.subr.mxu0 0.0
    %2505 = vmatpush1.msra.mxu0 0.0
    %2506 = vmatprep.subr.mxu0 0.0
    %2507 = vmatpush1.msra.mxu0 0.0
    %2508 = vmatprep.subr.mxu0 0.0
    %2509 = vmatpush1.msra.mxu0 0.0
    %2510 = vmatprep.subr.mxu0 0.0
    %2511 = vmatpush1.msra.mxu0 0.0
    %2512 = vmatprep.subr.mxu0 0.0
    %2513 = vmatpush1.msra.mxu0 0.0
    %2514 = vmatprep.subr.mxu0 0.0
    %2515 = vmatpush1.msra.mxu0 0.0
    %2516 = vmatprep.subr.mxu0 0.0
    %2517 = vmatpush1.msra.mxu0 0.0
    %2518 = vmatprep.subr.mxu0 0.0
    %2519 = vmatpush1.msra.mxu0 0.0
    %2520 = vmatprep.subr.mxu0 0.0
    %2521 = vmatpush1.msra.mxu0 0.0
    %2522 = vmatprep.subr.mxu0 0.0
    %2523 = vmatpush1.msra.mxu0 0.0
    %2524 = vmatprep.subr.mxu0 0.0
    %2525 = vmatpush1.msra.mxu0 0.0
    %2526 = vmatprep.subr.mxu0 0.0
    %2527 = vmatpush1.msra.mxu0 0.0
    %2528 = vmatprep.subr.mxu0 0.0
    %2529 = vmatpush1.msra.mxu0 0.0
    %2530 = vmatprep.subr.mxu0 0.0
    %2531 = vmatpush1.msra.mxu0 0.0
    %2532 = vmatprep.subr.mxu0 0.0
    %2533 = vmatpush1.msra.mxu0 0.0
    %2534 = vmatprep.mubr.f32.mxu0 0.0
    %2535 = vmatmul.mubr.f32.gmra.mrb[0].mxu0 %v2468
    %v2536 = vpop.f32.mrb[0].mxu0
    %v2537 = vadd.f32 0.0, %v2536
    %v2538 = vpop.f32.mrb[0].mxu0
    %2539 = vdwg.mxu0
    %v2541 = vsel %vm374, %v2466, 0
    %2543 = vmatprep.subr.mxu0 0.0
    %2544 = vmatpush1.msra.mxu0 %v2284
    %2545 = vmatprep.subr.mxu0 0.0
    %2546 = vmatpush1.msra.mxu0 0.0
    %2547 = vmatprep.subr.mxu0 0.0
    %2548 = vmatpush1.msra.mxu0 0.0
    %2549 = vmatprep.subr.mxu0 0.0
    %2550 = vmatpush1.msra.mxu0 0.0
    %2551 = vmatprep.subr.mxu0 0.0
    %2552 = vmatpush1.msra.mxu0 0.0
    %2553 = vmatprep.subr.mxu0 0.0
    %2554 = vmatpush1.msra.mxu0 0.0
    %2555 = vmatprep.subr.mxu0 0.0
    %2556 = vmatpush1.msra.mxu0 0.0
    %2557 = vmatprep.subr.mxu0 0.0
    %2558 = vmatpush1.msra.mxu0 0.0
    %2559 = vmatprep.subr.mxu0 0.0
    %2560 = vmatpush1.msra.mxu0 0.0
    %2561 = vmatprep.subr.mxu0 0.0
    %2562 = vmatpush1.msra.mxu0 0.0
    %2563 = vmatprep.subr.mxu0 0.0
    %2564 = vmatpush1.msra.mxu0 0.0
    %2565 = vmatprep.subr.mxu0 0.0
    %2566 = vmatpush1.msra.mxu0 0.0
    %2567 = vmatprep.subr.mxu0 0.0
    %2568 = vmatpush1.msra.mxu0 0.0
    %2569 = vmatprep.subr.mxu0 0.0
    %2570 = vmatpush1.msra.mxu0 0.0
    %2571 = vmatprep.subr.mxu0 0.0
    %2572 = vmatpush1.msra.mxu0 0.0
    %2573 = vmatprep.subr.mxu0 0.0
    %2574 = vmatpush1.msra.mxu0 0.0
    %2575 = vmatprep.subr.mxu0 0.0
    %2576 = vmatpush1.msra.mxu0 0.0
    %2577 = vmatprep.subr.mxu0 0.0
    %2578 = vmatpush1.msra.mxu0 0.0
    %2579 = vmatprep.subr.mxu0 0.0
    %2580 = vmatpush1.msra.mxu0 0.0
    %2581 = vmatprep.subr.mxu0 0.0
    %2582 = vmatpush1.msra.mxu0 0.0
    %2583 = vmatprep.subr.mxu0 0.0
    %2584 = vmatpush1.msra.mxu0 0.0
    %2585 = vmatprep.subr.mxu0 0.0
    %2586 = vmatpush1.msra.mxu0 0.0
    %2587 = vmatprep.subr.mxu0 0.0
    %2588 = vmatpush1.msra.mxu0 0.0
    %2589 = vmatprep.subr.mxu0 0.0
    %2590 = vmatpush1.msra.mxu0 0.0
    %2591 = vmatprep.subr.mxu0 0.0
    %2592 = vmatpush1.msra.mxu0 0.0
    %2593 = vmatprep.subr.mxu0 0.0
    %2594 = vmatpush1.msra.mxu0 0.0
    %2595 = vmatprep.subr.mxu0 0.0
    %2596 = vmatpush1.msra.mxu0 0.0
    %2597 = vmatprep.subr.mxu0 0.0
    %2598 = vmatpush1.msra.mxu0 0.0
    %2599 = vmatprep.subr.mxu0 0.0
    %2600 = vmatpush1.msra.mxu0 0.0
    %2601 = vmatprep.subr.mxu0 0.0
    %2602 = vmatpush1.msra.mxu0 0.0
    %2603 = vmatprep.subr.mxu0 0.0
    %2604 = vmatpush1.msra.mxu0 0.0
    %2605 = vmatprep.subr.mxu0 0.0
    %2606 = vmatpush1.msra.mxu0 0.0
    %2607 = vmatprep.mubr.f32.mxu0 0.0
    %2608 = vmatmul.mubr.f32.gmra.mrb[0].mxu0 %v2541
    %v2609 = vpop.f32.mrb[0].mxu0
    %v2610 = vadd.f32 0.0, %v2609
    %v2611 = vpop.f32.mrb[0].mxu0
    %2612 = vdwg.mxu0
    %2613 = vrot.lane.b32.xlu0 %v2287, 120
    %v2614 = vpop.permute.xlu0 %2613
    %2615 = vrot.lane.b32.xlu0 %v2195, 88
    %v2616 = vpop.permute.xlu0 %2615
    %v2617 = vsel %vm374, %v2614, 0
    %v2619 = vsel %vm374, %v2616, 0
    %2621 = vmatprep.subr.mxu0 0.0
    %2622 = vmatpush1.xpose.msra.mxu0 %v2619
    %2623 = vmatprep.subr.mxu0 0.0
    %2624 = vmatpush1.xpose.msra.mxu0 0.0
    %2625 = vmatprep.subr.mxu0 0.0
    %2626 = vmatpush1.xpose.msra.mxu0 0.0
    %2627 = vmatprep.subr.mxu0 0.0
    %2628 = vmatpush1.xpose.msra.mxu0 0.0
    %2629 = vmatprep.subr.mxu0 0.0
    %2630 = vmatpush1.xpose.msra.mxu0 0.0
    %2631 = vmatprep.subr.mxu0 0.0
    %2632 = vmatpush1.xpose.msra.mxu0 0.0
    %2633 = vmatprep.subr.mxu0 0.0
    %2634 = vmatpush1.xpose.msra.mxu0 0.0
    %2635 = vmatprep.subr.mxu0 0.0
    %2636 = vmatpush1.xpose.msra.mxu0 0.0
    %2637 = vmatprep.subr.mxu0 0.0
    %2638 = vmatpush1.xpose.msra.mxu0 0.0
    %2639 = vmatprep.subr.mxu0 0.0
    %2640 = vmatpush1.xpose.msra.mxu0 0.0
    %2641 = vmatprep.subr.mxu0 0.0
    %2642 = vmatpush1.xpose.msra.mxu0 0.0
    %2643 = vmatprep.subr.mxu0 0.0
    %2644 = vmatpush1.xpose.msra.mxu0 0.0
    %2645 = vmatprep.subr.mxu0 0.0
    %2646 = vmatpush1.xpose.msra.mxu0 0.0
    %2647 = vmatprep.subr.mxu0 0.0
    %2648 = vmatpush1.xpose.msra.mxu0 0.0
    %2649 = vmatprep.subr.mxu0 0.0
    %2650 = vmatpush1.xpose.msra.mxu0 0.0
    %2651 = vmatprep.subr.mxu0 0.0
    %2652 = vmatpush1.xpose.msra.mxu0 0.0
    %2653 = vmatprep.subr.mxu0 0.0
    %2654 = vmatpush1.xpose.msra.mxu0 0.0
    %2655 = vmatprep.subr.mxu0 0.0
    %2656 = vmatpush1.xpose.msra.mxu0 0.0
    %2657 = vmatprep.subr.mxu0 0.0
    %2658 = vmatpush1.xpose.msra.mxu0 0.0
    %2659 = vmatprep.subr.mxu0 0.0
    %2660 = vmatpush1.xpose.msra.mxu0 0.0
    %2661 = vmatprep.subr.mxu0 0.0
    %2662 = vmatpush1.xpose.msra.mxu0 0.0
    %2663 = vmatprep.subr.mxu0 0.0
    %2664 = vmatpush1.xpose.msra.mxu0 0.0
    %2665 = vmatprep.subr.mxu0 0.0
    %2666 = vmatpush1.xpose.msra.mxu0 0.0
    %2667 = vmatprep.subr.mxu0 0.0
    %2668 = vmatpush1.xpose.msra.mxu0 0.0
    %2669 = vmatprep.subr.mxu0 0.0
    %2670 = vmatpush1.xpose.msra.mxu0 0.0
    %2671 = vmatprep.subr.mxu0 0.0
    %2672 = vmatpush1.xpose.msra.mxu0 0.0
    %2673 = vmatprep.subr.mxu0 0.0
    %2674 = vmatpush1.xpose.msra.mxu0 0.0
    %2675 = vmatprep.subr.mxu0 0.0
    %2676 = vmatpush1.xpose.msra.mxu0 0.0
    %2677 = vmatprep.subr.mxu0 0.0
    %2678 = vmatpush1.xpose.msra.mxu0 0.0
    %2679 = vmatprep.subr.mxu0 0.0
    %2680 = vmatpush1.xpose.msra.mxu0 0.0
    %2681 = vmatprep.subr.mxu0 0.0
    %2682 = vmatpush1.xpose.msra.mxu0 0.0
    %2683 = vmatprep.subr.mxu0 0.0
    %2684 = vmatpush1.xpose.msra.mxu0 0.0
    %2685 = vmatprep.mubr.f32.mxu0 0.0
    %2686 = vmatmul.mubr.f32.gmra.mrb[0].mxu0 %v2617
    %v2687 = vpop.f32.mrb[0].mxu0
    %v2688 = vadd.f32 0.0, %v2687
    %v2689 = vpop.f32.mrb[0].mxu0
    %2690 = vdwg.mxu0
    %2691 = vrot.lane.b32.xlu0 %v2288, 120
    %v2692 = vpop.permute.xlu0 %2691
    %2693 = vrot.lane.b32.xlu0 %v2196, 88
    %v2694 = vpop.permute.xlu0 %2693
    %v2695 = vsel %vm374, %v2692, 0
    %v2697 = vsel %vm374, %v2694, 0
    %2699 = vmatprep.subr.mxu0 0.0
    %2700 = vmatpush1.xpose.msra.mxu0 %v2697
    %2701 = vmatprep.subr.mxu0 0.0
    %2702 = vmatpush1.xpose.msra.mxu0 0.0
    %2703 = vmatprep.subr.mxu0 0.0
    %2704 = vmatpush1.xpose.msra.mxu0 0.0
    %2705 = vmatprep.subr.mxu0 0.0
    %2706 = vmatpush1.xpose.msra.mxu0 0.0
    %2707 = vmatprep.subr.mxu0 0.0
    %2708 = vmatpush1.xpose.msra.mxu0 0.0
    %2709 = vmatprep.subr.mxu0 0.0
    %2710 = vmatpush1.xpose.msra.mxu0 0.0
    %2711 = vmatprep.subr.mxu0 0.0
    %2712 = vmatpush1.xpose.msra.mxu0 0.0
    %2713 = vmatprep.subr.mxu0 0.0
    %2714 = vmatpush1.xpose.msra.mxu0 0.0
    %2715 = vmatprep.subr.mxu0 0.0
    %2716 = vmatpush1.xpose.msra.mxu0 0.0
    %2717 = vmatprep.subr.mxu0 0.0
    %2718 = vmatpush1.xpose.msra.mxu0 0.0
    %2719 = vmatprep.subr.mxu0 0.0
    %2720 = vmatpush1.xpose.msra.mxu0 0.0
    %2721 = vmatprep.subr.mxu0 0.0
    %2722 = vmatpush1.xpose.msra.mxu0 0.0
    %2723 = vmatprep.subr.mxu0 0.0
    %2724 = vmatpush1.xpose.msra.mxu0 0.0
    %2725 = vmatprep.subr.mxu0 0.0
    %2726 = vmatpush1.xpose.msra.mxu0 0.0
    %2727 = vmatprep.subr.mxu0 0.0
    %2728 = vmatpush1.xpose.msra.mxu0 0.0
    %2729 = vmatprep.subr.mxu0 0.0
    %2730 = vmatpush1.xpose.msra.mxu0 0.0
    %2731 = vmatprep.subr.mxu0 0.0
    %2732 = vmatpush1.xpose.msra.mxu0 0.0
    %2733 = vmatprep.subr.mxu0 0.0
    %2734 = vmatpush1.xpose.msra.mxu0 0.0
    %2735 = vmatprep.subr.mxu0 0.0
    %2736 = vmatpush1.xpose.msra.mxu0 0.0
    %2737 = vmatprep.subr.mxu0 0.0
    %2738 = vmatpush1.xpose.msra.mxu0 0.0
    %2739 = vmatprep.subr.mxu0 0.0
    %2740 = vmatpush1.xpose.msra.mxu0 0.0
    %2741 = vmatprep.subr.mxu0 0.0
    %2742 = vmatpush1.xpose.msra.mxu0 0.0
    %2743 = vmatprep.subr.mxu0 0.0
    %2744 = vmatpush1.xpose.msra.mxu0 0.0
    %2745 = vmatprep.subr.mxu0 0.0
    %2746 = vmatpush1.xpose.msra.mxu0 0.0
    %2747 = vmatprep.subr.mxu0 0.0
    %2748 = vmatpush1.xpose.msra.mxu0 0.0
    %2749 = vmatprep.subr.mxu0 0.0
    %2750 = vmatpush1.xpose.msra.mxu0 0.0
    %2751 = vmatprep.subr.mxu0 0.0
    %2752 = vmatpush1.xpose.msra.mxu0 0.0
    %2753 = vmatprep.subr.mxu0 0.0
    %2754 = vmatpush1.xpose.msra.mxu0 0.0
    %2755 = vmatprep.subr.mxu0 0.0
    %2756 = vmatpush1.xpose.msra.mxu0 0.0
    %2757 = vmatprep.subr.mxu0 0.0
    %2758 = vmatpush1.xpose.msra.mxu0 0.0
    %2759 = vmatprep.subr.mxu0 0.0
    %2760 = vmatpush1.xpose.msra.mxu0 0.0
    %2761 = vmatprep.subr.mxu0 0.0
    %2762 = vmatpush1.xpose.msra.mxu0 0.0
    %2763 = vmatprep.mubr.f32.mxu0 0.0
    %2764 = vmatmul.mubr.f32.gmra.mrb[0].mxu0 %v2695
    %v2765 = vpop.f32.mrb[0].mxu0
    %v2766 = vadd.f32 0.0, %v2765
    %v2767 = vpop.f32.mrb[0].mxu0
    %2768 = vdwg.mxu0
    %v2769 = vsel %vm374, %v2688, -inf
    %2770 = vmax.xlane.f32.xlu0 %v2769
    %v2771 = vpop.xlane.xlu0 %2770
    %v2772 = vsel %vm374, %v2766, -inf
    %2773 = vmax.xlane.f32.xlu0 %v2772
    %v2774 = vpop.xlane.xlu0 %2773
    %v2775 = vsub.f32 %v2688, %v2771
    %v2776 = vsub.f32 %v2766, %v2774
    %v2777 = vmul.f32 %v2775, 1.442695
    %v2778 = vpow.pop %v2777
    %v2779 = vmul.f32 %v2776, 1.442695
    %v2780 = vpow.pop %v2779
    %v2781 = vsel %vm374, %v2778, 0.0
    %2782 = vadd.xlane.f32.xlu0 %v2781
    %v2783 = vpop.xlane.xlu0 %2782
    %v2784 = vsel %vm374, %v2780, 0.0
    %2785 = vadd.xlane.f32.xlu0 %v2784
    %v2786 = vpop.xlane.xlu0 %2785
    %v2787 = vrcp.pop %v2783
    %v2788 = vrcp.pop %v2786
    %v2789 = vmul.f32 %v2778, %v2787
    %v2790 = vmul.f32 %v2780, %v2788
    %2792 = vrot.lane.b32.xlu0 %v2279, 120
    %v2793 = vpop.permute.xlu0 %2792
    %v2796 = vsel %vm374, %v2789, 0
    %2798 = vmatprep.subr.mxu0 0.0
    %2799 = vmatpush1.msra.mxu0 %v2793
    %2800 = vmatprep.subr.mxu0 0.0
    %2801 = vmatpush1.msra.mxu0 0.0
    %2802 = vmatprep.subr.mxu0 0.0
    %2803 = vmatpush1.msra.mxu0 0.0
    %2804 = vmatprep.subr.mxu0 0.0
    %2805 = vmatpush1.msra.mxu0 0.0
    %2806 = vmatprep.subr.mxu0 0.0
    %2807 = vmatpush1.msra.mxu0 0.0
    %2808 = vmatprep.subr.mxu0 0.0
    %2809 = vmatpush1.msra.mxu0 0.0
    %2810 = vmatprep.subr.mxu0 0.0
    %2811 = vmatpush1.msra.mxu0 0.0
    %2812 = vmatprep.subr.mxu0 0.0
    %2813 = vmatpush1.msra.mxu0 0.0
    %2814 = vmatprep.subr.mxu0 0.0
    %2815 = vmatpush1.msra.mxu0 0.0
    %2816 = vmatprep.subr.mxu0 0.0
    %2817 = vmatpush1.msra.mxu0 0.0
    %2818 = vmatprep.subr.mxu0 0.0
    %2819 = vmatpush1.msra.mxu0 0.0
    %2820 = vmatprep.subr.mxu0 0.0
    %2821 = vmatpush1.msra.mxu0 0.0
    %2822 = vmatprep.subr.mxu0 0.0
    %2823 = vmatpush1.msra.mxu0 0.0
    %2824 = vmatprep.subr.mxu0 0.0
    %2825 = vmatpush1.msra.mxu0 0.0
    %2826 = vmatprep.subr.mxu0 0.0
    %2827 = vmatpush1.msra.mxu0 0.0
    %2828 = vmatprep.subr.mxu0 0.0
    %2829 = vmatpush1.msra.mxu0 0.0
    %2830 = vmatprep.subr.mxu0 0.0
    %2831 = vmatpush1.msra.mxu0 0.0
    %2832 = vmatprep.subr.mxu0 0.0
    %2833 = vmatpush1.msra.mxu0 0.0
    %2834 = vmatprep.subr.mxu0 0.0
    %2835 = vmatpush1.msra.mxu0 0.0
    %2836 = vmatprep.subr.mxu0 0.0
    %2837 = vmatpush1.msra.mxu0 0.0
    %2838 = vmatprep.subr.mxu0 0.0
    %2839 = vmatpush1.msra.mxu0 0.0
    %2840 = vmatprep.subr.mxu0 0.0
    %2841 = vmatpush1.msra.mxu0 0.0
    %2842 = vmatprep.subr.mxu0 0.0
    %2843 = vmatpush1.msra.mxu0 0.0
    %2844 = vmatprep.subr.mxu0 0.0
    %2845 = vmatpush1.msra.mxu0 0.0
    %2846 = vmatprep.subr.mxu0 0.0
    %2847 = vmatpush1.msra.mxu0 0.0
    %2848 = vmatprep.subr.mxu0 0.0
    %2849 = vmatpush1.msra.mxu0 0.0
    %2850 = vmatprep.subr.mxu0 0.0
    %2851 = vmatpush1.msra.mxu0 0.0
    %2852 = vmatprep.subr.mxu0 0.0
    %2853 = vmatpush1.msra.mxu0 0.0
    %2854 = vmatprep.subr.mxu0 0.0
    %2855 = vmatpush1.msra.mxu0 0.0
    %2856 = vmatprep.subr.mxu0 0.0
    %2857 = vmatpush1.msra.mxu0 0.0
    %2858 = vmatprep.subr.mxu0 0.0
    %2859 = vmatpush1.msra.mxu0 0.0
    %2860 = vmatprep.subr.mxu0 0.0
    %2861 = vmatpush1.msra.mxu0 0.0
    %2862 = vmatprep.mubr.f32.mxu0 0.0
    %2863 = vmatmul.mubr.f32.gmra.mrb[0].mxu0 %v2796
    %v2864 = vpop.f32.mrb[0].mxu0
    %v2865 = vadd.f32 0.0, %v2864
    %v2866 = vpop.f32.mrb[0].mxu0
    %2867 = vdwg.mxu0
    %2869 = vrot.lane.b32.xlu0 %v2284, 120
    %v2870 = vpop.permute.xlu0 %2869
    %v2873 = vsel %vm374, %v2790, 0
    %2875 = vmatprep.subr.mxu0 0.0
    %2876 = vmatpush1.msra.mxu0 %v2870
    %2877 = vmatprep.subr.mxu0 0.0
    %2878 = vmatpush1.msra.mxu0 0.0
    %2879 = vmatprep.subr.mxu0 0.0
    %2880 = vmatpush1.msra.mxu0 0.0
    %2881 = vmatprep.subr.mxu0 0.0
    %2882 = vmatpush1.msra.mxu0 0.0
    %2883 = vmatprep.subr.mxu0 0.0
    %2884 = vmatpush1.msra.mxu0 0.0
    %2885 = vmatprep.subr.mxu0 0.0
    %2886 = vmatpush1.msra.mxu0 0.0
    %2887 = vmatprep.subr.mxu0 0.0
    %2888 = vmatpush1.msra.mxu0 0.0
    %2889 = vmatprep.subr.mxu0 0.0
    %2890 = vmatpush1.msra.mxu0 0.0
    %2891 = vmatprep.subr.mxu0 0.0
    %2892 = vmatpush1.msra.mxu0 0.0
    %2893 = vmatprep.subr.mxu0 0.0
    %2894 = vmatpush1.msra.mxu0 0.0
    %2895 = vmatprep.subr.mxu0 0.0
    %2896 = vmatpush1.msra.mxu0 0.0
    %2897 = vmatprep.subr.mxu0 0.0
    %2898 = vmatpush1.msra.mxu0 0.0
    %2899 = vmatprep.subr.mxu0 0.0
    %2900 = vmatpush1.msra.mxu0 0.0
    %2901 = vmatprep.subr.mxu0 0.0
    %2902 = vmatpush1.msra.mxu0 0.0
    %2903 = vmatprep.subr.mxu0 0.0
    %2904 = vmatpush1.msra.mxu0 0.0
    %2905 = vmatprep.subr.mxu0 0.0
    %2906 = vmatpush1.msra.mxu0 0.0
    %2907 = vmatprep.subr.mxu0 0.0
    %2908 = vmatpush1.msra.mxu0 0.0
    %2909 = vmatprep.subr.mxu0 0.0
    %2910 = vmatpush1.msra.mxu0 0.0
    %2911 = vmatprep.subr.mxu0 0.0
    %2912 = vmatpush1.msra.mxu0 0.0
    %2913 = vmatprep.subr.mxu0 0.0
    %2914 = vmatpush1.msra.mxu0 0.0
    %2915 = vmatprep.subr.mxu0 0.0
    %2916 = vmatpush1.msra.mxu0 0.0
    %2917 = vmatprep.subr.mxu0 0.0
    %2918 = vmatpush1.msra.mxu0 0.0
    %2919 = vmatprep.subr.mxu0 0.0
    %2920 = vmatpush1.msra.mxu0 0.0
    %2921 = vmatprep.subr.mxu0 0.0
    %2922 = vmatpush1.msra.mxu0 0.0
    %2923 = vmatprep.subr.mxu0 0.0
    %2924 = vmatpush1.msra.mxu0 0.0
    %2925 = vmatprep.subr.mxu0 0.0
    %2926 = vmatpush1.msra.mxu0 0.0
    %2927 = vmatprep.subr.mxu0 0.0
    %2928 = vmatpush1.msra.mxu0 0.0
    %2929 = vmatprep.subr.mxu0 0.0
    %2930 = vmatpush1.msra.mxu0 0.0
    %2931 = vmatprep.subr.mxu0 0.0
    %2932 = vmatpush1.msra.mxu0 0.0
    %2933 = vmatprep.subr.mxu0 0.0
    %2934 = vmatpush1.msra.mxu0 0.0
    %2935 = vmatprep.subr.mxu0 0.0
    %2936 = vmatpush1.msra.mxu0 0.0
    %2937 = vmatprep.subr.mxu0 0.0
    %2938 = vmatpush1.msra.mxu0 0.0
    %2939 = vmatprep.mubr.f32.mxu0 0.0
    %2940 = vmatmul.mubr.f32.gmra.mrb[0].mxu0 %v2873
    %v2941 = vpop.f32.mrb[0].mxu0
    %v2942 = vadd.f32 0.0, %v2941
    %v2943 = vpop.f32.mrb[0].mxu0
    %2944 = vdwg.mxu0
    %2945 = vrot.lane.b32.xlu0 %v2287, 112
    %v2946 = vpop.permute.xlu0 %2945
    %2947 = vrot.lane.b32.xlu0 %v2195, 80
    %v2948 = vpop.permute.xlu0 %2947
    %v2949 = vsel %vm374, %v2946, 0
    %v2951 = vsel %vm374, %v2948, 0
    %2953 = vmatprep.subr.mxu0 0.0
    %2954 = vmatpush1.xpose.msra.mxu0 %v2951
    %2955 = vmatprep.subr.mxu0 0.0
    %2956 = vmatpush1.xpose.msra.mxu0 0.0
    %2957 = vmatprep.subr.mxu0 0.0
    %2958 = vmatpush1.xpose.msra.mxu0 0.0
    %2959 = vmatprep.subr.mxu0 0.0
    %2960 = vmatpush1.xpose.msra.mxu0 0.0
    %2961 = vmatprep.subr.mxu0 0.0
    %2962 = vmatpush1.xpose.msra.mxu0 0.0
    %2963 = vmatprep.subr.mxu0 0.0
    %2964 = vmatpush1.xpose.msra.mxu0 0.0
    %2965 = vmatprep.subr.mxu0 0.0
    %2966 = vmatpush1.xpose.msra.mxu0 0.0
    %2967 = vmatprep.subr.mxu0 0.0
    %2968 = vmatpush1.xpose.msra.mxu0 0.0
    %2969 = vmatprep.subr.mxu0 0.0
    %2970 = vmatpush1.xpose.msra.mxu0 0.0
    %2971 = vmatprep.subr.mxu0 0.0
    %2972 = vmatpush1.xpose.msra.mxu0 0.0
    %2973 = vmatprep.subr.mxu0 0.0
    %2974 = vmatpush1.xpose.msra.mxu0 0.0
    %2975 = vmatprep.subr.mxu0 0.0
    %2976 = vmatpush1.xpose.msra.mxu0 0.0
    %2977 = vmatprep.subr.mxu0 0.0
    %2978 = vmatpush1.xpose.msra.mxu0 0.0
    %2979 = vmatprep.subr.mxu0 0.0
    %2980 = vmatpush1.xpose.msra.mxu0 0.0
    %2981 = vmatprep.subr.mxu0 0.0
    %2982 = vmatpush1.xpose.msra.mxu0 0.0
    %2983 = vmatprep.subr.mxu0 0.0
    %2984 = vmatpush1.xpose.msra.mxu0 0.0
    %2985 = vmatprep.subr.mxu0 0.0
    %2986 = vmatpush1.xpose.msra.mxu0 0.0
    %2987 = vmatprep.subr.mxu0 0.0
    %2988 = vmatpush1.xpose.msra.mxu0 0.0
    %2989 = vmatprep.subr.mxu0 0.0
    %2990 = vmatpush1.xpose.msra.mxu0 0.0
    %2991 = vmatprep.subr.mxu0 0.0
    %2992 = vmatpush1.xpose.msra.mxu0 0.0
    %2993 = vmatprep.subr.mxu0 0.0
    %2994 = vmatpush1.xpose.msra.mxu0 0.0
    %2995 = vmatprep.subr.mxu0 0.0
    %2996 = vmatpush1.xpose.msra.mxu0 0.0
    %2997 = vmatprep.subr.mxu0 0.0
    %2998 = vmatpush1.xpose.msra.mxu0 0.0
    %2999 = vmatprep.subr.mxu0 0.0
    %3000 = vmatpush1.xpose.msra.mxu0 0.0
    %3001 = vmatprep.subr.mxu0 0.0
    %3002 = vmatpush1.xpose.msra.mxu0 0.0
    %3003 = vmatprep.subr.mxu0 0.0
    %3004 = vmatpush1.xpose.msra.mxu0 0.0
    %3005 = vmatprep.subr.mxu0 0.0
    %3006 = vmatpush1.xpose.msra.mxu0 0.0
    %3007 = vmatprep.subr.mxu0 0.0
    %3008 = vmatpush1.xpose.msra.mxu0 0.0
    %3009 = vmatprep.subr.mxu0 0.0
    %3010 = vmatpush1.xpose.msra.mxu0 0.0
    %3011 = vmatprep.subr.mxu0 0.0
    %3012 = vmatpush1.xpose.msra.mxu0 0.0
    %3013 = vmatprep.subr.mxu0 0.0
    %3014 = vmatpush1.xpose.msra.mxu0 0.0
    %3015 = vmatprep.subr.mxu0 0.0
    %3016 = vmatpush1.xpose.msra.mxu0 0.0
    %3017 = vmatprep.mubr.f32.mxu0 0.0
    %3018 = vmatmul.mubr.f32.gmra.mrb[0].mxu0 %v2949
    %v3019 = vpop.f32.mrb[0].mxu0
    %v3020 = vadd.f32 0.0, %v3019
    %v3021 = vpop.f32.mrb[0].mxu0
    %3022 = vdwg.mxu0
    %3023 = vrot.lane.b32.xlu0 %v2288, 112
    %v3024 = vpop.permute.xlu0 %3023
    %3025 = vrot.lane.b32.xlu0 %v2196, 80
    %v3026 = vpop.permute.xlu0 %3025
    %v3027 = vsel %vm374, %v3024, 0
    %v3029 = vsel %vm374, %v3026, 0
    %3031 = vmatprep.subr.mxu0 0.0
    %3032 = vmatpush1.xpose.msra.mxu0 %v3029
    %3033 = vmatprep.subr.mxu0 0.0
    %3034 = vmatpush1.xpose.msra.mxu0 0.0
    %3035 = vmatprep.subr.mxu0 0.0
    %3036 = vmatpush1.xpose.msra.mxu0 0.0
    %3037 = vmatprep.subr.mxu0 0.0
    %3038 = vmatpush1.xpose.msra.mxu0 0.0
    %3039 = vmatprep.subr.mxu0 0.0
    %3040 = vmatpush1.xpose.msra.mxu0 0.0
    %3041 = vmatprep.subr.mxu0 0.0
    %3042 = vmatpush1.xpose.msra.mxu0 0.0
    %3043 = vmatprep.subr.mxu0 0.0
    %3044 = vmatpush1.xpose.msra.mxu0 0.0
    %3045 = vmatprep.subr.mxu0 0.0
    %3046 = vmatpush1.xpose.msra.mxu0 0.0
    %3047 = vmatprep.subr.mxu0 0.0
    %3048 = vmatpush1.xpose.msra.mxu0 0.0
    %3049 = vmatprep.subr.mxu0 0.0
    %3050 = vmatpush1.xpose.msra.mxu0 0.0
    %3051 = vmatprep.subr.mxu0 0.0
    %3052 = vmatpush1.xpose.msra.mxu0 0.0
    %3053 = vmatprep.subr.mxu0 0.0
    %3054 = vmatpush1.xpose.msra.mxu0 0.0
    %3055 = vmatprep.subr.mxu0 0.0
    %3056 = vmatpush1.xpose.msra.mxu0 0.0
    %3057 = vmatprep.subr.mxu0 0.0
    %3058 = vmatpush1.xpose.msra.mxu0 0.0
    %3059 = vmatprep.subr.mxu0 0.0
    %3060 = vmatpush1.xpose.msra.mxu0 0.0
    %3061 = vmatprep.subr.mxu0 0.0
    %3062 = vmatpush1.xpose.msra.mxu0 0.0
    %3063 = vmatprep.subr.mxu0 0.0
    %3064 = vmatpush1.xpose.msra.mxu0 0.0
    %3065 = vmatprep.subr.mxu0 0.0
    %3066 = vmatpush1.xpose.msra.mxu0 0.0
    %3067 = vmatprep.subr.mxu0 0.0
    %3068 = vmatpush1.xpose.msra.mxu0 0.0
    %3069 = vmatprep.subr.mxu0 0.0
    %3070 = vmatpush1.xpose.msra.mxu0 0.0
    %3071 = vmatprep.subr.mxu0 0.0
    %3072 = vmatpush1.xpose.msra.mxu0 0.0
    %3073 = vmatprep.subr.mxu0 0.0
    %3074 = vmatpush1.xpose.msra.mxu0 0.0
    %3075 = vmatprep.subr.mxu0 0.0
    %3076 = vmatpush1.xpose.msra.mxu0 0.0
    %3077 = vmatprep.subr.mxu0 0.0
    %3078 = vmatpush1.xpose.msra.mxu0 0.0
    %3079 = vmatprep.subr.mxu0 0.0
    %3080 = vmatpush1.xpose.msra.mxu0 0.0
    %3081 = vmatprep.subr.mxu0 0.0
    %3082 = vmatpush1.xpose.msra.mxu0 0.0
    %3083 = vmatprep.subr.mxu0 0.0
    %3084 = vmatpush1.xpose.msra.mxu0 0.0
    %3085 = vmatprep.subr.mxu0 0.0
    %3086 = vmatpush1.xpose.msra.mxu0 0.0
    %3087 = vmatprep.subr.mxu0 0.0
    %3088 = vmatpush1.xpose.msra.mxu0 0.0
    %3089 = vmatprep.subr.mxu0 0.0
    %3090 = vmatpush1.xpose.msra.mxu0 0.0
    %3091 = vmatprep.subr.mxu0 0.0
    %3092 = vmatpush1.xpose.msra.mxu0 0.0
    %3093 = vmatprep.subr.mxu0 0.0
    %3094 = vmatpush1.xpose.msra.mxu0 0.0
    %3095 = vmatprep.mubr.f32.mxu0 0.0
    %3096 = vmatmul.mubr.f32.gmra.mrb[0].mxu0 %v3027
    %v3097 = vpop.f32.mrb[0].mxu0
    %v3098 = vadd.f32 0.0, %v3097
    %v3099 = vpop.f32.mrb[0].mxu0
    %3100 = vdwg.mxu0
    %v3101 = vsel %vm374, %v3020, -inf
    %3102 = vmax.xlane.f32.xlu0 %v3101
    %v3103 = vpop.xlane.xlu0 %3102
    %v3104 = vsel %vm374, %v3098, -inf
    %3105 = vmax.xlane.f32.xlu0 %v3104
    %v3106 = vpop.xlane.xlu0 %3105
    %v3107 = vsub.f32 %v3020, %v3103
    %v3108 = vsub.f32 %v3098, %v3106
    %v3109 = vmul.f32 %v3107, 1.442695
    %v3110 = vpow.pop %v3109
    %v3111 = vmul.f32 %v3108, 1.442695
    %v3112 = vpow.pop %v3111
    %v3113 = vsel %vm374, %v3110, 0.0
    %3114 = vadd.xlane.f32.xlu0 %v3113
    %v3115 = vpop.xlane.xlu0 %3114
    %v3116 = vsel %vm374, %v3112, 0.0
    %3117 = vadd.xlane.f32.xlu0 %v3116
    %v3118 = vpop.xlane.xlu0 %3117
    %v3119 = vrcp.pop %v3115
    %v3120 = vrcp.pop %v3118
    %v3121 = vmul.f32 %v3110, %v3119
    %v3122 = vmul.f32 %v3112, %v3120
    %3123 = vrot.lane.b32.xlu0 %v2279, 112
    %v3124 = vpop.permute.xlu0 %3123
    %v3127 = vsel %vm374, %v3121, 0
    %3129 = vmatprep.subr.mxu0 0.0
    %3130 = vmatpush1.msra.mxu0 %v3124
    %3131 = vmatprep.subr.mxu0 0.0
    %3132 = vmatpush1.msra.mxu0 0.0
    %3133 = vmatprep.subr.mxu0 0.0
    %3134 = vmatpush1.msra.mxu0 0.0
    %3135 = vmatprep.subr.mxu0 0.0
    %3136 = vmatpush1.msra.mxu0 0.0
    %3137 = vmatprep.subr.mxu0 0.0
    %3138 = vmatpush1.msra.mxu0 0.0
    %3139 = vmatprep.subr.mxu0 0.0
    %3140 = vmatpush1.msra.mxu0 0.0
    %3141 = vmatprep.subr.mxu0 0.0
    %3142 = vmatpush1.msra.mxu0 0.0
    %3143 = vmatprep.subr.mxu0 0.0
    %3144 = vmatpush1.msra.mxu0 0.0
    %3145 = vmatprep.subr.mxu0 0.0
    %3146 = vmatpush1.msra.mxu0 0.0
    %3147 = vmatprep.subr.mxu0 0.0
    %3148 = vmatpush1.msra.mxu0 0.0
    %3149 = vmatprep.subr.mxu0 0.0
    %3150 = vmatpush1.msra.mxu0 0.0
    %3151 = vmatprep.subr.mxu0 0.0
    %3152 = vmatpush1.msra.mxu0 0.0
    %3153 = vmatprep.subr.mxu0 0.0
    %3154 = vmatpush1.msra.mxu0 0.0
    %3155 = vmatprep.subr.mxu0 0.0
    %3156 = vmatpush1.msra.mxu0 0.0
    %3157 = vmatprep.subr.mxu0 0.0
    %3158 = vmatpush1.msra.mxu0 0.0
    %3159 = vmatprep.subr.mxu0 0.0
    %3160 = vmatpush1.msra.mxu0 0.0
    %3161 = vmatprep.subr.mxu0 0.0
    %3162 = vmatpush1.msra.mxu0 0.0
    %3163 = vmatprep.subr.mxu0 0.0
    %3164 = vmatpush1.msra.mxu0 0.0
    %3165 = vmatprep.subr.mxu0 0.0
    %3166 = vmatpush1.msra.mxu0 0.0
    %3167 = vmatprep.subr.mxu0 0.0
    %3168 = vmatpush1.msra.mxu0 0.0
    %3169 = vmatprep.subr.mxu0 0.0
    %3170 = vmatpush1.msra.mxu0 0.0
    %3171 = vmatprep.subr.mxu0 0.0
    %3172 = vmatpush1.msra.mxu0 0.0
    %3173 = vmatprep.subr.mxu0 0.0
    %3174 = vmatpush1.msra.mxu0 0.0
    %3175 = vmatprep.subr.mxu0 0.0
    %3176 = vmatpush1.msra.mxu0 0.0
    %3177 = vmatprep.subr.mxu0 0.0
    %3178 = vmatpush1.msra.mxu0 0.0
    %3179 = vmatprep.subr.mxu0 0.0
    %3180 = vmatpush1.msra.mxu0 0.0
    %3181 = vmatprep.subr.mxu0 0.0
    %3182 = vmatpush1.msra.mxu0 0.0
    %3183 = vmatprep.subr.mxu0 0.0
    %3184 = vmatpush1.msra.mxu0 0.0
    %3185 = vmatprep.subr.mxu0 0.0
    %3186 = vmatpush1.msra.mxu0 0.0
    %3187 = vmatprep.subr.mxu0 0.0
    %3188 = vmatpush1.msra.mxu0 0.0
    %3189 = vmatprep.subr.mxu0 0.0
    %3190 = vmatpush1.msra.mxu0 0.0
    %3191 = vmatprep.subr.mxu0 0.0
    %3192 = vmatpush1.msra.mxu0 0.0
    %3193 = vmatprep.mubr.f32.mxu0 0.0
    %3194 = vmatmul.mubr.f32.gmra.mrb[0].mxu0 %v3127
    %v3195 = vpop.f32.mrb[0].mxu0
    %v3196 = vadd.f32 0.0, %v3195
    %v3197 = vpop.f32.mrb[0].mxu0
    %3198 = vdwg.mxu0
    %3199 = vrot.lane.b32.xlu0 %v2284, 112
    %v3200 = vpop.permute.xlu0 %3199
    %v3203 = vsel %vm374, %v3122, 0
    %3205 = vmatprep.subr.mxu0 0.0
    %3206 = vmatpush1.msra.mxu0 %v3200
    %3207 = vmatprep.subr.mxu0 0.0
    %3208 = vmatpush1.msra.mxu0 0.0
    %3209 = vmatprep.subr.mxu0 0.0
    %3210 = vmatpush1.msra.mxu0 0.0
    %3211 = vmatprep.subr.mxu0 0.0
    %3212 = vmatpush1.msra.mxu0 0.0
    %3213 = vmatprep.subr.mxu0 0.0
    %3214 = vmatpush1.msra.mxu0 0.0
    %3215 = vmatprep.subr.mxu0 0.0
    %3216 = vmatpush1.msra.mxu0 0.0
    %3217 = vmatprep.subr.mxu0 0.0
    %3218 = vmatpush1.msra.mxu0 0.0
    %3219 = vmatprep.subr.mxu0 0.0
    %3220 = vmatpush1.msra.mxu0 0.0
    %3221 = vmatprep.subr.mxu0 0.0
    %3222 = vmatpush1.msra.mxu0 0.0
    %3223 = vmatprep.subr.mxu0 0.0
    %3224 = vmatpush1.msra.mxu0 0.0
    %3225 = vmatprep.subr.mxu0 0.0
    %3226 = vmatpush1.msra.mxu0 0.0
    %3227 = vmatprep.subr.mxu0 0.0
    %3228 = vmatpush1.msra.mxu0 0.0
    %3229 = vmatprep.subr.mxu0 0.0
    %3230 = vmatpush1.msra.mxu0 0.0
    %3231 = vmatprep.subr.mxu0 0.0
    %3232 = vmatpush1.msra.mxu0 0.0
    %3233 = vmatprep.subr.mxu0 0.0
    %3234 = vmatpush1.msra.mxu0 0.0
    %3235 = vmatprep.subr.mxu0 0.0
    %3236 = vmatpush1.msra.mxu0 0.0
    %3237 = vmatprep.subr.mxu0 0.0
    %3238 = vmatpush1.msra.mxu0 0.0
    %3239 = vmatprep.subr.mxu0 0.0
    %3240 = vmatpush1.msra.mxu0 0.0
    %3241 = vmatprep.subr.mxu0 0.0
    %3242 = vmatpush1.msra.mxu0 0.0
    %3243 = vmatprep.subr.mxu0 0.0
    %3244 = vmatpush1.msra.mxu0 0.0
    %3245 = vmatprep.subr.mxu0 0.0
    %3246 = vmatpush1.msra.mxu0 0.0
    %3247 = vmatprep.subr.mxu0 0.0
    %3248 = vmatpush1.msra.mxu0 0.0
    %3249 = vmatprep.subr.mxu0 0.0
    %3250 = vmatpush1.msra.mxu0 0.0
    %3251 = vmatprep.subr.mxu0 0.0
    %3252 = vmatpush1.msra.mxu0 0.0
    %3253 = vmatprep.subr.mxu0 0.0
    %3254 = vmatpush1.msra.mxu0 0.0
    %3255 = vmatprep.subr.mxu0 0.0
    %3256 = vmatpush1.msra.mxu0 0.0
    %3257 = vmatprep.subr.mxu0 0.0
    %3258 = vmatpush1.msra.mxu0 0.0
    %3259 = vmatprep.subr.mxu0 0.0
    %3260 = vmatpush1.msra.mxu0 0.0
    %3261 = vmatprep.subr.mxu0 0.0
    %3262 = vmatpush1.msra.mxu0 0.0
    %3263 = vmatprep.subr.mxu0 0.0
    %3264 = vmatpush1.msra.mxu0 0.0
    %3265 = vmatprep.subr.mxu0 0.0
    %3266 = vmatpush1.msra.mxu0 0.0
    %3267 = vmatprep.subr.mxu0 0.0
    %3268 = vmatpush1.msra.mxu0 0.0
    %3269 = vmatprep.mubr.f32.mxu0 0.0
    %3270 = vmatmul.mubr.f32.gmra.mrb[0].mxu0 %v3203
    %v3271 = vpop.f32.mrb[0].mxu0
    %v3272 = vadd.f32 0.0, %v3271
    %v3273 = vpop.f32.mrb[0].mxu0
    %3274 = vdwg.mxu0
    %3275 = vrot.lane.b32.xlu0 %v2287, 104
    %v3276 = vpop.permute.xlu0 %3275
    %3277 = vrot.lane.b32.xlu0 %v2195, 72
    %v3278 = vpop.permute.xlu0 %3277
    %v3279 = vsel %vm374, %v3276, 0
    %v3281 = vsel %vm374, %v3278, 0
    %3283 = vmatprep.subr.mxu0 0.0
    %3284 = vmatpush1.xpose.msra.mxu0 %v3281
    %3285 = vmatprep.subr.mxu0 0.0
    %3286 = vmatpush1.xpose.msra.mxu0 0.0
    %3287 = vmatprep.subr.mxu0 0.0
    %3288 = vmatpush1.xpose.msra.mxu0 0.0
    %3289 = vmatprep.subr.mxu0 0.0
    %3290 = vmatpush1.xpose.msra.mxu0 0.0
    %3291 = vmatprep.subr.mxu0 0.0
    %3292 = vmatpush1.xpose.msra.mxu0 0.0
    %3293 = vmatprep.subr.mxu0 0.0
    %3294 = vmatpush1.xpose.msra.mxu0 0.0
    %3295 = vmatprep.subr.mxu0 0.0
    %3296 = vmatpush1.xpose.msra.mxu0 0.0
    %3297 = vmatprep.subr.mxu0 0.0
    %3298 = vmatpush1.xpose.msra.mxu0 0.0
    %3299 = vmatprep.subr.mxu0 0.0
    %3300 = vmatpush1.xpose.msra.mxu0 0.0
    %3301 = vmatprep.subr.mxu0 0.0
    %3302 = vmatpush1.xpose.msra.mxu0 0.0
    %3303 = vmatprep.subr.mxu0 0.0
    %3304 = vmatpush1.xpose.msra.mxu0 0.0
    %3305 = vmatprep.subr.mxu0 0.0
    %3306 = vmatpush1.xpose.msra.mxu0 0.0
    %3307 = vmatprep.subr.mxu0 0.0
    %3308 = vmatpush1.xpose.msra.mxu0 0.0
    %3309 = vmatprep.subr.mxu0 0.0
    %3310 = vmatpush1.xpose.msra.mxu0 0.0
    %3311 = vmatprep.subr.mxu0 0.0
    %3312 = vmatpush1.xpose.msra.mxu0 0.0
    %3313 = vmatprep.subr.mxu0 0.0
    %3314 = vmatpush1.xpose.msra.mxu0 0.0
    %3315 = vmatprep.subr.mxu0 0.0
    %3316 = vmatpush1.xpose.msra.mxu0 0.0
    %3317 = vmatprep.subr.mxu0 0.0
    %3318 = vmatpush1.xpose.msra.mxu0 0.0
    %3319 = vmatprep.subr.mxu0 0.0
    %3320 = vmatpush1.xpose.msra.mxu0 0.0
    %3321 = vmatprep.subr.mxu0 0.0
    %3322 = vmatpush1.xpose.msra.mxu0 0.0
    %3323 = vmatprep.subr.mxu0 0.0
    %3324 = vmatpush1.xpose.msra.mxu0 0.0
    %3325 = vmatprep.subr.mxu0 0.0
    %3326 = vmatpush1.xpose.msra.mxu0 0.0
    %3327 = vmatprep.subr.mxu0 0.0
    %3328 = vmatpush1.xpose.msra.mxu0 0.0
    %3329 = vmatprep.subr.mxu0 0.0
    %3330 = vmatpush1.xpose.msra.mxu0 0.0
    %3331 = vmatprep.subr.mxu0 0.0
    %3332 = vmatpush1.xpose.msra.mxu0 0.0
    %3333 = vmatprep.subr.mxu0 0.0
    %3334 = vmatpush1.xpose.msra.mxu0 0.0
    %3335 = vmatprep.subr.mxu0 0.0
    %3336 = vmatpush1.xpose.msra.mxu0 0.0
    %3337 = vmatprep.subr.mxu0 0.0
    %3338 = vmatpush1.xpose.msra.mxu0 0.0
    %3339 = vmatprep.subr.mxu0 0.0
    %3340 = vmatpush1.xpose.msra.mxu0 0.0
    %3341 = vmatprep.subr.mxu0 0.0
    %3342 = vmatpush1.xpose.msra.mxu0 0.0
    %3343 = vmatprep.subr.mxu0 0.0
    %3344 = vmatpush1.xpose.msra.mxu0 0.0
    %3345 = vmatprep.subr.mxu0 0.0
    %3346 = vmatpush1.xpose.msra.mxu0 0.0
    %3347 = vmatprep.mubr.f32.mxu0 0.0
    %3348 = vmatmul.mubr.f32.gmra.mrb[0].mxu0 %v3279
    %v3349 = vpop.f32.mrb[0].mxu0
    %v3350 = vadd.f32 0.0, %v3349
    %v3351 = vpop.f32.mrb[0].mxu0
    %3352 = vdwg.mxu0
    %3353 = vrot.lane.b32.xlu0 %v2288, 104
    %v3354 = vpop.permute.xlu0 %3353
    %3355 = vrot.lane.b32.xlu0 %v2196, 72
    %v3356 = vpop.permute.xlu0 %3355
    %v3357 = vsel %vm374, %v3354, 0
    %v3359 = vsel %vm374, %v3356, 0
    %3361 = vmatprep.subr.mxu0 0.0
    %3362 = vmatpush1.xpose.msra.mxu0 %v3359
    %3363 = vmatprep.subr.mxu0 0.0
    %3364 = vmatpush1.xpose.msra.mxu0 0.0
    %3365 = vmatprep.subr.mxu0 0.0
    %3366 = vmatpush1.xpose.msra.mxu0 0.0
    %3367 = vmatprep.subr.mxu0 0.0
    %3368 = vmatpush1.xpose.msra.mxu0 0.0
    %3369 = vmatprep.subr.mxu0 0.0
    %3370 = vmatpush1.xpose.msra.mxu0 0.0
    %3371 = vmatprep.subr.mxu0 0.0
    %3372 = vmatpush1.xpose.msra.mxu0 0.0
    %3373 = vmatprep.subr.mxu0 0.0
    %3374 = vmatpush1.xpose.msra.mxu0 0.0
    %3375 = vmatprep.subr.mxu0 0.0
    %3376 = vmatpush1.xpose.msra.mxu0 0.0
    %3377 = vmatprep.subr.mxu0 0.0
    %3378 = vmatpush1.xpose.msra.mxu0 0.0
    %3379 = vmatprep.subr.mxu0 0.0
    %3380 = vmatpush1.xpose.msra.mxu0 0.0
    %3381 = vmatprep.subr.mxu0 0.0
    %3382 = vmatpush1.xpose.msra.mxu0 0.0
    %3383 = vmatprep.subr.mxu0 0.0
    %3384 = vmatpush1.xpose.msra.mxu0 0.0
    %3385 = vmatprep.subr.mxu0 0.0
    %3386 = vmatpush1.xpose.msra.mxu0 0.0
    %3387 = vmatprep.subr.mxu0 0.0
    %3388 = vmatpush1.xpose.msra.mxu0 0.0
    %3389 = vmatprep.subr.mxu0 0.0
    %3390 = vmatpush1.xpose.msra.mxu0 0.0
    %3391 = vmatprep.subr.mxu0 0.0
    %3392 = vmatpush1.xpose.msra.mxu0 0.0
    %3393 = vmatprep.subr.mxu0 0.0
    %3394 = vmatpush1.xpose.msra.mxu0 0.0
    %3395 = vmatprep.subr.mxu0 0.0
    %3396 = vmatpush1.xpose.msra.mxu0 0.0
    %3397 = vmatprep.subr.mxu0 0.0
    %3398 = vmatpush1.xpose.msra.mxu0 0.0
    %3399 = vmatprep.subr.mxu0 0.0
    %3400 = vmatpush1.xpose.msra.mxu0 0.0
    %3401 = vmatprep.subr.mxu0 0.0
    %3402 = vmatpush1.xpose.msra.mxu0 0.0
    %3403 = vmatprep.subr.mxu0 0.0
    %3404 = vmatpush1.xpose.msra.mxu0 0.0
    %3405 = vmatprep.subr.mxu0 0.0
    %3406 = vmatpush1.xpose.msra.mxu0 0.0
    %3407 = vmatprep.subr.mxu0 0.0
    %3408 = vmatpush1.xpose.msra.mxu0 0.0
    %3409 = vmatprep.subr.mxu0 0.0
    %3410 = vmatpush1.xpose.msra.mxu0 0.0
    %3411 = vmatprep.subr.mxu0 0.0
    %3412 = vmatpush1.xpose.msra.mxu0 0.0
    %3413 = vmatprep.subr.mxu0 0.0
    %3414 = vmatpush1.xpose.msra.mxu0 0.0
    %3415 = vmatprep.subr.mxu0 0.0
    %3416 = vmatpush1.xpose.msra.mxu0 0.0
    %3417 = vmatprep.subr.mxu0 0.0
    %3418 = vmatpush1.xpose.msra.mxu0 0.0
    %3419 = vmatprep.subr.mxu0 0.0
    %3420 = vmatpush1.xpose.msra.mxu0 0.0
    %3421 = vmatprep.subr.mxu0 0.0
    %3422 = vmatpush1.xpose.msra.mxu0 0.0
    %3423 = vmatprep.subr.mxu0 0.0
    %3424 = vmatpush1.xpose.msra.mxu0 0.0
    %3425 = vmatprep.mubr.f32.mxu0 0.0
    %3426 = vmatmul.mubr.f32.gmra.mrb[0].mxu0 %v3357
    %v3427 = vpop.f32.mrb[0].mxu0
    %v3428 = vadd.f32 0.0, %v3427
    %v3429 = vpop.f32.mrb[0].mxu0
    %3430 = vdwg.mxu0
    %v3431 = vsel %vm374, %v3350, -inf
    %3432 = vmax.xlane.f32.xlu0 %v3431
    %v3433 = vpop.xlane.xlu0 %3432
    %v3434 = vsel %vm374, %v3428, -inf
    %3435 = vmax.xlane.f32.xlu0 %v3434
    %v3436 = vpop.xlane.xlu0 %3435
    %v3437 = vsub.f32 %v3350, %v3433
    %v3438 = vsub.f32 %v3428, %v3436
    %v3439 = vmul.f32 %v3437, 1.442695
    %v3440 = vpow.pop %v3439
    %v3441 = vmul.f32 %v3438, 1.442695
    %v3442 = vpow.pop %v3441
    %v3443 = vsel %vm374, %v3440, 0.0
    %3444 = vadd.xlane.f32.xlu0 %v3443
    %v3445 = vpop.xlane.xlu0 %3444
    %v3446 = vsel %vm374, %v3442, 0.0
    %3447 = vadd.xlane.f32.xlu0 %v3446
    %v3448 = vpop.xlane.xlu0 %3447
    %v3449 = vrcp.pop %v3445
    %v3450 = vrcp.pop %v3448
    %v3451 = vmul.f32 %v3440, %v3449
    %v3452 = vmul.f32 %v3442, %v3450
    %3453 = vrot.lane.b32.xlu0 %v2279, 104
    %v3454 = vpop.permute.xlu0 %3453
    %v3457 = vsel %vm374, %v3451, 0
    %3459 = vmatprep.subr.mxu0 0.0
    %3460 = vmatpush1.msra.mxu0 %v3454
    %3461 = vmatprep.subr.mxu0 0.0
    %3462 = vmatpush1.msra.mxu0 0.0
    %3463 = vmatprep.subr.mxu0 0.0
    %3464 = vmatpush1.msra.mxu0 0.0
    %3465 = vmatprep.subr.mxu0 0.0
    %3466 = vmatpush1.msra.mxu0 0.0
    %3467 = vmatprep.subr.mxu0 0.0
    %3468 = vmatpush1.msra.mxu0 0.0
    %3469 = vmatprep.subr.mxu0 0.0
    %3470 = vmatpush1.msra.mxu0 0.0
    %3471 = vmatprep.subr.mxu0 0.0
    %3472 = vmatpush1.msra.mxu0 0.0
    %3473 = vmatprep.subr.mxu0 0.0
    %3474 = vmatpush1.msra.mxu0 0.0
    %3475 = vmatprep.subr.mxu0 0.0
    %3476 = vmatpush1.msra.mxu0 0.0
    %3477 = vmatprep.subr.mxu0 0.0
    %3478 = vmatpush1.msra.mxu0 0.0
    %3479 = vmatprep.subr.mxu0 0.0
    %3480 = vmatpush1.msra.mxu0 0.0
    %3481 = vmatprep.subr.mxu0 0.0
    %3482 = vmatpush1.msra.mxu0 0.0
    %3483 = vmatprep.subr.mxu0 0.0
    %3484 = vmatpush1.msra.mxu0 0.0
    %3485 = vmatprep.subr.mxu0 0.0
    %3486 = vmatpush1.msra.mxu0 0.0
    %3487 = vmatprep.subr.mxu0 0.0
    %3488 = vmatpush1.msra.mxu0 0.0
    %3489 = vmatprep.subr.mxu0 0.0
    %3490 = vmatpush1.msra.mxu0 0.0
    %3491 = vmatprep.subr.mxu0 0.0
    %3492 = vmatpush1.msra.mxu0 0.0
    %3493 = vmatprep.subr.mxu0 0.0
    %3494 = vmatpush1.msra.mxu0 0.0
    %3495 = vmatprep.subr.mxu0 0.0
    %3496 = vmatpush1.msra.mxu0 0.0
    %3497 = vmatprep.subr.mxu0 0.0
    %3498 = vmatpush1.msra.mxu0 0.0
    %3499 = vmatprep.subr.mxu0 0.0
    %3500 = vmatpush1.msra.mxu0 0.0
    %3501 = vmatprep.subr.mxu0 0.0
    %3502 = vmatpush1.msra.mxu0 0.0
    %3503 = vmatprep.subr.mxu0 0.0
    %3504 = vmatpush1.msra.mxu0 0.0
    %3505 = vmatprep.subr.mxu0 0.0
    %3506 = vmatpush1.msra.mxu0 0.0
    %3507 = vmatprep.subr.mxu0 0.0
    %3508 = vmatpush1.msra.mxu0 0.0
    %3509 = vmatprep.subr.mxu0 0.0
    %3510 = vmatpush1.msra.mxu0 0.0
    %3511 = vmatprep.subr.mxu0 0.0
    %3512 = vmatpush1.msra.mxu0 0.0
    %3513 = vmatprep.subr.mxu0 0.0
    %3514 = vmatpush1.msra.mxu0 0.0
    %3515 = vmatprep.subr.mxu0 0.0
    %3516 = vmatpush1.msra.mxu0 0.0
    %3517 = vmatprep.subr.mxu0 0.0
    %3518 = vmatpush1.msra.mxu0 0.0
    %3519 = vmatprep.subr.mxu0 0.0
    %3520 = vmatpush1.msra.mxu0 0.0
    %3521 = vmatprep.subr.mxu0 0.0
    %3522 = vmatpush1.msra.mxu0 0.0
    %3523 = vmatprep.mubr.f32.mxu0 0.0
    %3524 = vmatmul.mubr.f32.gmra.mrb[0].mxu0 %v3457
    %v3525 = vpop.f32.mrb[0].mxu0
    %v3526 = vadd.f32 0.0, %v3525
    %v3527 = vpop.f32.mrb[0].mxu0
    %3528 = vdwg.mxu0
    %3529 = vrot.lane.b32.xlu0 %v2284, 104
    %v3530 = vpop.permute.xlu0 %3529
    %v3533 = vsel %vm374, %v3452, 0
    %3535 = vmatprep.subr.mxu0 0.0
    %3536 = vmatpush1.msra.mxu0 %v3530
    %3537 = vmatprep.subr.mxu0 0.0
    %3538 = vmatpush1.msra.mxu0 0.0
    %3539 = vmatprep.subr.mxu0 0.0
    %3540 = vmatpush1.msra.mxu0 0.0
    %3541 = vmatprep.subr.mxu0 0.0
    %3542 = vmatpush1.msra.mxu0 0.0
    %3543 = vmatprep.subr.mxu0 0.0
    %3544 = vmatpush1.msra.mxu0 0.0
    %3545 = vmatprep.subr.mxu0 0.0
    %3546 = vmatpush1.msra.mxu0 0.0
    %3547 = vmatprep.subr.mxu0 0.0
    %3548 = vmatpush1.msra.mxu0 0.0
    %3549 = vmatprep.subr.mxu0 0.0
    %3550 = vmatpush1.msra.mxu0 0.0
    %3551 = vmatprep.subr.mxu0 0.0
    %3552 = vmatpush1.msra.mxu0 0.0
    %3553 = vmatprep.subr.mxu0 0.0
    %3554 = vmatpush1.msra.mxu0 0.0
    %3555 = vmatprep.subr.mxu0 0.0
    %3556 = vmatpush1.msra.mxu0 0.0
    %3557 = vmatprep.subr.mxu0 0.0
    %3558 = vmatpush1.msra.mxu0 0.0
    %3559 = vmatprep.subr.mxu0 0.0
    %3560 = vmatpush1.msra.mxu0 0.0
    %3561 = vmatprep.subr.mxu0 0.0
    %3562 = vmatpush1.msra.mxu0 0.0
    %3563 = vmatprep.subr.mxu0 0.0
    %3564 = vmatpush1.msra.mxu0 0.0
    %3565 = vmatprep.subr.mxu0 0.0
    %3566 = vmatpush1.msra.mxu0 0.0
    %3567 = vmatprep.subr.mxu0 0.0
    %3568 = vmatpush1.msra.mxu0 0.0
    %3569 = vmatprep.subr.mxu0 0.0
    %3570 = vmatpush1.msra.mxu0 0.0
    %3571 = vmatprep.subr.mxu0 0.0
    %3572 = vmatpush1.msra.mxu0 0.0
    %3573 = vmatprep.subr.mxu0 0.0
    %3574 = vmatpush1.msra.mxu0 0.0
    %3575 = vmatprep.subr.mxu0 0.0
    %3576 = vmatpush1.msra.mxu0 0.0
    %3577 = vmatprep.subr.mxu0 0.0
    %3578 = vmatpush1.msra.mxu0 0.0
    %3579 = vmatprep.subr.mxu0 0.0
    %3580 = vmatpush1.msra.mxu0 0.0
    %3581 = vmatprep.subr.mxu0 0.0
    %3582 = vmatpush1.msra.mxu0 0.0
    %3583 = vmatprep.subr.mxu0 0.0
    %3584 = vmatpush1.msra.mxu0 0.0
    %3585 = vmatprep.subr.mxu0 0.0
    %3586 = vmatpush1.msra.mxu0 0.0
    %3587 = vmatprep.subr.mxu0 0.0
    %3588 = vmatpush1.msra.mxu0 0.0
    %3589 = vmatprep.subr.mxu0 0.0
    %3590 = vmatpush1.msra.mxu0 0.0
    %3591 = vmatprep.subr.mxu0 0.0
    %3592 = vmatpush1.msra.mxu0 0.0
    %3593 = vmatprep.subr.mxu0 0.0
    %3594 = vmatpush1.msra.mxu0 0.0
    %3595 = vmatprep.subr.mxu0 0.0
    %3596 = vmatpush1.msra.mxu0 0.0
    %3597 = vmatprep.subr.mxu0 0.0
    %3598 = vmatpush1.msra.mxu0 0.0
    %3599 = vmatprep.mubr.f32.mxu0 0.0
    %3600 = vmatmul.mubr.f32.gmra.mrb[0].mxu0 %v3533
    %v3601 = vpop.f32.mrb[0].mxu0
    %v3602 = vadd.f32 0.0, %v3601
    %v3603 = vpop.f32.mrb[0].mxu0
    %3604 = vdwg.mxu0
    %3607 = vrot.lane.b32.xlu0 %v2865, 8
    %v3608 = vpop.permute.xlu0 %3607
    %3609 = vrot.lane.b32.xlu0 %v2942, 8
    %v3610 = vpop.permute.xlu0 %3609
    %3615 = vrot.lane.b32.xlu0 %v3196, 16
    %v3616 = vpop.permute.xlu0 %3615
    %3617 = vrot.lane.b32.xlu0 %v3272, 16
    %v3618 = vpop.permute.xlu0 %3617
    %3623 = vrot.lane.b32.xlu0 %v3526, 24
    %v3624 = vpop.permute.xlu0 %3623
    %3625 = vrot.lane.b32.xlu0 %v3602, 24
    %v3626 = vpop.permute.xlu0 %3625
    %v3629 = vsel %vm374, %v2537, %v3608
    %v3630 = vsel %vm374, %v2610, %v3610
    %v3631 = vsel %vm1714, %v3629, %v3616
    %v3632 = vsel %vm1714, %v3630, %v3618
    %v3633 = vsel %vm1717, %v3631, %v3624
    %v3634 = vsel %vm1717, %v3632, %v3626
    %s3635 = scalar_lea.vmem %s4, 32
    %v3636 = vld [vmem:[%s3635] sm:$0xff]
    %v3637 = vld [vmem:[%s3635 + $0x8] sm:$0xff]
    %v3638 = vld [vmem:[%s3635 + $0x10] sm:$0xff]
    %v3639 = vld [vmem:[%s3635 + $0x18] sm:$0xff]
    %v3640 = vlaneseq
    %v3641 = vshrl.u32 %v3640, 7
    %v3642 = vsub.s32 3, %v3641
    %v3643 = vrot.slane %v2091, %v3642
    %v3645 = vsel %vm184, %v3633, 0
    %v3648 = vsel %vm184, %v3634, 0
    %3650 = vmatprep.subr.mxu0 0.0
    %3651 = vmatpush1.msra.mxu0 %v3636
    %3652 = vmatprep.subr.mxu0 0.0
    %3653 = vmatpush1.msra.mxu0 %v3637
    %3654 = vmatprep.subr.mxu0 0.0
    %3655 = vmatpush1.msra.mxu0 %v3638
    %3656 = vmatprep.subr.mxu0 0.0
    %3657 = vmatpush1.msra.mxu0 %v3639
    %3658 = vmatprep.subr.mxu0 0.0
    %3659 = vmatpush1.msra.mxu0 0.0
    %3660 = vmatprep.subr.mxu0 0.0
    %3661 = vmatpush1.msra.mxu0 0.0
    %3662 = vmatprep.subr.mxu0 0.0
    %3663 = vmatpush1.msra.mxu0 0.0
    %3664 = vmatprep.subr.mxu0 0.0
    %3665 = vmatpush1.msra.mxu0 0.0
    %3666 = vmatprep.subr.mxu0 0.0
    %3667 = vmatpush1.msra.mxu0 0.0
    %3668 = vmatprep.subr.mxu0 0.0
    %3669 = vmatpush1.msra.mxu0 0.0
    %3670 = vmatprep.subr.mxu0 0.0
    %3671 = vmatpush1.msra.mxu0 0.0
    %3672 = vmatprep.subr.mxu0 0.0
    %3673 = vmatpush1.msra.mxu0 0.0
    %3674 = vmatprep.subr.mxu0 0.0
    %3675 = vmatpush1.msra.mxu0 0.0
    %3676 = vmatprep.subr.mxu0 0.0
    %3677 = vmatpush1.msra.mxu0 0.0
    %3678 = vmatprep.subr.mxu0 0.0
    %3679 = vmatpush1.msra.mxu0 0.0
    %3680 = vmatprep.subr.mxu0 0.0
    %3681 = vmatpush1.msra.mxu0 0.0
    %3682 = vmatprep.subr.mxu0 0.0
    %3683 = vmatpush1.msra.mxu0 0.0
    %3684 = vmatprep.subr.mxu0 0.0
    %3685 = vmatpush1.msra.mxu0 0.0
    %3686 = vmatprep.subr.mxu0 0.0
    %3687 = vmatpush1.msra.mxu0 0.0
    %3688 = vmatprep.subr.mxu0 0.0
    %3689 = vmatpush1.msra.mxu0 0.0
    %3690 = vmatprep.subr.mxu0 0.0
    %3691 = vmatpush1.msra.mxu0 0.0
    %3692 = vmatprep.subr.mxu0 0.0
    %3693 = vmatpush1.msra.mxu0 0.0
    %3694 = vmatprep.subr.mxu0 0.0
    %3695 = vmatpush1.msra.mxu0 0.0
    %3696 = vmatprep.subr.mxu0 0.0
    %3697 = vmatpush1.msra.mxu0 0.0
    %3698 = vmatprep.subr.mxu0 0.0
    %3699 = vmatpush1.msra.mxu0 0.0
    %3700 = vmatprep.subr.mxu0 0.0
    %3701 = vmatpush1.msra.mxu0 0.0
    %3702 = vmatprep.subr.mxu0 0.0
    %3703 = vmatpush1.msra.mxu0 0.0
    %3704 = vmatprep.subr.mxu0 0.0
    %3705 = vmatpush1.msra.mxu0 0.0
    %3706 = vmatprep.subr.mxu0 0.0
    %3707 = vmatpush1.msra.mxu0 0.0
    %3708 = vmatprep.subr.mxu0 0.0
    %3709 = vmatpush1.msra.mxu0 0.0
    %3710 = vmatprep.subr.mxu0 0.0
    %3711 = vmatpush1.msra.mxu0 0.0
    %3712 = vmatprep.subr.mxu0 0.0
    %3713 = vmatpush1.msra.mxu0 0.0
    %3714 = vmatprep.mubr.f32.mxu0 0.0
    %3715 = vmatmul.mubr.f32.gmra.mrb[0].mxu0 %v3645
    %v3716 = vpop.f32.mrb[0].mxu0
    %v3717 = vadd.f32 %v3643, %v3716
    %v3718 = vpop.f32.mrb[0].mxu0
    %3719 = vmatprep.mubr.f32.mxu0 0.0
    %3720 = vmatmul.mubr.f32.gmra.mrb[0].mxu0 %v3648
    %v3721 = vpop.f32.mrb[0].mxu0
    %v3722 = vadd.f32 %v3643, %v3721
    %v3723 = vpop.f32.mrb[0].mxu0
    %3724 = vdwg.mxu0
    %v3725 = vadd.f32 %v2088, %v3717
    %v3726 = vadd.f32 %v2089, %v3722
    %v3727 = vsel %vm184, %v3725, 0.0
    %3728 = vadd.xlane.f32.xlu0 %v3727
    %v3729 = vpop.xlane.xlu0 %3728
    %v3730 = vsel %vm184, %v3726, 0.0
    %3731 = vadd.xlane.f32.xlu0 %v3730
    %v3732 = vpop.xlane.xlu0 %3731
    %v3733 = vmul.f32 %v3729, %v1817
    %v3734 = vmul.f32 %v3732, %v1817
    %v3735 = vmul.f32 %v3725, %v3725
    %v3736 = vmul.f32 %v3726, %v3726
    %v3737 = vsel %vm184, %v3735, 0.0
    %3738 = vadd.xlane.f32.xlu0 %v3737
    %v3739 = vpop.xlane.xlu0 %3738
    %v3740 = vsel %vm184, %v3736, 0.0
    %3741 = vadd.xlane.f32.xlu0 %v3740
    %v3742 = vpop.xlane.xlu0 %3741
    %v3743 = vmul.f32 %v3739, %v1817
    %v3744 = vmul.f32 %v3742, %v1817
    %v3745 = vmul.f32 %v3733, %v3733
    %v3746 = vmul.f32 %v3734, %v3734
    %v3747 = vsub.f32 %v3743, %v3745
    %v3748 = vsub.f32 %v3744, %v3746
    %v3749 = vmax.f32 %v3747, 0.0
    %v3750 = vmax.f32 %v3748, 0.0
    %v3751 = vsub.f32 %v3725, %v3733
    %v3752 = vsub.f32 %v3726, %v3734
    %v3753 = vadd.f32 %v3749, 1e-05
    %v3754 = vadd.f32 %v3750, 1e-05
    %v3755 = vrsqrt.pop %v3753
    %v3756 = vrsqrt.pop %v3754
    %v3757 = vmul.f32 %v3751, %v3755
    %v3758 = vmul.f32 %v3752, %v3756
    %v3759 = vlaneseq
    %v3760 = vshrl.u32 %v3759, 7
    %v3761 = vsub.s32 5, %v3760
    %v3762 = vrot.slane %v2091, %v3761
    %v3763 = vmul.f32 %v3757, %v3762
    %v3764 = vmul.f32 %v3758, %v3762
    %v3765 = vlaneseq
    %v3766 = vshrl.u32 %v3765, 7
    %v3767 = vsub.s32 6, %v3766
    %v3768 = vrot.slane %v2091, %v3767
    %v3769 = vadd.f32 %v3763, %v3768
    %v3770 = vadd.f32 %v3764, %v3768
    %s3771 = scalar_lea.vmem [#allocation7], 32
    %v3772 = vld [vmem:[%s3771] sm:$0xff]
    %v3773 = vld [vmem:[%s3771 + $0x8] sm:$0xff]
    %v3774 = vld [vmem:[%s3771 + $0x10] sm:$0xff]
    %v3775 = vld [vmem:[%s3771 + $0x18] sm:$0xff]
    %s3776 = scalar_lea.vmem %s6, 1
    %v3777 = vld [vmem:[%s3776] sm:$0x1]
    %v3779 = vlaneseq
    %v3780 = vshrl.u32 %v3779, 7
    %v3781 = vsub.s32 0, %v3780
    %v3782 = vrot.slane %v3777, %v3781
    %v3785 = vsel %vm184, %v3769, 0
    %v3788 = vsel %vm184, %v3770, 0
    %3790 = vmatprep.subr.mxu0 0.0
    %3791 = vmatpush1.msra.mxu0 %v3772
    %3792 = vmatprep.subr.mxu0 0.0
    %3793 = vmatpush1.msra.mxu0 %v3773
    %3794 = vmatprep.subr.mxu0 0.0
    %3795 = vmatpush1.msra.mxu0 %v3774
    %3796 = vmatprep.subr.mxu0 0.0
    %3797 = vmatpush1.msra.mxu0 %v3775
    %3798 = vmatprep.subr.mxu0 0.0
    %3799 = vmatpush1.msra.mxu0 0.0
    %3800 = vmatprep.subr.mxu0 0.0
    %3801 = vmatpush1.msra.mxu0 0.0
    %3802 = vmatprep.subr.mxu0 0.0
    %3803 = vmatpush1.msra.mxu0 0.0
    %3804 = vmatprep.subr.mxu0 0.0
    %3805 = vmatpush1.msra.mxu0 0.0
    %3806 = vmatprep.subr.mxu0 0.0
    %3807 = vmatpush1.msra.mxu0 0.0
    %3808 = vmatprep.subr.mxu0 0.0
    %3809 = vmatpush1.msra.mxu0 0.0
    %3810 = vmatprep.subr.mxu0 0.0
    %3811 = vmatpush1.msra.mxu0 0.0
    %3812 = vmatprep.subr.mxu0 0.0
    %3813 = vmatpush1.msra.mxu0 0.0
    %3814 = vmatprep.subr.mxu0 0.0
    %3815 = vmatpush1.msra.mxu0 0.0
    %3816 = vmatprep.subr.mxu0 0.0
    %3817 = vmatpush1.msra.mxu0 0.0
    %3818 = vmatprep.subr.mxu0 0.0
    %3819 = vmatpush1.msra.mxu0 0.0
    %3820 = vmatprep.subr.mxu0 0.0
    %3821 = vmatpush1.msra.mxu0 0.0
    %3822 = vmatprep.subr.mxu0 0.0
    %3823 = vmatpush1.msra.mxu0 0.0
    %3824 = vmatprep.subr.mxu0 0.0
    %3825 = vmatpush1.msra.mxu0 0.0
    %3826 = vmatprep.subr.mxu0 0.0
    %3827 = vmatpush1.msra.mxu0 0.0
    %3828 = vmatprep.subr.mxu0 0.0
    %3829 = vmatpush1.msra.mxu0 0.0
    %3830 = vmatprep.subr.mxu0 0.0
    %3831 = vmatpush1.msra.mxu0 0.0
    %3832 = vmatprep.subr.mxu0 0.0
    %3833 = vmatpush1.msra.mxu0 0.0
    %3834 = vmatprep.subr.mxu0 0.0
    %3835 = vmatpush1.msra.mxu0 0.0
    %3836 = vmatprep.subr.mxu0 0.0
    %3837 = vmatpush1.msra.mxu0 0.0
    %3838 = vmatprep.subr.mxu0 0.0
    %3839 = vmatpush1.msra.mxu0 0.0
    %3840 = vmatprep.subr.mxu0 0.0
    %3841 = vmatpush1.msra.mxu0 0.0
    %3842 = vmatprep.subr.mxu0 0.0
    %3843 = vmatpush1.msra.mxu0 0.0
    %3844 = vmatprep.subr.mxu0 0.0
    %3845 = vmatpush1.msra.mxu0 0.0
    %3846 = vmatprep.subr.mxu0 0.0
    %3847 = vmatpush1.msra.mxu0 0.0
    %3848 = vmatprep.subr.mxu0 0.0
    %3849 = vmatpush1.msra.mxu0 0.0
    %3850 = vmatprep.subr.mxu0 0.0
    %3851 = vmatpush1.msra.mxu0 0.0
    %3852 = vmatprep.subr.mxu0 0.0
    %3853 = vmatpush1.msra.mxu0 0.0
    %3854 = vmatprep.mubr.f32.mxu0 0.0
    %3855 = vmatmul.mubr.f32.gmra.mrb[0].mxu0 %v3785
    %v3856 = vpop.f32.mrb[0].mxu0
    %v3857 = vadd.f32 %v3782, %v3856
    %v3858 = vpop.f32.mrb[0].mxu0
    %3859 = vmatprep.mubr.f32.mxu0 0.0
    %3860 = vmatmul.mubr.f32.gmra.mrb[0].mxu0 %v3788
    %v3861 = vpop.f32.mrb[0].mxu0
    %v3862 = vadd.f32 %v3782, %v3861
    %v3863 = vpop.f32.mrb[0].mxu0
    %3864 = vdwg.mxu0
    %v3865 = vmax.f32 %v3857, 0.0
    %v3866 = vmax.f32 %v3862, 0.0
    %s3867 = scalar_lea.vmem %s7, 64
    %v3868 = vld [vmem:[%s3867] sm:$0xff]
    %v3869 = vld [vmem:[%s3867 + $0x8] sm:$0xff]
    %v3870 = vld [vmem:[%s3867 + $0x10] sm:$0xff]
    %v3871 = vld [vmem:[%s3867 + $0x18] sm:$0xff]
    %v3872 = vld [vmem:[%s3867 + $0x20] sm:$0xff]
    %v3873 = vld [vmem:[%s3867 + $0x28] sm:$0xff]
    %v3874 = vld [vmem:[%s3867 + $0x30] sm:$0xff]
    %v3875 = vld [vmem:[%s3867 + $0x38] sm:$0xff]
    %v3876 = vlaneseq
    %v3877 = vshrl.u32 %v3876, 7
    %v3878 = vsub.s32 4, %v3877
    %v3879 = vrot.slane %v2091, %v3878
    %v3881 = vsel %vm1962, %v3865, 0
    %v3884 = vsel %vm1962, %v3866, 0
    %3886 = vmatprep.subr.mxu0 0.0
    %3887 = vmatpush1.msra.mxu0 %v3868
    %3888 = vmatprep.subr.mxu0 0.0
    %3889 = vmatpush1.msra.mxu0 %v3869
    %3890 = vmatprep.subr.mxu0 0.0
    %3891 = vmatpush1.msra.mxu0 %v3870
    %3892 = vmatprep.subr.mxu0 0.0
    %3893 = vmatpush1.msra.mxu0 %v3871
    %3894 = vmatprep.subr.mxu0 0.0
    %3895 = vmatpush1.msra.mxu0 %v3872
    %3896 = vmatprep.subr.mxu0 0.0
    %3897 = vmatpush1.msra.mxu0 %v3873
    %3898 = vmatprep.subr.mxu0 0.0
    %3899 = vmatpush1.msra.mxu0 %v3874
    %3900 = vmatprep.subr.mxu0 0.0
    %3901 = vmatpush1.msra.mxu0 %v3875
    %3902 = vmatprep.subr.mxu0 0.0
    %3903 = vmatpush1.msra.mxu0 0.0
    %3904 = vmatprep.subr.mxu0 0.0
    %3905 = vmatpush1.msra.mxu0 0.0
    %3906 = vmatprep.subr.mxu0 0.0
    %3907 = vmatpush1.msra.mxu0 0.0
    %3908 = vmatprep.subr.mxu0 0.0
    %3909 = vmatpush1.msra.mxu0 0.0
    %3910 = vmatprep.subr.mxu0 0.0
    %3911 = vmatpush1.msra.mxu0 0.0
    %3912 = vmatprep.subr.mxu0 0.0
    %3913 = vmatpush1.msra.mxu0 0.0
    %3914 = vmatprep.subr.mxu0 0.0
    %3915 = vmatpush1.msra.mxu0 0.0
    %3916 = vmatprep.subr.mxu0 0.0
    %3917 = vmatpush1.msra.mxu0 0.0
    %3918 = vmatprep.subr.mxu0 0.0
    %3919 = vmatpush1.msra.mxu0 0.0
    %3920 = vmatprep.subr.mxu0 0.0
    %3921 = vmatpush1.msra.mxu0 0.0
    %3922 = vmatprep.subr.mxu0 0.0
    %3923 = vmatpush1.msra.mxu0 0.0
    %3924 = vmatprep.subr.mxu0 0.0
    %3925 = vmatpush1.msra.mxu0 0.0
    %3926 = vmatprep.subr.mxu0 0.0
    %3927 = vmatpush1.msra.mxu0 0.0
    %3928 = vmatprep.subr.mxu0 0.0
    %3929 = vmatpush1.msra.mxu0 0.0
    %3930 = vmatprep.subr.mxu0 0.0
    %3931 = vmatpush1.msra.mxu0 0.0
    %3932 = vmatprep.subr.mxu0 0.0
    %3933 = vmatpush1.msra.mxu0 0.0
    %3934 = vmatprep.subr.mxu0 0.0
    %3935 = vmatpush1.msra.mxu0 0.0
    %3936 = vmatprep.subr.mxu0 0.0
    %3937 = vmatpush1.msra.mxu0 0.0
    %3938 = vmatprep.subr.mxu0 0.0
    %3939 = vmatpush1.msra.mxu0 0.0
    %3940 = vmatprep.subr.mxu0 0.0
    %3941 = vmatpush1.msra.mxu0 0.0
    %3942 = vmatprep.subr.mxu0 0.0
    %3943 = vmatpush1.msra.mxu0 0.0
    %3944 = vmatprep.subr.mxu0 0.0
    %3945 = vmatpush1.msra.mxu0 0.0
    %3946 = vmatprep.subr.mxu0 0.0
    %3947 = vmatpush1.msra.mxu0 0.0
    %3948 = vmatprep.subr.mxu0 0.0
    %3949 = vmatpush1.msra.mxu0 0.0
    %3950 = vmatprep.mubr.f32.mxu0 0.0
    %3951 = vmatmul.mubr.f32.gmra.mrb[0].mxu0 %v3881
    %v3952 = vpop.f32.mrb[0].mxu0
    %v3953 = vadd.f32 %v3879, %v3952
    %v3954 = vpop.f32.mrb[0].mxu0
    %3955 = vmatprep.mubr.f32.mxu0 0.0
    %3956 = vmatmul.mubr.f32.gmra.mrb[0].mxu0 %v3884
    %v3957 = vpop.f32.mrb[0].mxu0
    %v3958 = vadd.f32 %v3879, %v3957
    %v3959 = vpop.f32.mrb[0].mxu0
    %3960 = vdwg.mxu0
    %v3961 = vadd.f32 %v3769, %v3953
    %v3962 = vadd.f32 %v3770, %v3958
    %v3963 = vsel %vm184, %v3961, 0.0
    %3964 = vadd.xlane.f32.xlu0 %v3963
    %v3965 = vpop.xlane.xlu0 %3964
    %v3966 = vsel %vm184, %v3962, 0.0
    %3967 = vadd.xlane.f32.xlu0 %v3966
    %v3968 = vpop.xlane.xlu0 %3967
    %v3969 = vmul.f32 %v3965, %v1817
    %v3970 = vmul.f32 %v3968, %v1817
    %v3971 = vmul.f32 %v3961, %v3961
    %v3972 = vmul.f32 %v3962, %v3962
    %v3973 = vsel %vm184, %v3971, 0.0
    %3974 = vadd.xlane.f32.xlu0 %v3973
    %v3975 = vpop.xlane.xlu0 %3974
    %v3976 = vsel %vm184, %v3972, 0.0
    %3977 = vadd.xlane.f32.xlu0 %v3976
    %v3978 = vpop.xlane.xlu0 %3977
    %v3979 = vmul.f32 %v3975, %v1817
    %v3980 = vmul.f32 %v3978, %v1817
    %v3981 = vmul.f32 %v3969, %v3969
    %v3982 = vmul.f32 %v3970, %v3970
    %v3983 = vsub.f32 %v3979, %v3981
    %v3984 = vsub.f32 %v3980, %v3982
    %v3985 = vmax.f32 %v3983, 0.0
    %v3986 = vmax.f32 %v3984, 0.0
    %v3987 = vsub.f32 %v3961, %v3969
    %v3988 = vsub.f32 %v3962, %v3970
    %v3989 = vadd.f32 %v3985, 1e-05
    %v3990 = vadd.f32 %v3986, 1e-05
    %v3991 = vrsqrt.pop %v3989
    %v3992 = vrsqrt.pop %v3990
    %v3993 = vmul.f32 %v3987, %v3991
    %v3994 = vmul.f32 %v3988, %v3992
    %v3995 = vlaneseq
    %v3996 = vshrl.u32 %v3995, 7
    %v3997 = vsub.s32 7, %v3996
    %v3998 = vrot.slane %v2091, %v3997
    %v3999 = vmul.f32 %v3993, %v3998
    %v4000 = vmul.f32 %v3994, %v3998
    %v4001 = vlaneseq
    %v4002 = vshrl.u32 %v4001, 7
    %v4003 = vsub.s32 0, %v4002
    %v4004 = vrot.slane %v2092, %v4003
    %v4005 = vadd.f32 %v3999, %v4004
    %v4006 = vadd.f32 %v4000, %v4004
    %v4007 = vld [vmem:[%s9] sm:$0x3]
    %v4008 = vsel %vm184, %v4005, 0.0
    %4009 = vadd.xlane.f32.xlu0 %v4008
    %v4010 = vpop.xlane.xlu0 %4009
    %v4011 = vsel %vm184, %v4006, 0.0
    %4012 = vadd.xlane.f32.xlu0 %v4011
    %v4013 = vpop.xlane.xlu0 %4012
    %v4014 = vmul.f32 %v4010, %v1817
    %v4015 = vmul.f32 %v4013, %v1817
    %v4016 = vmul.f32 %v4005, %v4005
    %v4017 = vmul.f32 %v4006, %v4006
    %v4018 = vsel %vm184, %v4016, 0.0
    %4019 = vadd.xlane.f32.xlu0 %v4018
    %v4020 = vpop.xlane.xlu0 %4019
    %v4021 = vsel %vm184, %v4017, 0.0
    %4022 = vadd.xlane.f32.xlu0 %v4021
    %v4023 = vpop.xlane.xlu0 %4022
    %v4024 = vmul.f32 %v4020, %v1817
    %v4025 = vmul.f32 %v4023, %v1817
    %v4026 = vmul.f32 %v4014, %v4014
    %v4027 = vmul.f32 %v4015, %v4015
    %v4028 = vsub.f32 %v4024, %v4026
    %v4029 = vsub.f32 %v4025, %v4027
    %v4030 = vmax.f32 %v4028, 0.0
    %v4031 = vmax.f32 %v4029, 0.0
    %v4032 = vsub.f32 %v4005, %v4014
    %v4033 = vsub.f32 %v4006, %v4015
    %v4034 = vadd.f32 %v4030, 1e-05
    %v4035 = vadd.f32 %v4031, 1e-05
    %v4036 = vrsqrt.pop %v4034
    %v4037 = vrsqrt.pop %v4035
    %v4038 = vmul.f32 %v4032, %v4036
    %v4039 = vmul.f32 %v4033, %v4037
    %v4040 = vlaneseq
    %v4041 = vshrl.u32 %v4040, 7
    %v4042 = vsub.s32 0, %v4041
    %v4043 = vrot.slane %v4007, %v4042
    %v4044 = vmul.f32 %v4038, %v4043
    %v4045 = vmul.f32 %v4039, %v4043
    %v4046 = vlaneseq
    %v4047 = vshrl.u32 %v4046, 7
    %v4048 = vsub.s32 1, %v4047
    %v4049 = vrot.slane %v4007, %v4048
    %v4050 = vadd.f32 %v4044, %v4049
    %v4051 = vadd.f32 %v4045, %v4049
    %v4053 = vcombine.high %v4050, %v4050
    %v4055 = vunpack.c.l.s4 1966171168
    %v4056 = vunpack.c.0.s8 %v4055
    %v4057 = vlaneseq
    %v4058 = vshrl.u32 %v4057, 7
    %v4059 = vsub.s32 %v4056, %v4058
    %v4060 = vrot.slane %v4050, %v4059
    %v4062 = vunpack.c.l.s4 1966171168
    %v4063 = vunpack.c.0.s8 %v4062
    %v4064 = vlaneseq
    %v4065 = vshrl.u32 %v4064, 7
    %v4066 = vsub.s32 %v4063, %v4065
    %v4067 = vrot.slane %v4053, %v4066
    %v4068 = vcombine.high %v4060, %v4060
    %v4069 = vcombine.high %v4067, %v4067
    %v4071 = vunpack.c.l.s4 1966171168
    %v4072 = vunpack.c.0.s8 %v4071
    %v4073 = vlaneseq
    %v4074 = vshrl.u32 %v4073, 7
    %v4075 = vsub.s32 %v4072, %v4074
    %v4076 = vrot.slane %v4060, %v4075
    %v4078 = vunpack.c.l.s4 1966171168
    %v4079 = vunpack.c.0.s8 %v4078
    %v4080 = vlaneseq
    %v4081 = vshrl.u32 %v4080, 7
    %v4082 = vsub.s32 %v4079, %v4081
    %v4083 = vrot.slane %v4067, %v4082
    %v4085 = vunpack.c.l.s4 1966171168
    %v4086 = vunpack.c.0.s8 %v4085
    %v4087 = vlaneseq
    %v4088 = vshrl.u32 %v4087, 7
    %v4089 = vsub.s32 %v4086, %v4088
    %v4090 = vrot.slane %v4068, %v4089
    %v4092 = vunpack.c.l.s4 1966171168
    %v4093 = vunpack.c.0.s8 %v4092
    %v4094 = vlaneseq
    %v4095 = vshrl.u32 %v4094, 7
    %v4096 = vsub.s32 %v4093, %v4095
    %v4097 = vrot.slane %v4069, %v4096
    %v4098 = vcombine.high %v4076, %v4076
    %v4099 = vcombine.high %v4083, %v4083
    %v4100 = vcombine.high %v4090, %v4090
    %v4101 = vcombine.high %v4097, %v4097
    %v4111 = vcombine.high %v4051, %v4051
    %v4113 = vunpack.c.l.s4 1966171168
    %v4114 = vunpack.c.0.s8 %v4113
    %v4115 = vlaneseq
    %v4116 = vshrl.u32 %v4115, 7
    %v4117 = vsub.s32 %v4114, %v4116
    %v4118 = vrot.slane %v4051, %v4117
    %v4120 = vunpack.c.l.s4 1966171168
    %v4121 = vunpack.c.0.s8 %v4120
    %v4122 = vlaneseq
    %v4123 = vshrl.u32 %v4122, 7
    %v4124 = vsub.s32 %v4121, %v4123
    %v4125 = vrot.slane %v4111, %v4124
    %v4126 = vcombine.high %v4118, %v4118
    %v4127 = vcombine.high %v4125, %v4125
    %v4129 = vunpack.c.l.s4 1966171168
    %v4130 = vunpack.c.0.s8 %v4129
    %v4131 = vlaneseq
    %v4132 = vshrl.u32 %v4131, 7
    %v4133 = vsub.s32 %v4130, %v4132
    %v4134 = vrot.slane %v4118, %v4133
    %v4136 = vunpack.c.l.s4 1966171168
    %v4137 = vunpack.c.0.s8 %v4136
    %v4138 = vlaneseq
    %v4139 = vshrl.u32 %v4138, 7
    %v4140 = vsub.s32 %v4137, %v4139
    %v4141 = vrot.slane %v4125, %v4140
    %v4143 = vunpack.c.l.s4 1966171168
    %v4144 = vunpack.c.0.s8 %v4143
    %v4145 = vlaneseq
    %v4146 = vshrl.u32 %v4145, 7
    %v4147 = vsub.s32 %v4144, %v4146
    %v4148 = vrot.slane %v4126, %v4147
    %v4150 = vunpack.c.l.s4 1966171168
    %v4151 = vunpack.c.0.s8 %v4150
    %v4152 = vlaneseq
    %v4153 = vshrl.u32 %v4152, 7
    %v4154 = vsub.s32 %v4151, %v4153
    %v4155 = vrot.slane %v4127, %v4154
    %v4156 = vcombine.high %v4134, %v4134
    %v4157 = vcombine.high %v4141, %v4141
    %v4158 = vcombine.high %v4148, %v4148
    %v4159 = vcombine.high %v4155, %v4155
    %v4160 = vlaneseq
    %v4161 = vshrl.u32 %v4160, 7
    %v4162 = vsub.s32 0, %v4161
    %v4163 = vrot.slane %v4134, %v4162
    %v4164 = vlaneseq
    %v4165 = vshrl.u32 %v4164, 7
    %v4166 = vsub.s32 0, %v4165
    %v4167 = vrot.slane %v4148, %v4166
    %v4168 = vlaneseq
    %v4169 = vshrl.u32 %v4168, 7
    %v4170 = vsub.s32 0, %v4169
    %v4171 = vrot.slane %v4156, %v4170
    %v4172 = vlaneseq
    %v4173 = vshrl.u32 %v4172, 7
    %v4174 = vsub.s32 0, %v4173
    %v4175 = vrot.slane %v4158, %v4174
    %v4176 = vlaneseq
    %v4177 = vshrl.u32 %v4176, 7
    %v4178 = vsub.s32 0, %v4177
    %v4179 = vrot.slane %v4141, %v4178
    %v4180 = vlaneseq
    %v4181 = vshrl.u32 %v4180, 7
    %v4182 = vsub.s32 0, %v4181
    %v4183 = vrot.slane %v4155, %v4182
    %v4184 = vlaneseq
    %v4185 = vshrl.u32 %v4184, 7
    %v4186 = vsub.s32 0, %v4185
    %v4187 = vrot.slane %v4157, %v4186
    %v4188 = vlaneseq
    %v4189 = vshrl.u32 %v4188, 7
    %v4190 = vsub.s32 0, %v4189
    %v4191 = vrot.slane %v4159, %v4190
    %vm4200 = vcmask 1040384
    %v4201 = vsel %vm4200, %v4076, %v4163
    %v4202 = vsel %vm4200, %v4090, %v4167
    %v4203 = vsel %vm4200, %v4098, %v4171
    %v4204 = vsel %vm4200, %v4100, %v4175
    %v4205 = vsel %vm4200, %v4083, %v4179
    %v4206 = vsel %vm4200, %v4097, %v4183
    %v4207 = vsel %vm4200, %v4099, %v4187
    %v4208 = vsel %vm4200, %v4101, %v4191
    %vm4209 = vcmask 254976
    %4210 = vst.msk [vmem:[#allocation8] sm:$0x3] %vm4209, %v4201
    %4211 = vst.msk [vmem:[#allocation8 + $0x2] sm:$0x3] %vm4209, %v4202
    %4212 = vst.msk [vmem:[#allocation8 + $0x4] sm:$0x3] %vm4209, %v4203
    %4213 = vst.msk [vmem:[#allocation8 + $0x6] sm:$0x3] %vm4209, %v4204
    %4214 = vst.msk [vmem:[#allocation8 + $0x8] sm:$0x3] %vm4209, %v4205
    %4215 = vst.msk [vmem:[#allocation8 + $0xa] sm:$0x3] %vm4209, %v4206
    %4216 = vst.msk [vmem:[#allocation8 + $0xc] sm:$0x3] %vm4209, %v4207
    %4217 = vst.msk [vmem:[#allocation8 + $0xe] sm:$0x3] %vm4209, %v4208
    // Predicated region
    $region54: #{tpu_custom_call.1} parent=1 // pred_check
      _
    $region55: #{tpu_custom_call.1} parent=1 // pred_check_branch
      %4219 = sbr.rel (0) target = $region57
    $region56: #{tpu_custom_call.1} parent=1 // pred_region
      %s4221 = ssub.s32 256, 256
      %4222 = vsyncadd [#allocation4], %s4221
      %s4223 = sshll.u32 [#allocation8], 4
      %s4224 = int_to_ptr.vmem [resolvable:$true] %s4223
      %4229 = dma.vmem_to_hbm [thread:$0]  %s4224, 256, %s10, [#allocation4], 32, 32, 2
    $region57: #{tpu_custom_call.1} parent=1 // pred_fallthru
      _
    // Predicated region
    $region58: #{tpu_custom_call.1} parent=1 // pred_check
      _
    $region59: #{tpu_custom_call.1} parent=1 // pred_check_branch
      %4231 = sbr.rel (0) target = $region61
    $region60: #{tpu_custom_call.1} parent=1 // pred_region
      %4232 = dma.done [#allocation4], 256
    $region61: #{tpu_custom_call.1} parent=1 // pred_fallthru
      _
    %4233 = vsyncpa [#allocation3], 1
    %4234 = vsyncpa [#allocation6], 1
    %4235 = vsyncpa [#allocation4], 1

</llo_original>
